<compile_context>
chip_gen: v7x
topology: tpu7x:2x2x1
jax: 0.10.0
libtpu: 0.0.40
codegen_flags: <defaults>
</compile_context>

<pallas_src>
import functools

import numpy as np
import jax
import jax.numpy as jnp
from jax.experimental import pallas as pl
from jax.experimental.pallas import tpu as pltpu

NEG_SLOPE = 0.01      # nn.LeakyReLU default
BN_EPS = 1e-5         # nn.BatchNorm2d default (eval mode)

# MaxPool2d(3, stride 3, pad 1) on an 8x8 map partitions rows/cols as:
_GROUPS = ((0, 1), (2, 3, 4), (5, 6, 7))
_PLANES = 9                      # (padded) positions per pool window
_WCHUNK = 384                    # 9 windows * 32 ch = 288, padded to 3*128 lanes
_C1_LANES = _PLANES * _WCHUNK    # 3456


def _lrelu(x):
    return jnp.where(x > 0, x, NEG_SLOPE * x)


# ----------------------------------------------------------------------------
# Fused kernel: conv1+BN, pool1, LReLU, conv2+BN, pool2, LReLU, MLP, log-softmax
# ----------------------------------------------------------------------------
def fused_net_kernel(x_ref, k1_ref, b1_ref, w2_ref, b2_ref,
                     fw1_ref, fb1_ref, fw2_ref, fb2_ref,
                     fw3_ref, fb3_ref, fw4_ref, fb4_ref,
                     o_ref, c1_ref, *, n):
    f32 = jnp.float32

    # ---- stage 1: conv1(1->32,3x3,pad1)+BN as ONE structured, aligned matmul.
    # Output lanes: [plane p in 0..8][pool window w in 0..8][channel], each
    # plane padded to 384 lanes. Short windows duplicate a position (max-safe).
    c1_ref[...] = jnp.dot(x_ref[...], k1_ref[...], preferred_element_type=f32)

    # pool1 = max over the 9 aligned (TB,384) planes; bias+LReLU applied ONCE
    # after the max (LeakyReLU is monotone, bias shared across the window).
    p1 = c1_ref[:, 0:_WCHUNK]
    for k in range(1, _PLANES):
        p1 = jnp.maximum(p1, c1_ref[:, k * _WCHUNK:(k + 1) * _WCHUNK])
    p1 = _lrelu(p1 + b1_ref[...])                       # (TB, 384)

    # ---- stage 2: conv2(32->128,3x3,pad1)+BN fused with MaxPool(3,s3,p1).
    # Pool2 only covers conv2 pixels (0,0),(0,1),(1,0),(1,1): 4 aligned dots,
    # running max, then bias+LReLU once.
    p2 = None
    for px in range(4):
        part = jnp.dot(p1, w2_ref[:, px * 128:(px + 1) * 128],
                       preferred_element_type=f32)      # (TB, 128)
        p2 = part if p2 is None else jnp.maximum(p2, part)
    h = _lrelu(p2 + b2_ref[...])                        # (TB, 128)

    # ---- stage 3: MLP head (weights zero-padded to 128 lanes) + log-softmax.
    # TODO(synk): Dropout(0.2) is implemented as eval-mode identity (no RNG).
    h = _lrelu(jnp.dot(h, fw1_ref[...], preferred_element_type=f32) + fb1_ref[...])
    h = _lrelu(jnp.dot(h, fw2_ref[...], preferred_element_type=f32) + fb2_ref[...])
    h = _lrelu(jnp.dot(h, fw3_ref[...], preferred_element_type=f32) + fb3_ref[...])
    logits = jnp.dot(h, fw4_ref[...], preferred_element_type=f32) + fb4_ref[...]

    col = jax.lax.broadcasted_iota(jnp.int32, logits.shape, 1)
    lm = jnp.where(col < n, logits, jnp.float32(-1e30))   # lanes >= n are padding
    m = jnp.max(lm, axis=-1, keepdims=True)
    z = jnp.sum(jnp.exp(lm - m), axis=-1, keepdims=True)
    o_ref[...] = (lm - m) - jnp.log(z)


# ----------------------------------------------------------------------------
# pallas_call wrapper
# ----------------------------------------------------------------------------
def _const_spec(shape):
    nd = len(shape)
    return pl.BlockSpec(shape, lambda b, _nd=nd: (0,) * _nd)


def _cost_estimate(bp, n):
    per_row_flops = 2 * (128 * _C1_LANES + _WCHUNK * 512 + 4 * 128 * 128)
    weight_elems = (128 * _C1_LANES + _WCHUNK + _WCHUNK * 512 + 128
                    + 4 * (128 * 128 + 128))
    return pl.CostEstimate(
        flops=int(bp * per_row_flops),
        transcendentals=int(bp * 129),
        bytes_accessed=int(4 * (bp * 256 + weight_elems)),
    )


def _fused_forward(x_flat, prep, n, tb):
    bp = x_flat.shape[0]
    grid = (bp // tb,)
    args = (x_flat, prep["k1"], prep["b1"], prep["w2"], prep["b2"],
            prep["fw1"], prep["fb1"], prep["fw2"], prep["fb2"],
            prep["fw3"], prep["fb3"], prep["fw4"], prep["fb4"])
    in_specs = [pl.BlockSpec((tb, 128), lambda b: (b, 0))]
    in_specs += [_const_spec(a.shape) for a in args[1:]]
    out_specs = pl.BlockSpec((tb, 128), lambda b: (b, 0))

    return pl.pallas_call(
        functools.partial(fused_net_kernel, n=n),
        out_shape=jax.ShapeDtypeStruct((bp, 128), jnp.float32),
        grid_spec=pltpu.PrefetchScalarGridSpec(
            num_scalar_prefetch=0,
            grid=grid,
            in_specs=in_specs,
            out_specs=out_specs,
            scratch_shapes=[
                pltpu.VMEM((tb, _C1_LANES), jnp.float32),   # conv1 output slab
            ]),
        compiler_params=pltpu.CompilerParams(
            dimension_semantics=("parallel",),          # megacore sharding on v7x
            vmem_limit_bytes=32 * 1024 * 1024),
        cost_estimate=_cost_estimate(bp, n),
    )(*args)


def net_forward(x_nchw, prep):
    """x_nchw: (B, 1, 8, 8) float32 -> (B, n) log-probabilities."""
    n = prep["n"]
    B = x_nchw.shape[0]
    bp8 = ((B + 7) // 8) * 8
    tb = min(128, bp8)
    if tb > 8 and bp8 // tb < 2:            # keep >=2 parallel steps when possible
        tb = max(8, ((bp8 // 2 + 7) // 8) * 8)
    bp = ((bp8 + tb - 1) // tb) * tb
    # Raw 8x8 image flattened to 64 lanes, padded to a 128-lane slab (conv1
    # weight rows 64..127 are zero); spatial zero-pad lives inside the weight.
    x_flat = jnp.pad(x_nchw.reshape(B, 64).astype(jnp.float32),
                     ((0, bp - B), (0, 64)))
    out = _fused_forward(x_flat, prep, n, tb)
    return out[:B, :n]


# ----------------------------------------------------------------------------
# One-time weight preparation (BN folding + structured, lane-aligned layouts)
# ----------------------------------------------------------------------------
def prepare_params(p):
    def npf(a):
        return np.asarray(a, dtype=np.float32)

    cw1, cb1 = npf(p["cw1"]), npf(p["cb1"])
    g1, be1, m1, v1 = npf(p["g1"]), npf(p["be1"]), npf(p["m1"]), npf(p["v1"])
    cw2, cb2 = npf(p["cw2"]), npf(p["cb2"])
    g2, be2, m2, v2 = npf(p["g2"]), npf(p["be2"]), npf(p["m2"]), npf(p["v2"])

    s1 = g1 / np.sqrt(v1 + BN_EPS)
    bias1 = be1 + s1 * (cb1 - m1)
    w1f = cw1 * s1                                      # (3,3,1,32) BN folded

    # Structured conv1 weight: raw (r*8+c) image lane -> [plane][window][chan].
    # Short pool windows duplicate a real position so the max is unaffected.
    k1 = np.zeros((128, _C1_LANES), np.float32)
    for wr in range(3):
        for wc in range(3):
            w = wr * 3 + wc
            pos = [(r, c) for r in _GROUPS[wr] for c in _GROUPS[wc]]
            for plane in range(_PLANES):
                orow, ocol = pos[plane % len(pos)]
                col0 = plane * _WCHUNK + w * 32
                for di in range(3):
                    for dj in range(3):
                        ir, ic = orow + di - 1, ocol + dj - 1
                        if 0 <= ir < 8 and 0 <= ic < 8:
                            k1[ir * 8 + ic, col0:col0 + 32] = w1f[di, dj, 0, :]
    b1 = np.zeros((1, _WCHUNK), np.float32)
    b1[0, :288] = np.tile(bias1, 9)

    s2 = g2 / np.sqrt(v2 + BN_EPS)
    bias2 = be2 + s2 * (cb2 - m2)
    w2f = cw2 * s2                                      # (3,3,32,128) BN folded

    # Structured conv2 weight: pool1 lanes (window*32+ci, padded to 384) ->
    # the 4 conv2 pixels needed by pool2, 128 channels each. Zero rows absorb
    # both the conv2 spatial padding and the 288->384 lane padding.
    w2 = np.zeros((_WCHUNK, 512), np.float32)
    for pi in range(2):
        for pj in range(2):
            oc0 = (pi * 2 + pj) * 128
            for di in range(3):
                for dj in range(3):
                    r, c = pi + di - 1, pj + dj - 1
                    if 0 <= r < 3 and 0 <= c < 3:
                        w = r * 3 + c
                        w2[w * 32:(w + 1) * 32, oc0:oc0 + 128] = w2f[di, dj]
    b2 = bias2.reshape(1, 128).astype(np.float32)

    def pad_linear(wt, bt, rows, cols):
        W = np.zeros((128, 128), np.float32)
        Wb = np.zeros((1, 128), np.float32)
        W[:rows, :cols] = npf(wt)
        Wb[0, :cols] = npf(bt)
        return W, Wb

    n = int(p["fw4"].shape[-1])
    assert n <= 128, "head padded to 128 output lanes"
    fw1, fb1 = pad_linear(p["fw1"], p["fb1"], 128, 64)
    fw2, fb2 = pad_linear(p["fw2"], p["fb2"], 64, 32)
    fw3, fb3 = pad_linear(p["fw3"], p["fb3"], 32, 16)
    fw4, fb4 = pad_linear(p["fw4"], p["fb4"], 16, n)

    j = lambda a: jnp.asarray(a, jnp.float32)
    return {"k1": j(k1), "b1": j(b1), "w2": j(w2), "b2": j(b2),
            "fw1": j(fw1), "fb1": j(fb1), "fw2": j(fw2), "fb2": j(fb2),
            "fw3": j(fw3), "fb3": j(fb3), "fw4": j(fw4), "fb4": j(fb4),
            "n": n}


# ----------------------------------------------------------------------------
# Deterministic synthetic parameters + pure-JAX reference (for verification)
# ----------------------------------------------------------------------------
def init_params(key, n):
    ks = jax.random.split(key, 20)

    def norm(k, shape, scale=0.1):
        return scale * jax.random.normal(k, shape, dtype=jnp.float32)

    p = {}
    p["cw1"] = norm(ks[0], (3, 3, 1, 32));   p["cb1"] = norm(ks[1], (32,))
    p["g1"] = 1.0 + norm(ks[2], (32,));      p["be1"] = norm(ks[3], (32,))
    p["m1"] = norm(ks[4], (32,));            p["v1"] = jnp.abs(norm(ks[5], (32,))) + 1.0
    p["cw2"] = norm(ks[6], (3, 3, 32, 128)); p["cb2"] = norm(ks[7], (128,))
    p["g2"] = 1.0 + norm(ks[8], (128,));     p["be2"] = norm(ks[9], (128,))
    p["m2"] = norm(ks[10], (128,));          p["v2"] = jnp.abs(norm(ks[11], (128,))) + 1.0
    p["fw1"] = norm(ks[12], (128, 64));      p["fb1"] = norm(ks[13], (64,))
    p["fw2"] = norm(ks[14], (64, 32));       p["fb2"] = norm(ks[15], (32,))
    p["fw3"] = norm(ks[16], (32, 16));       p["fb3"] = norm(ks[17], (16,))
    p["fw4"] = norm(ks[18], (16, n));        p["fb4"] = norm(ks[19], (n,))
    return p


def reference_forward(x_nchw, p):
    x = jnp.transpose(x_nchw, (0, 2, 3, 1)).astype(jnp.float32)

    def conv(h, w, b):
        return jax.lax.conv_general_dilated(
            h, w, window_strides=(1, 1), padding=((1, 1), (1, 1)),
            dimension_numbers=("NHWC", "HWIO", "NHWC")) + b

    def bn(h, g, be, m, v):
        return g * (h - m) / jnp.sqrt(v + BN_EPS) + be

    def pool(h):
        B, H, W, _ = h.shape
        Ho = (H + 2 - 3) // 3 + 1
        Wo = (W + 2 - 3) // 3 + 1
        hp = jnp.pad(h, ((0, 0), (1, 1), (1, 1), (0, 0)), constant_values=-jnp.inf)
        wins = [hp[:, di:di + 3 * Ho:3, dj:dj + 3 * Wo:3, :]
                for di in range(3) for dj in range(3)]
        return jnp.max(jnp.stack(wins, 0), axis=0)

    h = _lrelu(bn(conv(x, p["cw1"], p["cb1"]), p["g1"], p["be1"], p["m1"], p["v1"]))
    h = pool(h)
    h = _lrelu(bn(conv(h, p["cw2"], p["cb2"]), p["g2"], p["be2"], p["m2"], p["v2"]))
    h = pool(h)
    flat = h.reshape(-1, 128)
    h = _lrelu(flat @ p["fw1"] + p["fb1"])
    h = _lrelu(h @ p["fw2"] + p["fb2"])
    h = _lrelu(h @ p["fw3"] + p["fb3"])
    logits = h @ p["fw4"] + p["fb4"]
    m = jnp.max(logits, axis=-1, keepdims=True)
    return (logits - m) - jnp.log(jnp.sum(jnp.exp(logits - m), axis=-1, keepdims=True))


if __name__ == "__main__":
    B, n = 2, 10
    key = jax.random.PRNGKey(0)
    kx, kp = jax.random.split(key)
    x = jax.random.normal(kx, (B, 1, 8, 8), dtype=jnp.float32)   # NCHW like PyTorch
    raw = init_params(kp, n)
    prep = prepare_params(raw)   # one-time: BN fold + structured weight layouts

    fwd = jax.jit(lambda xx: net_forward(xx, prep))
    out = jax.block_until_ready(fwd(x))

    assert out.shape == (B, n), out.shape
    assert bool(jnp.all(jnp.isfinite(out)))
    row_sums = jnp.sum(jnp.exp(out), axis=1)
    assert bool(jnp.all(jnp.abs(row_sums - 1.0) < 1e-4)), row_sums

    ref = reference_forward(x, raw)
    err = float(jnp.max(jnp.abs(out - ref)))
    assert bool(jnp.allclose(out, ref, atol=2e-3, rtol=2e-3)), err
    print("KERNEL_OK")
</pallas_src>

<mosaic_0001>
module attributes {stable_mosaic.version = 11 : i64} {
  func.func @fused_net_kernel(%arg0: i32, %arg1: memref<8x128xf32, #tpu.memory_space<vmem>>, %arg2: memref<128x3456xf32, #tpu.memory_space<vmem>>, %arg3: memref<1x384xf32, #tpu.memory_space<vmem>>, %arg4: memref<384x512xf32, #tpu.memory_space<vmem>>, %arg5: memref<1x128xf32, #tpu.memory_space<vmem>>, %arg6: memref<128x128xf32, #tpu.memory_space<vmem>>, %arg7: memref<1x128xf32, #tpu.memory_space<vmem>>, %arg8: memref<128x128xf32, #tpu.memory_space<vmem>>, %arg9: memref<1x128xf32, #tpu.memory_space<vmem>>, %arg10: memref<128x128xf32, #tpu.memory_space<vmem>>, %arg11: memref<1x128xf32, #tpu.memory_space<vmem>>, %arg12: memref<128x128xf32, #tpu.memory_space<vmem>>, %arg13: memref<1x128xf32, #tpu.memory_space<vmem>>, %arg14: memref<8x128xf32, #tpu.memory_space<vmem>>, %arg15: memref<8x3456xf32, #tpu.memory_space<vmem>>) attributes {dimension_semantics = [#tpu.dimension_semantics<parallel>], iteration_bounds = array<i64: 1>, scalar_prefetch = 0 : i64, scratch_operands = 1 : i64, tpu.core_type = #tpu.core_type<tc>, window_params = [{transform_indices = @transform_0, window_bounds = array<i64: 8, 128>}, {pipeline_mode = #tpu.pipeline_mode<synchronous>, transform_indices = @transform_1, window_bounds = array<i64: 128, 3456>}, {pipeline_mode = #tpu.pipeline_mode<synchronous>, transform_indices = @transform_2, window_bounds = array<i64: 1, 384>}, {pipeline_mode = #tpu.pipeline_mode<synchronous>, transform_indices = @transform_3, window_bounds = array<i64: 384, 512>}, {pipeline_mode = #tpu.pipeline_mode<synchronous>, transform_indices = @transform_4, window_bounds = array<i64: 1, 128>}, {pipeline_mode = #tpu.pipeline_mode<synchronous>, transform_indices = @transform_5, window_bounds = array<i64: 128, 128>}, {pipeline_mode = #tpu.pipeline_mode<synchronous>, transform_indices = @transform_6, window_bounds = array<i64: 1, 128>}, {pipeline_mode = #tpu.pipeline_mode<synchronous>, transform_indices = @transform_7, window_bounds = array<i64: 128, 128>}, {pipeline_mode = #tpu.pipeline_mode<synchronous>, transform_indices = @transform_8, window_bounds = array<i64: 1, 128>}, {pipeline_mode = #tpu.pipeline_mode<synchronous>, transform_indices = @transform_9, window_bounds = array<i64: 128, 128>}, {pipeline_mode = #tpu.pipeline_mode<synchronous>, transform_indices = @transform_10, window_bounds = array<i64: 1, 128>}, {pipeline_mode = #tpu.pipeline_mode<synchronous>, transform_indices = @transform_11, window_bounds = array<i64: 128, 128>}, {pipeline_mode = #tpu.pipeline_mode<synchronous>, transform_indices = @transform_12, window_bounds = array<i64: 1, 128>}, {transform_indices = @transform_13, window_bounds = array<i64: 8, 128>}]} {
    %c0 = arith.constant 0 : index
    %c0_0 = arith.constant 0 : index
    %0 = vector.load %arg1[%c0, %c0_0] : memref<8x128xf32, #tpu.memory_space<vmem>>, vector<8x128xf32>
    %c0_1 = arith.constant 0 : index
    %c0_2 = arith.constant 0 : index
    %1 = vector.load %arg2[%c0_1, %c0_2] : memref<128x3456xf32, #tpu.memory_space<vmem>>, vector<128x3456xf32>
    %cst = arith.constant dense<0.000000e+00> : vector<8x3456xf32>
    %2 = tpu.matmul %0, %1, %cst {dimension_numbers = #tpu.dot_dimension_numbers<[1], [0], [0], [1], [0, 0, 1, 1], [], []>} : vector<8x128xf32>, vector<128x3456xf32>, vector<8x3456xf32> -> vector<8x3456xf32>
    %c0_3 = arith.constant 0 : index
    %c0_4 = arith.constant 0 : index
    %3 = vector.load %arg15[%c0_3, %c0_4] : memref<8x3456xf32, #tpu.memory_space<vmem>>, vector<8x3456xf32>
    tpu.vector_store %arg15[%c0_3, %c0_4], %2 {strides = array<i32>} : memref<8x3456xf32, #tpu.memory_space<vmem>>, vector<8x3456xf32>,
    %c0_5 = arith.constant 0 : index
    %c0_6 = arith.constant 0 : index
    %4 = vector.load %arg15[%c0_5, %c0_6] : memref<8x3456xf32, #tpu.memory_space<vmem>>, vector<8x384xf32>
    %c0_7 = arith.constant 0 : index
    %c384 = arith.constant 384 : index
    %5 = vector.load %arg15[%c0_7, %c384] : memref<8x3456xf32, #tpu.memory_space<vmem>>, vector<8x384xf32>
    %6 = arith.maximumf %4, %5 : vector<8x384xf32>
    %c0_8 = arith.constant 0 : index
    %c768 = arith.constant 768 : index
    %7 = vector.load %arg15[%c0_8, %c768] : memref<8x3456xf32, #tpu.memory_space<vmem>>, vector<8x384xf32>
    %8 = arith.maximumf %6, %7 : vector<8x384xf32>
    %c0_9 = arith.constant 0 : index
    %c1152 = arith.constant 1152 : index
    %9 = vector.load %arg15[%c0_9, %c1152] : memref<8x3456xf32, #tpu.memory_space<vmem>>, vector<8x384xf32>
    %10 = arith.maximumf %8, %9 : vector<8x384xf32>
    %c0_10 = arith.constant 0 : index
    %c1536 = arith.constant 1536 : index
    %11 = vector.load %arg15[%c0_10, %c1536] : memref<8x3456xf32, #tpu.memory_space<vmem>>, vector<8x384xf32>
    %12 = arith.maximumf %10, %11 : vector<8x384xf32>
    %c0_11 = arith.constant 0 : index
    %c1920 = arith.constant 1920 : index
    %13 = vector.load %arg15[%c0_11, %c1920] : memref<8x3456xf32, #tpu.memory_space<vmem>>, vector<8x384xf32>
    %14 = arith.maximumf %12, %13 : vector<8x384xf32>
    %c0_12 = arith.constant 0 : index
    %c2304 = arith.constant 2304 : index
    %15 = vector.load %arg15[%c0_12, %c2304] : memref<8x3456xf32, #tpu.memory_space<vmem>>, vector<8x384xf32>
    %16 = arith.maximumf %14, %15 : vector<8x384xf32>
    %c0_13 = arith.constant 0 : index
    %c2688 = arith.constant 2688 : index
    %17 = vector.load %arg15[%c0_13, %c2688] : memref<8x3456xf32, #tpu.memory_space<vmem>>, vector<8x384xf32>
    %18 = arith.maximumf %16, %17 : vector<8x384xf32>
    %c0_14 = arith.constant 0 : index
    %c3072 = arith.constant 3072 : index
    %19 = vector.load %arg15[%c0_14, %c3072] : memref<8x3456xf32, #tpu.memory_space<vmem>>, vector<8x384xf32>
    %20 = arith.maximumf %18, %19 : vector<8x384xf32>
    %c0_15 = arith.constant 0 : index
    %c0_16 = arith.constant 0 : index
    %21 = vector.load %arg3[%c0_15, %c0_16] : memref<1x384xf32, #tpu.memory_space<vmem>>, vector<1x384xf32>
    %22 = vector.broadcast %21 : vector<1x384xf32> to vector<8x384xf32>
    %23 = arith.addf %20, %22 : vector<8x384xf32>
    %cst_17 = arith.constant 0.000000e+00 : f32
    %24 = vector.broadcast %cst_17 : f32 to vector<8x384xf32>
    %25 = arith.cmpf ogt, %23, %24 : vector<8x384xf32>
    %cst_18 = arith.constant 0.00999999977 : f32
    %26 = vector.broadcast %cst_18 : f32 to vector<8x384xf32>
    %27 = arith.mulf %26, %23 : vector<8x384xf32>
    %28 = arith.select %25, %23, %27 : vector<8x384xi1>, vector<8x384xf32>
    %c0_19 = arith.constant 0 : index
    %c0_20 = arith.constant 0 : index
    %29 = vector.load %arg4[%c0_19, %c0_20] : memref<384x512xf32, #tpu.memory_space<vmem>>, vector<384x128xf32>
    %cst_21 = arith.constant dense<0.000000e+00> : vector<8x128xf32>
    %30 = tpu.matmul %28, %29, %cst_21 {dimension_numbers = #tpu.dot_dimension_numbers<[1], [0], [0], [1], [0, 0, 1, 1], [], []>} : vector<8x384xf32>, vector<384x128xf32>, vector<8x128xf32> -> vector<8x128xf32>
    %c0_22 = arith.constant 0 : index
    %c128 = arith.constant 128 : index
    %31 = vector.load %arg4[%c0_22, %c128] : memref<384x512xf32, #tpu.memory_space<vmem>>, vector<384x128xf32>
    %cst_23 = arith.constant dense<0.000000e+00> : vector<8x128xf32>
    %32 = tpu.matmul %28, %31, %cst_23 {dimension_numbers = #tpu.dot_dimension_numbers<[1], [0], [0], [1], [0, 0, 1, 1], [], []>} : vector<8x384xf32>, vector<384x128xf32>, vector<8x128xf32> -> vector<8x128xf32>
    %33 = arith.maximumf %30, %32 : vector<8x128xf32>
    %c0_24 = arith.constant 0 : index
    %c256 = arith.constant 256 : index
    %34 = vector.load %arg4[%c0_24, %c256] : memref<384x512xf32, #tpu.memory_space<vmem>>, vector<384x128xf32>
    %cst_25 = arith.constant dense<0.000000e+00> : vector<8x128xf32>
    %35 = tpu.matmul %28, %34, %cst_25 {dimension_numbers = #tpu.dot_dimension_numbers<[1], [0], [0], [1], [0, 0, 1, 1], [], []>} : vector<8x384xf32>, vector<384x128xf32>, vector<8x128xf32> -> vector<8x128xf32>
    %36 = arith.maximumf %33, %35 : vector<8x128xf32>
    %c0_26 = arith.constant 0 : index
    %c384_27 = arith.constant 384 : index
    %37 = vector.load %arg4[%c0_26, %c384_27] : memref<384x512xf32, #tpu.memory_space<vmem>>, vector<384x128xf32>
    %cst_28 = arith.constant dense<0.000000e+00> : vector<8x128xf32>
    %38 = tpu.matmul %28, %37, %cst_28 {dimension_numbers = #tpu.dot_dimension_numbers<[1], [0], [0], [1], [0, 0, 1, 1], [], []>} : vector<8x384xf32>, vector<384x128xf32>, vector<8x128xf32> -> vector<8x128xf32>
    %39 = arith.maximumf %36, %38 : vector<8x128xf32>
    %c0_29 = arith.constant 0 : index
    %c0_30 = arith.constant 0 : index
    %40 = vector.load %arg5[%c0_29, %c0_30] : memref<1x128xf32, #tpu.memory_space<vmem>>, vector<1x128xf32>
    %41 = vector.broadcast %40 : vector<1x128xf32> to vector<8x128xf32>
    %42 = arith.addf %39, %41 : vector<8x128xf32>
    %cst_31 = arith.constant 0.000000e+00 : f32
    %43 = vector.broadcast %cst_31 : f32 to vector<8x128xf32>
    %44 = arith.cmpf ogt, %42, %43 : vector<8x128xf32>
    %cst_32 = arith.constant 0.00999999977 : f32
    %45 = vector.broadcast %cst_32 : f32 to vector<8x128xf32>
    %46 = arith.mulf %45, %42 : vector<8x128xf32>
    %47 = arith.select %44, %42, %46 : vector<8x128xi1>, vector<8x128xf32>
    %c0_33 = arith.constant 0 : index
    %c0_34 = arith.constant 0 : index
    %48 = vector.load %arg6[%c0_33, %c0_34] : memref<128x128xf32, #tpu.memory_space<vmem>>, vector<128x128xf32>
    %cst_35 = arith.constant dense<0.000000e+00> : vector<8x128xf32>
    %49 = tpu.matmul %47, %48, %cst_35 {dimension_numbers = #tpu.dot_dimension_numbers<[1], [0], [0], [1], [0, 0, 1, 1], [], []>} : vector<8x128xf32>, vector<128x128xf32>, vector<8x128xf32> -> vector<8x128xf32>
    %c0_36 = arith.constant 0 : index
    %c0_37 = arith.constant 0 : index
    %50 = vector.load %arg7[%c0_36, %c0_37] : memref<1x128xf32, #tpu.memory_space<vmem>>, vector<1x128xf32>
    %51 = vector.broadcast %50 : vector<1x128xf32> to vector<8x128xf32>
    %52 = arith.addf %49, %51 : vector<8x128xf32>
    %cst_38 = arith.constant 0.000000e+00 : f32
    %53 = vector.broadcast %cst_38 : f32 to vector<8x128xf32>
    %54 = arith.cmpf ogt, %52, %53 : vector<8x128xf32>
    %cst_39 = arith.constant 0.00999999977 : f32
    %55 = vector.broadcast %cst_39 : f32 to vector<8x128xf32>
    %56 = arith.mulf %55, %52 : vector<8x128xf32>
    %57 = arith.select %54, %52, %56 : vector<8x128xi1>, vector<8x128xf32>
    %c0_40 = arith.constant 0 : index
    %c0_41 = arith.constant 0 : index
    %58 = vector.load %arg8[%c0_40, %c0_41] : memref<128x128xf32, #tpu.memory_space<vmem>>, vector<128x128xf32>
    %cst_42 = arith.constant dense<0.000000e+00> : vector<8x128xf32>
    %59 = tpu.matmul %57, %58, %cst_42 {dimension_numbers = #tpu.dot_dimension_numbers<[1], [0], [0], [1], [0, 0, 1, 1], [], []>} : vector<8x128xf32>, vector<128x128xf32>, vector<8x128xf32> -> vector<8x128xf32>
    %c0_43 = arith.constant 0 : index
    %c0_44 = arith.constant 0 : index
    %60 = vector.load %arg9[%c0_43, %c0_44] : memref<1x128xf32, #tpu.memory_space<vmem>>, vector<1x128xf32>
    %61 = vector.broadcast %60 : vector<1x128xf32> to vector<8x128xf32>
    %62 = arith.addf %59, %61 : vector<8x128xf32>
    %cst_45 = arith.constant 0.000000e+00 : f32
    %63 = vector.broadcast %cst_45 : f32 to vector<8x128xf32>
    %64 = arith.cmpf ogt, %62, %63 : vector<8x128xf32>
    %cst_46 = arith.constant 0.00999999977 : f32
    %65 = vector.broadcast %cst_46 : f32 to vector<8x128xf32>
    %66 = arith.mulf %65, %62 : vector<8x128xf32>
    %67 = arith.select %64, %62, %66 : vector<8x128xi1>, vector<8x128xf32>
    %c0_47 = arith.constant 0 : index
    %c0_48 = arith.constant 0 : index
    %68 = vector.load %arg10[%c0_47, %c0_48] : memref<128x128xf32, #tpu.memory_space<vmem>>, vector<128x128xf32>
    %cst_49 = arith.constant dense<0.000000e+00> : vector<8x128xf32>
    %69 = tpu.matmul %67, %68, %cst_49 {dimension_numbers = #tpu.dot_dimension_numbers<[1], [0], [0], [1], [0, 0, 1, 1], [], []>} : vector<8x128xf32>, vector<128x128xf32>, vector<8x128xf32> -> vector<8x128xf32>
    %c0_50 = arith.constant 0 : index
    %c0_51 = arith.constant 0 : index
    %70 = vector.load %arg11[%c0_50, %c0_51] : memref<1x128xf32, #tpu.memory_space<vmem>>, vector<1x128xf32>
    %71 = vector.broadcast %70 : vector<1x128xf32> to vector<8x128xf32>
    %72 = arith.addf %69, %71 : vector<8x128xf32>
    %cst_52 = arith.constant 0.000000e+00 : f32
    %73 = vector.broadcast %cst_52 : f32 to vector<8x128xf32>
    %74 = arith.cmpf ogt, %72, %73 : vector<8x128xf32>
    %cst_53 = arith.constant 0.00999999977 : f32
    %75 = vector.broadcast %cst_53 : f32 to vector<8x128xf32>
    %76 = arith.mulf %75, %72 : vector<8x128xf32>
    %77 = arith.select %74, %72, %76 : vector<8x128xi1>, vector<8x128xf32>
    %c0_54 = arith.constant 0 : index
    %c0_55 = arith.constant 0 : index
    %78 = vector.load %arg12[%c0_54, %c0_55] : memref<128x128xf32, #tpu.memory_space<vmem>>, vector<128x128xf32>
    %cst_56 = arith.constant dense<0.000000e+00> : vector<8x128xf32>
    %79 = tpu.matmul %77, %78, %cst_56 {dimension_numbers = #tpu.dot_dimension_numbers<[1], [0], [0], [1], [0, 0, 1, 1], [], []>} : vector<8x128xf32>, vector<128x128xf32>, vector<8x128xf32> -> vector<8x128xf32>
    %c0_57 = arith.constant 0 : index
    %c0_58 = arith.constant 0 : index
    %80 = vector.load %arg13[%c0_57, %c0_58] : memref<1x128xf32, #tpu.memory_space<vmem>>, vector<1x128xf32>
    %81 = vector.broadcast %80 : vector<1x128xf32> to vector<8x128xf32>
    %82 = arith.addf %79, %81 : vector<8x128xf32>
    %83 = tpu.iota {dimensions = array<i32: 1>} : vector<8x128xi32>
    %c10_i32 = arith.constant 10 : i32
    %84 = vector.broadcast %c10_i32 : i32 to vector<8x128xi32>
    %85 = arith.cmpi slt, %83, %84 : vector<8x128xi32>
    %cst_59 = arith.constant -1.000000e+30 : f32
    %86 = vector.broadcast %cst_59 : f32 to vector<8x128xf32>
    %87 = arith.select %85, %82, %86 : vector<8x128xi1>, vector<8x128xf32>
    %cst_60 = arith.constant dense<0xFF800000> : vector<8xf32>
    %88 = vector.multi_reduction <maximumf>, %87, %cst_60 [1] : vector<8x128xf32> to vector<8xf32>
    %89 = vector.shape_cast %88 : vector<8xf32> to vector<8x1xf32>
    %90 = vector.broadcast %89 : vector<8x1xf32> to vector<8x128xf32>
    %91 = arith.subf %87, %90 : vector<8x128xf32>
    %92 = math.exp %91 : vector<8x128xf32>
    %cst_61 = arith.constant dense<0.000000e+00> : vector<8xf32>
    %93 = vector.multi_reduction <add>, %92, %cst_61 [1] : vector<8x128xf32> to vector<8xf32>
    %94 = vector.shape_cast %93 : vector<8xf32> to vector<8x1xf32>
    %95 = vector.broadcast %89 : vector<8x1xf32> to vector<8x128xf32>
    %96 = arith.subf %87, %95 : vector<8x128xf32>
    %97 = math.log %94 : vector<8x1xf32>
    %98 = vector.broadcast %97 : vector<8x1xf32> to vector<8x128xf32>
    %99 = arith.subf %96, %98 : vector<8x128xf32>
    %c0_62 = arith.constant 0 : index
    %c0_63 = arith.constant 0 : index
    %100 = vector.load %arg14[%c0_62, %c0_63] : memref<8x128xf32, #tpu.memory_space<vmem>>, vector<8x128xf32>
    tpu.vector_store %arg14[%c0_62, %c0_63], %99 {strides = array<i32>} : memref<8x128xf32, #tpu.memory_space<vmem>>, vector<8x128xf32>,
    return
  }
  func.func @transform_0(%arg0: i32) -> (i32, i32) {
    %c0_i32 = arith.constant 0 : i32
    %c0_i32_0 = arith.constant 0 : i32
    return %arg0, %c0_i32 : i32, i32
  }
  func.func @transform_1(%arg0: i32) -> (i32, i32) {
    %c0_i32 = arith.constant 0 : i32
    %c0_i32_0 = arith.constant 0 : i32
    %c0_i32_1 = arith.constant 0 : i32
    return %c0_i32, %c0_i32_0 : i32, i32
  }
  func.func @transform_2(%arg0: i32) -> (i32, i32) {
    %c0_i32 = arith.constant 0 : i32
    %c0_i32_0 = arith.constant 0 : i32
    %c0_i32_1 = arith.constant 0 : i32
    return %c0_i32, %c0_i32_0 : i32, i32
  }
  func.func @transform_3(%arg0: i32) -> (i32, i32) {
    %c0_i32 = arith.constant 0 : i32
    %c0_i32_0 = arith.constant 0 : i32
    %c0_i32_1 = arith.constant 0 : i32
    return %c0_i32, %c0_i32_0 : i32, i32
  }
  func.func @transform_4(%arg0: i32) -> (i32, i32) {
    %c0_i32 = arith.constant 0 : i32
    %c0_i32_0 = arith.constant 0 : i32
    %c0_i32_1 = arith.constant 0 : i32
    return %c0_i32, %c0_i32_0 : i32, i32
  }
  func.func @transform_5(%arg0: i32) -> (i32, i32) {
    %c0_i32 = arith.constant 0 : i32
    %c0_i32_0 = arith.constant 0 : i32
    %c0_i32_1 = arith.constant 0 : i32
    return %c0_i32, %c0_i32_0 : i32, i32
  }
  func.func @transform_6(%arg0: i32) -> (i32, i32) {
    %c0_i32 = arith.constant 0 : i32
    %c0_i32_0 = arith.constant 0 : i32
    %c0_i32_1 = arith.constant 0 : i32
    return %c0_i32, %c0_i32_0 : i32, i32
  }
  func.func @transform_7(%arg0: i32) -> (i32, i32) {
    %c0_i32 = arith.constant 0 : i32
    %c0_i32_0 = arith.constant 0 : i32
    %c0_i32_1 = arith.constant 0 : i32
    return %c0_i32, %c0_i32_0 : i32, i32
  }
  func.func @transform_8(%arg0: i32) -> (i32, i32) {
    %c0_i32 = arith.constant 0 : i32
    %c0_i32_0 = arith.constant 0 : i32
    %c0_i32_1 = arith.constant 0 : i32
    return %c0_i32, %c0_i32_0 : i32, i32
  }
  func.func @transform_9(%arg0: i32) -> (i32, i32) {
    %c0_i32 = arith.constant 0 : i32
    %c0_i32_0 = arith.constant 0 : i32
    %c0_i32_1 = arith.constant 0 : i32
    return %c0_i32, %c0_i32_0 : i32, i32
  }
  func.func @transform_10(%arg0: i32) -> (i32, i32) {
    %c0_i32 = arith.constant 0 : i32
    %c0_i32_0 = arith.constant 0 : i32
    %c0_i32_1 = arith.constant 0 : i32
    return %c0_i32, %c0_i32_0 : i32, i32
  }
  func.func @transform_11(%arg0: i32) -> (i32, i32) {
    %c0_i32 = arith.constant 0 : i32
    %c0_i32_0 = arith.constant 0 : i32
    %c0_i32_1 = arith.constant 0 : i32
    return %c0_i32, %c0_i32_0 : i32, i32
  }
  func.func @transform_12(%arg0: i32) -> (i32, i32) {
    %c0_i32 = arith.constant 0 : i32
    %c0_i32_0 = arith.constant 0 : i32
    %c0_i32_1 = arith.constant 0 : i32
    return %c0_i32, %c0_i32_0 : i32, i32
  }
  func.func @transform_13(%arg0: i32) -> (i32, i32) {
    %c0_i32 = arith.constant 0 : i32
    %c0_i32_0 = arith.constant 0 : i32
    return %arg0, %c0_i32 : i32, i32
  }
}

</mosaic_0001>

<llo_original>
// kernel: _lambda_.1
$region0: #{_lambda_.1}
  #allocation0 [shape = 'u32[]', space=smem, size = 0x4, offset = 0x4, fixed_abs, tag = 'smem constant byte address 0x4 - core index']
  #allocation1 [shape = 'u32[144,128]{1,0:T(1,128)}', space=vmem, size = 0x12000, scoped, tag = 'internal scratch']
  #allocation2 [shape = 'f32[8,3456]{1,0:T(8,128)}', space=vmem, size = 0x1b000, scoped, tag = 'scratch operand']
  %s0 = inlined_call_operand.vmem [shape: f32[8,128], index: 0, kind: input, shape index: {}]
  %s1 = inlined_call_operand.hbm [shape: f32[128,3456], index: 1, kind: input, shape index: {}]
  %s2 = inlined_call_operand.hbm [shape: f32[1,384], index: 2, kind: input, shape index: {}]
  %s3 = inlined_call_operand.hbm [shape: f32[384,512], index: 3, kind: input, shape index: {}]
  %s4 = inlined_call_operand.hbm [shape: f32[1,128], index: 4, kind: input, shape index: {}]
  %s5 = inlined_call_operand.hbm [shape: f32[128,128], index: 5, kind: input, shape index: {}]
  %s6 = inlined_call_operand.hbm [shape: f32[1,128], index: 6, kind: input, shape index: {}]
  %s7 = inlined_call_operand.hbm [shape: f32[128,128], index: 7, kind: input, shape index: {}]
  %s8 = inlined_call_operand.hbm [shape: f32[1,128], index: 8, kind: input, shape index: {}]
  %s9 = inlined_call_operand.hbm [shape: f32[128,128], index: 9, kind: input, shape index: {}]
  %s10 = inlined_call_operand.hbm [shape: f32[1,128], index: 10, kind: input, shape index: {}]
  %s11 = inlined_call_operand.hbm [shape: f32[128,128], index: 11, kind: input, shape index: {}]
  %s12 = inlined_call_operand.hbm [shape: f32[1,128], index: 12, kind: input, shape index: {}]
  %s13 = inlined_call_operand.vmem [shape: f32[8,128], index: 13, kind: output, shape index: {}]
  %s14 = sld [smem:[#allocation0]]
  $region110: #{_lambda_.1} parent=0
    _
  %s16 = ssub.s32 1, %s14
  %s17 = scalar_select 0, %s16, %s14
  $region1: #{_lambda_.1} parent=0
    #allocation3 [shape = 'u8[1769472]{0}', space=vmem, size = 0x1b0000, scoped, tag = 'input window, operand 1, single buffered']
    #allocation4 [shape = 's32[1]{0}', space=sflag, size = 0x4, scoped, tag = 'scoped memory for _lambda_.1']
    #allocation5 [shape = 'u8[1536]{0}', space=vmem, size = 0x800, scoped, tag = 'input window, operand 2, single buffered']
    #allocation6 [shape = 's32[1]{0}', space=sflag, size = 0x4, scoped, tag = 'scoped memory for _lambda_.1']
    #allocation7 [shape = 'u8[786432]{0}', space=vmem, size = 0xc0000, scoped, tag = 'input window, operand 3, single buffered']
    #allocation8 [shape = 'u8[512]{0}', space=vmem, size = 0x400, scoped, tag = 'input window, operand 4, single buffered']
    #allocation9 [shape = 's32[1]{0}', space=sflag, size = 0x4, scoped, tag = 'scoped memory for _lambda_.1']
    #allocation10 [shape = 'u8[65536]{0}', space=vmem, size = 0x10000, scoped, tag = 'input window, operand 5, single buffered']
    #allocation11 [shape = 'u8[512]{0}', space=vmem, size = 0x400, scoped, tag = 'input window, operand 6, single buffered']
    #allocation12 [shape = 's32[1]{0}', space=sflag, size = 0x4, scoped, tag = 'scoped memory for _lambda_.1']
    #allocation13 [shape = 'u8[65536]{0}', space=vmem, size = 0x10000, scoped, tag = 'input window, operand 7, single buffered']
    #allocation14 [shape = 'u8[512]{0}', space=vmem, size = 0x400, scoped, tag = 'input window, operand 8, single buffered']
    #allocation15 [shape = 's32[1]{0}', space=sflag, size = 0x4, scoped, tag = 'scoped memory for _lambda_.1']
    #allocation16 [shape = 'u8[65536]{0}', space=vmem, size = 0x10000, scoped, tag = 'input window, operand 9, single buffered']
    #allocation17 [shape = 'u8[512]{0}', space=vmem, size = 0x400, scoped, tag = 'input window, operand 10, single buffered']
    #allocation18 [shape = 's32[1]{0}', space=sflag, size = 0x4, scoped, tag = 'scoped memory for _lambda_.1']
    #allocation19 [shape = 'u8[65536]{0}', space=vmem, size = 0x10000, scoped, tag = 'input window, operand 11, single buffered']
    #allocation20 [shape = 'u8[512]{0}', space=vmem, size = 0x400, scoped, tag = 'input window, operand 12, single buffered']
    #allocation21 [shape = 's32[1]{0}', space=sflag, size = 0x4, scoped, tag = 'scoped memory for _lambda_.1']
    %18 = vsyncpa [#allocation4], 0
    %19 = vsyncpa [#allocation6], 0
    %20 = vsyncpa [#allocation9], 0
    %21 = vsyncpa [#allocation12], 0
    %22 = vsyncpa [#allocation15], 0
    %23 = vsyncpa [#allocation18], 0
    %24 = vsyncpa [#allocation21], 0
    // Predicated region
    $region2: #{_lambda_.1} parent=1 // pred_check
      _
    $region3: #{_lambda_.1} parent=1 // pred_check_branch
      %26 = sbr.rel (0) target = $region5
    $region4: #{_lambda_.1} parent=1 // pred_region
      _
    $region5: #{_lambda_.1} parent=1 // pred_fallthru
      _
    // Predicated region
    $region6: #{_lambda_.1} parent=1 // pred_check
      _
    $region7: #{_lambda_.1} parent=1 // pred_check_branch
      %28 = sbr.rel (0) target = $region9
    $region8: #{_lambda_.1} parent=1 // pred_region
      %s30 = ssub.s32 55296, 55296
      %31 = vsyncadd [#allocation4], %s30
      %s32 = sshll.u32 [#allocation3], 4
      %s33 = int_to_ptr.vmem [resolvable:$true] %s32
      %38 = dma.hbm_to_vmem [thread:$0]  %s1, 55296, %s33, [#allocation4], 3456, 3456, 216
    $region9: #{_lambda_.1} parent=1 // pred_fallthru
      _
    // Predicated region
    $region10: #{_lambda_.1} parent=1 // pred_check
      _
    $region11: #{_lambda_.1} parent=1 // pred_check_branch
      %40 = sbr.rel (0) target = $region13
    $region12: #{_lambda_.1} parent=1 // pred_region
      %s42 = ssub.s32 48, 48
      %43 = vsyncadd [#allocation6], %s42
      %s45 = sshll.u32 [#allocation5], 4
      %s46 = int_to_ptr.vmem [resolvable:$true] %s45
      %48 = dma.hbm_to_vmem [thread:$0]  %s2, 48, %s46, [#allocation6]
    $region13: #{_lambda_.1} parent=1 // pred_fallthru
      _
    // Predicated region
    $region14: #{_lambda_.1} parent=1 // pred_check
      _
    $region15: #{_lambda_.1} parent=1 // pred_check_branch
      %50 = sbr.rel (0) target = $region17
    $region16: #{_lambda_.1} parent=1 // pred_region
      %s52 = ssub.s32 24576, 24576
      %53 = vsyncadd [#allocation6], %s52
      %s54 = sshll.u32 [#allocation7], 4
      %s55 = int_to_ptr.vmem [resolvable:$true] %s54
      %60 = dma.hbm_to_vmem [thread:$0]  %s3, 24576, %s55, [#allocation6], 512, 512, 32
    $region17: #{_lambda_.1} parent=1 // pred_fallthru
      _
    // Predicated region
    $region18: #{_lambda_.1} parent=1 // pred_check
      _
    $region19: #{_lambda_.1} parent=1 // pred_check_branch
      %62 = sbr.rel (0) target = $region21
    $region20: #{_lambda_.1} parent=1 // pred_region
      %s64 = ssub.s32 16, 16
      %65 = vsyncadd [#allocation9], %s64
      %s67 = sshll.u32 [#allocation8], 4
      %s68 = int_to_ptr.vmem [resolvable:$true] %s67
      %70 = dma.hbm_to_vmem [thread:$0]  %s4, 16, %s68, [#allocation9]
    $region21: #{_lambda_.1} parent=1 // pred_fallthru
      _
    // Predicated region
    $region22: #{_lambda_.1} parent=1 // pred_check
      _
    $region23: #{_lambda_.1} parent=1 // pred_check_branch
      %72 = sbr.rel (0) target = $region25
    $region24: #{_lambda_.1} parent=1 // pred_region
      %s74 = ssub.s32 2048, 2048
      %75 = vsyncadd [#allocation9], %s74
      %s76 = sshll.u32 [#allocation10], 4
      %s77 = int_to_ptr.vmem [resolvable:$true] %s76
      %82 = dma.hbm_to_vmem [thread:$0]  %s5, 2048, %s77, [#allocation9], 128, 128, 8
    $region25: #{_lambda_.1} parent=1 // pred_fallthru
      _
    // Predicated region
    $region26: #{_lambda_.1} parent=1 // pred_check
      _
    $region27: #{_lambda_.1} parent=1 // pred_check_branch
      %84 = sbr.rel (0) target = $region29
    $region28: #{_lambda_.1} parent=1 // pred_region
      %s86 = ssub.s32 16, 16
      %87 = vsyncadd [#allocation12], %s86
      %s89 = sshll.u32 [#allocation11], 4
      %s90 = int_to_ptr.vmem [resolvable:$true] %s89
      %92 = dma.hbm_to_vmem [thread:$0]  %s6, 16, %s90, [#allocation12]
    $region29: #{_lambda_.1} parent=1 // pred_fallthru
      _
    // Predicated region
    $region30: #{_lambda_.1} parent=1 // pred_check
      _
    $region31: #{_lambda_.1} parent=1 // pred_check_branch
      %94 = sbr.rel (0) target = $region33
    $region32: #{_lambda_.1} parent=1 // pred_region
      %s96 = ssub.s32 2048, 2048
      %97 = vsyncadd [#allocation12], %s96
      %s98 = sshll.u32 [#allocation13], 4
      %s99 = int_to_ptr.vmem [resolvable:$true] %s98
      %104 = dma.hbm_to_vmem [thread:$0]  %s7, 2048, %s99, [#allocation12], 128, 128, 8
    $region33: #{_lambda_.1} parent=1 // pred_fallthru
      _
    // Predicated region
    $region34: #{_lambda_.1} parent=1 // pred_check
      _
    $region35: #{_lambda_.1} parent=1 // pred_check_branch
      %106 = sbr.rel (0) target = $region37
    $region36: #{_lambda_.1} parent=1 // pred_region
      %s108 = ssub.s32 16, 16
      %109 = vsyncadd [#allocation15], %s108
      %s111 = sshll.u32 [#allocation14], 4
      %s112 = int_to_ptr.vmem [resolvable:$true] %s111
      %114 = dma.hbm_to_vmem [thread:$0]  %s8, 16, %s112, [#allocation15]
    $region37: #{_lambda_.1} parent=1 // pred_fallthru
      _
    // Predicated region
    $region38: #{_lambda_.1} parent=1 // pred_check
      _
    $region39: #{_lambda_.1} parent=1 // pred_check_branch
      %116 = sbr.rel (0) target = $region41
    $region40: #{_lambda_.1} parent=1 // pred_region
      %s118 = ssub.s32 2048, 2048
      %119 = vsyncadd [#allocation15], %s118
      %s120 = sshll.u32 [#allocation16], 4
      %s121 = int_to_ptr.vmem [resolvable:$true] %s120
      %126 = dma.hbm_to_vmem [thread:$0]  %s9, 2048, %s121, [#allocation15], 128, 128, 8
    $region41: #{_lambda_.1} parent=1 // pred_fallthru
      _
    // Predicated region
    $region42: #{_lambda_.1} parent=1 // pred_check
      _
    $region43: #{_lambda_.1} parent=1 // pred_check_branch
      %128 = sbr.rel (0) target = $region45
    $region44: #{_lambda_.1} parent=1 // pred_region
      %s130 = ssub.s32 16, 16
      %131 = vsyncadd [#allocation18], %s130
      %s133 = sshll.u32 [#allocation17], 4
      %s134 = int_to_ptr.vmem [resolvable:$true] %s133
      %136 = dma.hbm_to_vmem [thread:$0]  %s10, 16, %s134, [#allocation18]
    $region45: #{_lambda_.1} parent=1 // pred_fallthru
      _
    // Predicated region
    $region46: #{_lambda_.1} parent=1 // pred_check
      _
    $region47: #{_lambda_.1} parent=1 // pred_check_branch
      %138 = sbr.rel (0) target = $region49
    $region48: #{_lambda_.1} parent=1 // pred_region
      %s140 = ssub.s32 2048, 2048
      %141 = vsyncadd [#allocation18], %s140
      %s142 = sshll.u32 [#allocation19], 4
      %s143 = int_to_ptr.vmem [resolvable:$true] %s142
      %148 = dma.hbm_to_vmem [thread:$0]  %s11, 2048, %s143, [#allocation18], 128, 128, 8
    $region49: #{_lambda_.1} parent=1 // pred_fallthru
      _
    // Predicated region
    $region50: #{_lambda_.1} parent=1 // pred_check
      _
    $region51: #{_lambda_.1} parent=1 // pred_check_branch
      %150 = sbr.rel (0) target = $region53
    $region52: #{_lambda_.1} parent=1 // pred_region
      %s152 = ssub.s32 16, 16
      %153 = vsyncadd [#allocation21], %s152
      %s155 = sshll.u32 [#allocation20], 4
      %s156 = int_to_ptr.vmem [resolvable:$true] %s155
      %158 = dma.hbm_to_vmem [thread:$0]  %s12, 16, %s156, [#allocation21]
    $region53: #{_lambda_.1} parent=1 // pred_fallthru
      _
    // Predicated region
    $region54: #{_lambda_.1} parent=1 // pred_check
      _
    $region55: #{_lambda_.1} parent=1 // pred_check_branch
      %160 = sbr.rel (0) target = $region57
    $region56: #{_lambda_.1} parent=1 // pred_region
      %161 = dma.done [#allocation4], 55296
    $region57: #{_lambda_.1} parent=1 // pred_fallthru
      _
    // Predicated region
    $region58: #{_lambda_.1} parent=1 // pred_check
      _
    $region59: #{_lambda_.1} parent=1 // pred_check_branch
      %163 = sbr.rel (0) target = $region61
    $region60: #{_lambda_.1} parent=1 // pred_region
      %164 = dma.done [#allocation6], 48
    $region61: #{_lambda_.1} parent=1 // pred_fallthru
      _
    // Predicated region
    $region62: #{_lambda_.1} parent=1 // pred_check
      _
    $region63: #{_lambda_.1} parent=1 // pred_check_branch
      %166 = sbr.rel (0) target = $region65
    $region64: #{_lambda_.1} parent=1 // pred_region
      %167 = dma.done [#allocation6], 24576
    $region65: #{_lambda_.1} parent=1 // pred_fallthru
      _
    // Predicated region
    $region66: #{_lambda_.1} parent=1 // pred_check
      _
    $region67: #{_lambda_.1} parent=1 // pred_check_branch
      %169 = sbr.rel (0) target = $region69
    $region68: #{_lambda_.1} parent=1 // pred_region
      %170 = dma.done [#allocation9], 16
    $region69: #{_lambda_.1} parent=1 // pred_fallthru
      _
    // Predicated region
    $region70: #{_lambda_.1} parent=1 // pred_check
      _
    $region71: #{_lambda_.1} parent=1 // pred_check_branch
      %172 = sbr.rel (0) target = $region73
    $region72: #{_lambda_.1} parent=1 // pred_region
      %173 = dma.done [#allocation9], 2048
    $region73: #{_lambda_.1} parent=1 // pred_fallthru
      _
    // Predicated region
    $region74: #{_lambda_.1} parent=1 // pred_check
      _
    $region75: #{_lambda_.1} parent=1 // pred_check_branch
      %175 = sbr.rel (0) target = $region77
    $region76: #{_lambda_.1} parent=1 // pred_region
      %176 = dma.done [#allocation12], 16
    $region77: #{_lambda_.1} parent=1 // pred_fallthru
      _
    // Predicated region
    $region78: #{_lambda_.1} parent=1 // pred_check
      _
    $region79: #{_lambda_.1} parent=1 // pred_check_branch
      %178 = sbr.rel (0) target = $region81
    $region80: #{_lambda_.1} parent=1 // pred_region
      %179 = dma.done [#allocation12], 2048
    $region81: #{_lambda_.1} parent=1 // pred_fallthru
      _
    // Predicated region
    $region82: #{_lambda_.1} parent=1 // pred_check
      _
    $region83: #{_lambda_.1} parent=1 // pred_check_branch
      %181 = sbr.rel (0) target = $region85
    $region84: #{_lambda_.1} parent=1 // pred_region
      %182 = dma.done [#allocation15], 16
    $region85: #{_lambda_.1} parent=1 // pred_fallthru
      _
    // Predicated region
    $region86: #{_lambda_.1} parent=1 // pred_check
      _
    $region87: #{_lambda_.1} parent=1 // pred_check_branch
      %184 = sbr.rel (0) target = $region89
    $region88: #{_lambda_.1} parent=1 // pred_region
      %185 = dma.done [#allocation15], 2048
    $region89: #{_lambda_.1} parent=1 // pred_fallthru
      _
    // Predicated region
    $region90: #{_lambda_.1} parent=1 // pred_check
      _
    $region91: #{_lambda_.1} parent=1 // pred_check_branch
      %187 = sbr.rel (0) target = $region93
    $region92: #{_lambda_.1} parent=1 // pred_region
      %188 = dma.done [#allocation18], 16
    $region93: #{_lambda_.1} parent=1 // pred_fallthru
      _
    // Predicated region
    $region94: #{_lambda_.1} parent=1 // pred_check
      _
    $region95: #{_lambda_.1} parent=1 // pred_check_branch
      %190 = sbr.rel (0) target = $region97
    $region96: #{_lambda_.1} parent=1 // pred_region
      %191 = dma.done [#allocation18], 2048
    $region97: #{_lambda_.1} parent=1 // pred_fallthru
      _
    // Predicated region
    $region98: #{_lambda_.1} parent=1 // pred_check
      _
    $region99: #{_lambda_.1} parent=1 // pred_check_branch
      %193 = sbr.rel (0) target = $region101
    $region100: #{_lambda_.1} parent=1 // pred_region
      %194 = dma.done [#allocation21], 16
    $region101: #{_lambda_.1} parent=1 // pred_fallthru
      _
    %v195 = vld [vmem:[%s0] sm:$0xff]
    %v196 = vld [vmem:[#allocation3] sm:$0xff]
    %v197 = vld [vmem:[#allocation3 + $0x8] sm:$0xff]
    %v198 = vld [vmem:[#allocation3 + $0x10] sm:$0xff]
    %v199 = vld [vmem:[#allocation3 + $0x18] sm:$0xff]
    %v200 = vld [vmem:[#allocation3 + $0x20] sm:$0xff]
    %v201 = vld [vmem:[#allocation3 + $0x28] sm:$0xff]
    %v202 = vld [vmem:[#allocation3 + $0x30] sm:$0xff]
    %v203 = vld [vmem:[#allocation3 + $0x38] sm:$0xff]
    %v204 = vld [vmem:[#allocation3 + $0x40] sm:$0xff]
    %v205 = vld [vmem:[#allocation3 + $0x48] sm:$0xff]
    %v206 = vld [vmem:[#allocation3 + $0x50] sm:$0xff]
    %v207 = vld [vmem:[#allocation3 + $0x58] sm:$0xff]
    %v208 = vld [vmem:[#allocation3 + $0x60] sm:$0xff]
    %v209 = vld [vmem:[#allocation3 + $0x68] sm:$0xff]
    %v210 = vld [vmem:[#allocation3 + $0x70] sm:$0xff]
    %v211 = vld [vmem:[#allocation3 + $0x78] sm:$0xff]
    %v212 = vld [vmem:[#allocation3 + $0x80] sm:$0xff]
    %v213 = vld [vmem:[#allocation3 + $0x88] sm:$0xff]
    %v214 = vld [vmem:[#allocation3 + $0x90] sm:$0xff]
    %v215 = vld [vmem:[#allocation3 + $0x98] sm:$0xff]
    %v216 = vld [vmem:[#allocation3 + $0xa0] sm:$0xff]
    %v217 = vld [vmem:[#allocation3 + $0xa8] sm:$0xff]
    %v218 = vld [vmem:[#allocation3 + $0xb0] sm:$0xff]
    %v219 = vld [vmem:[#allocation3 + $0xb8] sm:$0xff]
    %v220 = vld [vmem:[#allocation3 + $0xc0] sm:$0xff]
    %v221 = vld [vmem:[#allocation3 + $0xc8] sm:$0xff]
    %v222 = vld [vmem:[#allocation3 + $0xd0] sm:$0xff]
    %v223 = vld [vmem:[#allocation3 + $0xd8] sm:$0xff]
    %v224 = vld [vmem:[#allocation3 + $0xe0] sm:$0xff]
    %v225 = vld [vmem:[#allocation3 + $0xe8] sm:$0xff]
    %v226 = vld [vmem:[#allocation3 + $0xf0] sm:$0xff]
    %v227 = vld [vmem:[#allocation3 + $0xf8] sm:$0xff]
    %v228 = vld [vmem:[#allocation3 + $0x100] sm:$0xff]
    %v229 = vld [vmem:[#allocation3 + $0x108] sm:$0xff]
    %v230 = vld [vmem:[#allocation3 + $0x110] sm:$0xff]
    %v231 = vld [vmem:[#allocation3 + $0x118] sm:$0xff]
    %v232 = vld [vmem:[#allocation3 + $0x120] sm:$0xff]
    %v233 = vld [vmem:[#allocation3 + $0x128] sm:$0xff]
    %v234 = vld [vmem:[#allocation3 + $0x130] sm:$0xff]
    %v235 = vld [vmem:[#allocation3 + $0x138] sm:$0xff]
    %v236 = vld [vmem:[#allocation3 + $0x140] sm:$0xff]
    %v237 = vld [vmem:[#allocation3 + $0x148] sm:$0xff]
    %v238 = vld [vmem:[#allocation3 + $0x150] sm:$0xff]
    %v239 = vld [vmem:[#allocation3 + $0x158] sm:$0xff]
    %v240 = vld [vmem:[#allocation3 + $0x160] sm:$0xff]
    %v241 = vld [vmem:[#allocation3 + $0x168] sm:$0xff]
    %v242 = vld [vmem:[#allocation3 + $0x170] sm:$0xff]
    %v243 = vld [vmem:[#allocation3 + $0x178] sm:$0xff]
    %v244 = vld [vmem:[#allocation3 + $0x180] sm:$0xff]
    %v245 = vld [vmem:[#allocation3 + $0x188] sm:$0xff]
    %v246 = vld [vmem:[#allocation3 + $0x190] sm:$0xff]
    %v247 = vld [vmem:[#allocation3 + $0x198] sm:$0xff]
    %v248 = vld [vmem:[#allocation3 + $0x1a0] sm:$0xff]
    %v249 = vld [vmem:[#allocation3 + $0x1a8] sm:$0xff]
    %v250 = vld [vmem:[#allocation3 + $0x1b0] sm:$0xff]
    %v251 = vld [vmem:[#allocation3 + $0x1b8] sm:$0xff]
    %v252 = vld [vmem:[#allocation3 + $0x1c0] sm:$0xff]
    %v253 = vld [vmem:[#allocation3 + $0x1c8] sm:$0xff]
    %v254 = vld [vmem:[#allocation3 + $0x1d0] sm:$0xff]
    %v255 = vld [vmem:[#allocation3 + $0x1d8] sm:$0xff]
    %v256 = vld [vmem:[#allocation3 + $0x1e0] sm:$0xff]
    %v257 = vld [vmem:[#allocation3 + $0x1e8] sm:$0xff]
    %v258 = vld [vmem:[#allocation3 + $0x1f0] sm:$0xff]
    %v259 = vld [vmem:[#allocation3 + $0x1f8] sm:$0xff]
    %v260 = vld [vmem:[#allocation3 + $0x200] sm:$0xff]
    %v261 = vld [vmem:[#allocation3 + $0x208] sm:$0xff]
    %v262 = vld [vmem:[#allocation3 + $0x210] sm:$0xff]
    %v263 = vld [vmem:[#allocation3 + $0x218] sm:$0xff]
    %v264 = vld [vmem:[#allocation3 + $0x220] sm:$0xff]
    %v265 = vld [vmem:[#allocation3 + $0x228] sm:$0xff]
    %v266 = vld [vmem:[#allocation3 + $0x230] sm:$0xff]
    %v267 = vld [vmem:[#allocation3 + $0x238] sm:$0xff]
    %v268 = vld [vmem:[#allocation3 + $0x240] sm:$0xff]
    %v269 = vld [vmem:[#allocation3 + $0x248] sm:$0xff]
    %v270 = vld [vmem:[#allocation3 + $0x250] sm:$0xff]
    %v271 = vld [vmem:[#allocation3 + $0x258] sm:$0xff]
    %v272 = vld [vmem:[#allocation3 + $0x260] sm:$0xff]
    %v273 = vld [vmem:[#allocation3 + $0x268] sm:$0xff]
    %v274 = vld [vmem:[#allocation3 + $0x270] sm:$0xff]
    %v275 = vld [vmem:[#allocation3 + $0x278] sm:$0xff]
    %v276 = vld [vmem:[#allocation3 + $0x280] sm:$0xff]
    %v277 = vld [vmem:[#allocation3 + $0x288] sm:$0xff]
    %v278 = vld [vmem:[#allocation3 + $0x290] sm:$0xff]
    %v279 = vld [vmem:[#allocation3 + $0x298] sm:$0xff]
    %v280 = vld [vmem:[#allocation3 + $0x2a0] sm:$0xff]
    %v281 = vld [vmem:[#allocation3 + $0x2a8] sm:$0xff]
    %v282 = vld [vmem:[#allocation3 + $0x2b0] sm:$0xff]
    %v283 = vld [vmem:[#allocation3 + $0x2b8] sm:$0xff]
    %v284 = vld [vmem:[#allocation3 + $0x2c0] sm:$0xff]
    %v285 = vld [vmem:[#allocation3 + $0x2c8] sm:$0xff]
    %v286 = vld [vmem:[#allocation3 + $0x2d0] sm:$0xff]
    %v287 = vld [vmem:[#allocation3 + $0x2d8] sm:$0xff]
    %v288 = vld [vmem:[#allocation3 + $0x2e0] sm:$0xff]
    %v289 = vld [vmem:[#allocation3 + $0x2e8] sm:$0xff]
    %v290 = vld [vmem:[#allocation3 + $0x2f0] sm:$0xff]
    %v291 = vld [vmem:[#allocation3 + $0x2f8] sm:$0xff]
    %v292 = vld [vmem:[#allocation3 + $0x300] sm:$0xff]
    %v293 = vld [vmem:[#allocation3 + $0x308] sm:$0xff]
    %v294 = vld [vmem:[#allocation3 + $0x310] sm:$0xff]
    %v295 = vld [vmem:[#allocation3 + $0x318] sm:$0xff]
    %v296 = vld [vmem:[#allocation3 + $0x320] sm:$0xff]
    %v297 = vld [vmem:[#allocation3 + $0x328] sm:$0xff]
    %v298 = vld [vmem:[#allocation3 + $0x330] sm:$0xff]
    %v299 = vld [vmem:[#allocation3 + $0x338] sm:$0xff]
    %v300 = vld [vmem:[#allocation3 + $0x340] sm:$0xff]
    %v301 = vld [vmem:[#allocation3 + $0x348] sm:$0xff]
    %v302 = vld [vmem:[#allocation3 + $0x350] sm:$0xff]
    %v303 = vld [vmem:[#allocation3 + $0x358] sm:$0xff]
    %v304 = vld [vmem:[#allocation3 + $0x360] sm:$0xff]
    %v305 = vld [vmem:[#allocation3 + $0x368] sm:$0xff]
    %v306 = vld [vmem:[#allocation3 + $0x370] sm:$0xff]
    %v307 = vld [vmem:[#allocation3 + $0x378] sm:$0xff]
    %v308 = vld [vmem:[#allocation3 + $0x380] sm:$0xff]
    %v309 = vld [vmem:[#allocation3 + $0x388] sm:$0xff]
    %v310 = vld [vmem:[#allocation3 + $0x390] sm:$0xff]
    %v311 = vld [vmem:[#allocation3 + $0x398] sm:$0xff]
    %v312 = vld [vmem:[#allocation3 + $0x3a0] sm:$0xff]
    %v313 = vld [vmem:[#allocation3 + $0x3a8] sm:$0xff]
    %v314 = vld [vmem:[#allocation3 + $0x3b0] sm:$0xff]
    %v315 = vld [vmem:[#allocation3 + $0x3b8] sm:$0xff]
    %v316 = vld [vmem:[#allocation3 + $0x3c0] sm:$0xff]
    %v317 = vld [vmem:[#allocation3 + $0x3c8] sm:$0xff]
    %v318 = vld [vmem:[#allocation3 + $0x3d0] sm:$0xff]
    %v319 = vld [vmem:[#allocation3 + $0x3d8] sm:$0xff]
    %v320 = vld [vmem:[#allocation3 + $0x3e0] sm:$0xff]
    %v321 = vld [vmem:[#allocation3 + $0x3e8] sm:$0xff]
    %v322 = vld [vmem:[#allocation3 + $0x3f0] sm:$0xff]
    %v323 = vld [vmem:[#allocation3 + $0x3f8] sm:$0xff]
    %v324 = vld [vmem:[#allocation3 + $0x400] sm:$0xff]
    %v325 = vld [vmem:[#allocation3 + $0x408] sm:$0xff]
    %v326 = vld [vmem:[#allocation3 + $0x410] sm:$0xff]
    %v327 = vld [vmem:[#allocation3 + $0x418] sm:$0xff]
    %v328 = vld [vmem:[#allocation3 + $0x420] sm:$0xff]
    %v329 = vld [vmem:[#allocation3 + $0x428] sm:$0xff]
    %v330 = vld [vmem:[#allocation3 + $0x430] sm:$0xff]
    %v331 = vld [vmem:[#allocation3 + $0x438] sm:$0xff]
    %v332 = vld [vmem:[#allocation3 + $0x440] sm:$0xff]
    %v333 = vld [vmem:[#allocation3 + $0x448] sm:$0xff]
    %v334 = vld [vmem:[#allocation3 + $0x450] sm:$0xff]
    %v335 = vld [vmem:[#allocation3 + $0x458] sm:$0xff]
    %v336 = vld [vmem:[#allocation3 + $0x460] sm:$0xff]
    %v337 = vld [vmem:[#allocation3 + $0x468] sm:$0xff]
    %v338 = vld [vmem:[#allocation3 + $0x470] sm:$0xff]
    %v339 = vld [vmem:[#allocation3 + $0x478] sm:$0xff]
    %v340 = vld [vmem:[#allocation3 + $0x480] sm:$0xff]
    %v341 = vld [vmem:[#allocation3 + $0x488] sm:$0xff]
    %v342 = vld [vmem:[#allocation3 + $0x490] sm:$0xff]
    %v343 = vld [vmem:[#allocation3 + $0x498] sm:$0xff]
    %v344 = vld [vmem:[#allocation3 + $0x4a0] sm:$0xff]
    %v345 = vld [vmem:[#allocation3 + $0x4a8] sm:$0xff]
    %v346 = vld [vmem:[#allocation3 + $0x4b0] sm:$0xff]
    %v347 = vld [vmem:[#allocation3 + $0x4b8] sm:$0xff]
    %v348 = vld [vmem:[#allocation3 + $0x4c0] sm:$0xff]
    %v349 = vld [vmem:[#allocation3 + $0x4c8] sm:$0xff]
    %v350 = vld [vmem:[#allocation3 + $0x4d0] sm:$0xff]
    %v351 = vld [vmem:[#allocation3 + $0x4d8] sm:$0xff]
    %v352 = vld [vmem:[#allocation3 + $0x4e0] sm:$0xff]
    %v353 = vld [vmem:[#allocation3 + $0x4e8] sm:$0xff]
    %v354 = vld [vmem:[#allocation3 + $0x4f0] sm:$0xff]
    %v355 = vld [vmem:[#allocation3 + $0x4f8] sm:$0xff]
    %v356 = vld [vmem:[#allocation3 + $0x500] sm:$0xff]
    %v357 = vld [vmem:[#allocation3 + $0x508] sm:$0xff]
    %v358 = vld [vmem:[#allocation3 + $0x510] sm:$0xff]
    %v359 = vld [vmem:[#allocation3 + $0x518] sm:$0xff]
    %v360 = vld [vmem:[#allocation3 + $0x520] sm:$0xff]
    %v361 = vld [vmem:[#allocation3 + $0x528] sm:$0xff]
    %v362 = vld [vmem:[#allocation3 + $0x530] sm:$0xff]
    %v363 = vld [vmem:[#allocation3 + $0x538] sm:$0xff]
    %v364 = vld [vmem:[#allocation3 + $0x540] sm:$0xff]
    %v365 = vld [vmem:[#allocation3 + $0x548] sm:$0xff]
    %v366 = vld [vmem:[#allocation3 + $0x550] sm:$0xff]
    %v367 = vld [vmem:[#allocation3 + $0x558] sm:$0xff]
    %v368 = vld [vmem:[#allocation3 + $0x560] sm:$0xff]
    %v369 = vld [vmem:[#allocation3 + $0x568] sm:$0xff]
    %v370 = vld [vmem:[#allocation3 + $0x570] sm:$0xff]
    %v371 = vld [vmem:[#allocation3 + $0x578] sm:$0xff]
    %v372 = vld [vmem:[#allocation3 + $0x580] sm:$0xff]
    %v373 = vld [vmem:[#allocation3 + $0x588] sm:$0xff]
    %v374 = vld [vmem:[#allocation3 + $0x590] sm:$0xff]
    %v375 = vld [vmem:[#allocation3 + $0x598] sm:$0xff]
    %v376 = vld [vmem:[#allocation3 + $0x5a0] sm:$0xff]
    %v377 = vld [vmem:[#allocation3 + $0x5a8] sm:$0xff]
    %v378 = vld [vmem:[#allocation3 + $0x5b0] sm:$0xff]
    %v379 = vld [vmem:[#allocation3 + $0x5b8] sm:$0xff]
    %v380 = vld [vmem:[#allocation3 + $0x5c0] sm:$0xff]
    %v381 = vld [vmem:[#allocation3 + $0x5c8] sm:$0xff]
    %v382 = vld [vmem:[#allocation3 + $0x5d0] sm:$0xff]
    %v383 = vld [vmem:[#allocation3 + $0x5d8] sm:$0xff]
    %v384 = vld [vmem:[#allocation3 + $0x5e0] sm:$0xff]
    %v385 = vld [vmem:[#allocation3 + $0x5e8] sm:$0xff]
    %v386 = vld [vmem:[#allocation3 + $0x5f0] sm:$0xff]
    %v387 = vld [vmem:[#allocation3 + $0x5f8] sm:$0xff]
    %v388 = vld [vmem:[#allocation3 + $0x600] sm:$0xff]
    %v389 = vld [vmem:[#allocation3 + $0x608] sm:$0xff]
    %v390 = vld [vmem:[#allocation3 + $0x610] sm:$0xff]
    %v391 = vld [vmem:[#allocation3 + $0x618] sm:$0xff]
    %v392 = vld [vmem:[#allocation3 + $0x620] sm:$0xff]
    %v393 = vld [vmem:[#allocation3 + $0x628] sm:$0xff]
    %v394 = vld [vmem:[#allocation3 + $0x630] sm:$0xff]
    %v395 = vld [vmem:[#allocation3 + $0x638] sm:$0xff]
    %v396 = vld [vmem:[#allocation3 + $0x640] sm:$0xff]
    %v397 = vld [vmem:[#allocation3 + $0x648] sm:$0xff]
    %v398 = vld [vmem:[#allocation3 + $0x650] sm:$0xff]
    %v399 = vld [vmem:[#allocation3 + $0x658] sm:$0xff]
    %v400 = vld [vmem:[#allocation3 + $0x660] sm:$0xff]
    %v401 = vld [vmem:[#allocation3 + $0x668] sm:$0xff]
    %v402 = vld [vmem:[#allocation3 + $0x670] sm:$0xff]
    %v403 = vld [vmem:[#allocation3 + $0x678] sm:$0xff]
    %v404 = vld [vmem:[#allocation3 + $0x680] sm:$0xff]
    %v405 = vld [vmem:[#allocation3 + $0x688] sm:$0xff]
    %v406 = vld [vmem:[#allocation3 + $0x690] sm:$0xff]
    %v407 = vld [vmem:[#allocation3 + $0x698] sm:$0xff]
    %v408 = vld [vmem:[#allocation3 + $0x6a0] sm:$0xff]
    %v409 = vld [vmem:[#allocation3 + $0x6a8] sm:$0xff]
    %v410 = vld [vmem:[#allocation3 + $0x6b0] sm:$0xff]
    %v411 = vld [vmem:[#allocation3 + $0x6b8] sm:$0xff]
    %v412 = vld [vmem:[#allocation3 + $0x6c0] sm:$0xff]
    %v413 = vld [vmem:[#allocation3 + $0x6c8] sm:$0xff]
    %v414 = vld [vmem:[#allocation3 + $0x6d0] sm:$0xff]
    %v415 = vld [vmem:[#allocation3 + $0x6d8] sm:$0xff]
    %v416 = vld [vmem:[#allocation3 + $0x6e0] sm:$0xff]
    %v417 = vld [vmem:[#allocation3 + $0x6e8] sm:$0xff]
    %v418 = vld [vmem:[#allocation3 + $0x6f0] sm:$0xff]
    %v419 = vld [vmem:[#allocation3 + $0x6f8] sm:$0xff]
    %v420 = vld [vmem:[#allocation3 + $0x700] sm:$0xff]
    %v421 = vld [vmem:[#allocation3 + $0x708] sm:$0xff]
    %v422 = vld [vmem:[#allocation3 + $0x710] sm:$0xff]
    %v423 = vld [vmem:[#allocation3 + $0x718] sm:$0xff]
    %v424 = vld [vmem:[#allocation3 + $0x720] sm:$0xff]
    %v425 = vld [vmem:[#allocation3 + $0x728] sm:$0xff]
    %v426 = vld [vmem:[#allocation3 + $0x730] sm:$0xff]
    %v427 = vld [vmem:[#allocation3 + $0x738] sm:$0xff]
    %v428 = vld [vmem:[#allocation3 + $0x740] sm:$0xff]
    %v429 = vld [vmem:[#allocation3 + $0x748] sm:$0xff]
    %v430 = vld [vmem:[#allocation3 + $0x750] sm:$0xff]
    %v431 = vld [vmem:[#allocation3 + $0x758] sm:$0xff]
    %v432 = vld [vmem:[#allocation3 + $0x760] sm:$0xff]
    %v433 = vld [vmem:[#allocation3 + $0x768] sm:$0xff]
    %v434 = vld [vmem:[#allocation3 + $0x770] sm:$0xff]
    %v435 = vld [vmem:[#allocation3 + $0x778] sm:$0xff]
    %v436 = vld [vmem:[#allocation3 + $0x780] sm:$0xff]
    %v437 = vld [vmem:[#allocation3 + $0x788] sm:$0xff]
    %v438 = vld [vmem:[#allocation3 + $0x790] sm:$0xff]
    %v439 = vld [vmem:[#allocation3 + $0x798] sm:$0xff]
    %v440 = vld [vmem:[#allocation3 + $0x7a0] sm:$0xff]
    %v441 = vld [vmem:[#allocation3 + $0x7a8] sm:$0xff]
    %v442 = vld [vmem:[#allocation3 + $0x7b0] sm:$0xff]
    %v443 = vld [vmem:[#allocation3 + $0x7b8] sm:$0xff]
    %v444 = vld [vmem:[#allocation3 + $0x7c0] sm:$0xff]
    %v445 = vld [vmem:[#allocation3 + $0x7c8] sm:$0xff]
    %v446 = vld [vmem:[#allocation3 + $0x7d0] sm:$0xff]
    %v447 = vld [vmem:[#allocation3 + $0x7d8] sm:$0xff]
    %v448 = vld [vmem:[#allocation3 + $0x7e0] sm:$0xff]
    %v449 = vld [vmem:[#allocation3 + $0x7e8] sm:$0xff]
    %v450 = vld [vmem:[#allocation3 + $0x7f0] sm:$0xff]
    %v451 = vld [vmem:[#allocation3 + $0x7f8] sm:$0xff]
    %v452 = vld [vmem:[#allocation3 + $0x800] sm:$0xff]
    %v453 = vld [vmem:[#allocation3 + $0x808] sm:$0xff]
    %v454 = vld [vmem:[#allocation3 + $0x810] sm:$0xff]
    %v455 = vld [vmem:[#allocation3 + $0x818] sm:$0xff]
    %v456 = vld [vmem:[#allocation3 + $0x820] sm:$0xff]
    %v457 = vld [vmem:[#allocation3 + $0x828] sm:$0xff]
    %v458 = vld [vmem:[#allocation3 + $0x830] sm:$0xff]
    %v459 = vld [vmem:[#allocation3 + $0x838] sm:$0xff]
    %v460 = vld [vmem:[#allocation3 + $0x840] sm:$0xff]
    %v461 = vld [vmem:[#allocation3 + $0x848] sm:$0xff]
    %v462 = vld [vmem:[#allocation3 + $0x850] sm:$0xff]
    %v463 = vld [vmem:[#allocation3 + $0x858] sm:$0xff]
    %v464 = vld [vmem:[#allocation3 + $0x860] sm:$0xff]
    %v465 = vld [vmem:[#allocation3 + $0x868] sm:$0xff]
    %v466 = vld [vmem:[#allocation3 + $0x870] sm:$0xff]
    %v467 = vld [vmem:[#allocation3 + $0x878] sm:$0xff]
    %v468 = vld [vmem:[#allocation3 + $0x880] sm:$0xff]
    %v469 = vld [vmem:[#allocation3 + $0x888] sm:$0xff]
    %v470 = vld [vmem:[#allocation3 + $0x890] sm:$0xff]
    %v471 = vld [vmem:[#allocation3 + $0x898] sm:$0xff]
    %v472 = vld [vmem:[#allocation3 + $0x8a0] sm:$0xff]
    %v473 = vld [vmem:[#allocation3 + $0x8a8] sm:$0xff]
    %v474 = vld [vmem:[#allocation3 + $0x8b0] sm:$0xff]
    %v475 = vld [vmem:[#allocation3 + $0x8b8] sm:$0xff]
    %v476 = vld [vmem:[#allocation3 + $0x8c0] sm:$0xff]
    %v477 = vld [vmem:[#allocation3 + $0x8c8] sm:$0xff]
    %v478 = vld [vmem:[#allocation3 + $0x8d0] sm:$0xff]
    %v479 = vld [vmem:[#allocation3 + $0x8d8] sm:$0xff]
    %v480 = vld [vmem:[#allocation3 + $0x8e0] sm:$0xff]
    %v481 = vld [vmem:[#allocation3 + $0x8e8] sm:$0xff]
    %v482 = vld [vmem:[#allocation3 + $0x8f0] sm:$0xff]
    %v483 = vld [vmem:[#allocation3 + $0x8f8] sm:$0xff]
    %v484 = vld [vmem:[#allocation3 + $0x900] sm:$0xff]
    %v485 = vld [vmem:[#allocation3 + $0x908] sm:$0xff]
    %v486 = vld [vmem:[#allocation3 + $0x910] sm:$0xff]
    %v487 = vld [vmem:[#allocation3 + $0x918] sm:$0xff]
    %v488 = vld [vmem:[#allocation3 + $0x920] sm:$0xff]
    %v489 = vld [vmem:[#allocation3 + $0x928] sm:$0xff]
    %v490 = vld [vmem:[#allocation3 + $0x930] sm:$0xff]
    %v491 = vld [vmem:[#allocation3 + $0x938] sm:$0xff]
    %v492 = vld [vmem:[#allocation3 + $0x940] sm:$0xff]
    %v493 = vld [vmem:[#allocation3 + $0x948] sm:$0xff]
    %v494 = vld [vmem:[#allocation3 + $0x950] sm:$0xff]
    %v495 = vld [vmem:[#allocation3 + $0x958] sm:$0xff]
    %v496 = vld [vmem:[#allocation3 + $0x960] sm:$0xff]
    %v497 = vld [vmem:[#allocation3 + $0x968] sm:$0xff]
    %v498 = vld [vmem:[#allocation3 + $0x970] sm:$0xff]
    %v499 = vld [vmem:[#allocation3 + $0x978] sm:$0xff]
    %v500 = vld [vmem:[#allocation3 + $0x980] sm:$0xff]
    %v501 = vld [vmem:[#allocation3 + $0x988] sm:$0xff]
    %v502 = vld [vmem:[#allocation3 + $0x990] sm:$0xff]
    %v503 = vld [vmem:[#allocation3 + $0x998] sm:$0xff]
    %v504 = vld [vmem:[#allocation3 + $0x9a0] sm:$0xff]
    %v505 = vld [vmem:[#allocation3 + $0x9a8] sm:$0xff]
    %v506 = vld [vmem:[#allocation3 + $0x9b0] sm:$0xff]
    %v507 = vld [vmem:[#allocation3 + $0x9b8] sm:$0xff]
    %v508 = vld [vmem:[#allocation3 + $0x9c0] sm:$0xff]
    %v509 = vld [vmem:[#allocation3 + $0x9c8] sm:$0xff]
    %v510 = vld [vmem:[#allocation3 + $0x9d0] sm:$0xff]
    %v511 = vld [vmem:[#allocation3 + $0x9d8] sm:$0xff]
    %v512 = vld [vmem:[#allocation3 + $0x9e0] sm:$0xff]
    %v513 = vld [vmem:[#allocation3 + $0x9e8] sm:$0xff]
    %v514 = vld [vmem:[#allocation3 + $0x9f0] sm:$0xff]
    %v515 = vld [vmem:[#allocation3 + $0x9f8] sm:$0xff]
    %v516 = vld [vmem:[#allocation3 + $0xa00] sm:$0xff]
    %v517 = vld [vmem:[#allocation3 + $0xa08] sm:$0xff]
    %v518 = vld [vmem:[#allocation3 + $0xa10] sm:$0xff]
    %v519 = vld [vmem:[#allocation3 + $0xa18] sm:$0xff]
    %v520 = vld [vmem:[#allocation3 + $0xa20] sm:$0xff]
    %v521 = vld [vmem:[#allocation3 + $0xa28] sm:$0xff]
    %v522 = vld [vmem:[#allocation3 + $0xa30] sm:$0xff]
    %v523 = vld [vmem:[#allocation3 + $0xa38] sm:$0xff]
    %v524 = vld [vmem:[#allocation3 + $0xa40] sm:$0xff]
    %v525 = vld [vmem:[#allocation3 + $0xa48] sm:$0xff]
    %v526 = vld [vmem:[#allocation3 + $0xa50] sm:$0xff]
    %v527 = vld [vmem:[#allocation3 + $0xa58] sm:$0xff]
    %v528 = vld [vmem:[#allocation3 + $0xa60] sm:$0xff]
    %v529 = vld [vmem:[#allocation3 + $0xa68] sm:$0xff]
    %v530 = vld [vmem:[#allocation3 + $0xa70] sm:$0xff]
    %v531 = vld [vmem:[#allocation3 + $0xa78] sm:$0xff]
    %v532 = vld [vmem:[#allocation3 + $0xa80] sm:$0xff]
    %v533 = vld [vmem:[#allocation3 + $0xa88] sm:$0xff]
    %v534 = vld [vmem:[#allocation3 + $0xa90] sm:$0xff]
    %v535 = vld [vmem:[#allocation3 + $0xa98] sm:$0xff]
    %v536 = vld [vmem:[#allocation3 + $0xaa0] sm:$0xff]
    %v537 = vld [vmem:[#allocation3 + $0xaa8] sm:$0xff]
    %v538 = vld [vmem:[#allocation3 + $0xab0] sm:$0xff]
    %v539 = vld [vmem:[#allocation3 + $0xab8] sm:$0xff]
    %v540 = vld [vmem:[#allocation3 + $0xac0] sm:$0xff]
    %v541 = vld [vmem:[#allocation3 + $0xac8] sm:$0xff]
    %v542 = vld [vmem:[#allocation3 + $0xad0] sm:$0xff]
    %v543 = vld [vmem:[#allocation3 + $0xad8] sm:$0xff]
    %v544 = vld [vmem:[#allocation3 + $0xae0] sm:$0xff]
    %v545 = vld [vmem:[#allocation3 + $0xae8] sm:$0xff]
    %v546 = vld [vmem:[#allocation3 + $0xaf0] sm:$0xff]
    %v547 = vld [vmem:[#allocation3 + $0xaf8] sm:$0xff]
    %v548 = vld [vmem:[#allocation3 + $0xb00] sm:$0xff]
    %v549 = vld [vmem:[#allocation3 + $0xb08] sm:$0xff]
    %v550 = vld [vmem:[#allocation3 + $0xb10] sm:$0xff]
    %v551 = vld [vmem:[#allocation3 + $0xb18] sm:$0xff]
    %v552 = vld [vmem:[#allocation3 + $0xb20] sm:$0xff]
    %v553 = vld [vmem:[#allocation3 + $0xb28] sm:$0xff]
    %v554 = vld [vmem:[#allocation3 + $0xb30] sm:$0xff]
    %v555 = vld [vmem:[#allocation3 + $0xb38] sm:$0xff]
    %v556 = vld [vmem:[#allocation3 + $0xb40] sm:$0xff]
    %v557 = vld [vmem:[#allocation3 + $0xb48] sm:$0xff]
    %v558 = vld [vmem:[#allocation3 + $0xb50] sm:$0xff]
    %v559 = vld [vmem:[#allocation3 + $0xb58] sm:$0xff]
    %v560 = vld [vmem:[#allocation3 + $0xb60] sm:$0xff]
    %v561 = vld [vmem:[#allocation3 + $0xb68] sm:$0xff]
    %v562 = vld [vmem:[#allocation3 + $0xb70] sm:$0xff]
    %v563 = vld [vmem:[#allocation3 + $0xb78] sm:$0xff]
    %v564 = vld [vmem:[#allocation3 + $0xb80] sm:$0xff]
    %v565 = vld [vmem:[#allocation3 + $0xb88] sm:$0xff]
    %v566 = vld [vmem:[#allocation3 + $0xb90] sm:$0xff]
    %v567 = vld [vmem:[#allocation3 + $0xb98] sm:$0xff]
    %v568 = vld [vmem:[#allocation3 + $0xba0] sm:$0xff]
    %v569 = vld [vmem:[#allocation3 + $0xba8] sm:$0xff]
    %v570 = vld [vmem:[#allocation3 + $0xbb0] sm:$0xff]
    %v571 = vld [vmem:[#allocation3 + $0xbb8] sm:$0xff]
    %v572 = vld [vmem:[#allocation3 + $0xbc0] sm:$0xff]
    %v573 = vld [vmem:[#allocation3 + $0xbc8] sm:$0xff]
    %v574 = vld [vmem:[#allocation3 + $0xbd0] sm:$0xff]
    %v575 = vld [vmem:[#allocation3 + $0xbd8] sm:$0xff]
    %v576 = vld [vmem:[#allocation3 + $0xbe0] sm:$0xff]
    %v577 = vld [vmem:[#allocation3 + $0xbe8] sm:$0xff]
    %v578 = vld [vmem:[#allocation3 + $0xbf0] sm:$0xff]
    %v579 = vld [vmem:[#allocation3 + $0xbf8] sm:$0xff]
    %v580 = vld [vmem:[#allocation3 + $0xc00] sm:$0xff]
    %v581 = vld [vmem:[#allocation3 + $0xc08] sm:$0xff]
    %v582 = vld [vmem:[#allocation3 + $0xc10] sm:$0xff]
    %v583 = vld [vmem:[#allocation3 + $0xc18] sm:$0xff]
    %v584 = vld [vmem:[#allocation3 + $0xc20] sm:$0xff]
    %v585 = vld [vmem:[#allocation3 + $0xc28] sm:$0xff]
    %v586 = vld [vmem:[#allocation3 + $0xc30] sm:$0xff]
    %v587 = vld [vmem:[#allocation3 + $0xc38] sm:$0xff]
    %v588 = vld [vmem:[#allocation3 + $0xc40] sm:$0xff]
    %v589 = vld [vmem:[#allocation3 + $0xc48] sm:$0xff]
    %v590 = vld [vmem:[#allocation3 + $0xc50] sm:$0xff]
    %v591 = vld [vmem:[#allocation3 + $0xc58] sm:$0xff]
    %v592 = vld [vmem:[#allocation3 + $0xc60] sm:$0xff]
    %v593 = vld [vmem:[#allocation3 + $0xc68] sm:$0xff]
    %v594 = vld [vmem:[#allocation3 + $0xc70] sm:$0xff]
    %v595 = vld [vmem:[#allocation3 + $0xc78] sm:$0xff]
    %v596 = vld [vmem:[#allocation3 + $0xc80] sm:$0xff]
    %v597 = vld [vmem:[#allocation3 + $0xc88] sm:$0xff]
    %v598 = vld [vmem:[#allocation3 + $0xc90] sm:$0xff]
    %v599 = vld [vmem:[#allocation3 + $0xc98] sm:$0xff]
    %v600 = vld [vmem:[#allocation3 + $0xca0] sm:$0xff]
    %v601 = vld [vmem:[#allocation3 + $0xca8] sm:$0xff]
    %v602 = vld [vmem:[#allocation3 + $0xcb0] sm:$0xff]
    %v603 = vld [vmem:[#allocation3 + $0xcb8] sm:$0xff]
    %v604 = vld [vmem:[#allocation3 + $0xcc0] sm:$0xff]
    %v605 = vld [vmem:[#allocation3 + $0xcc8] sm:$0xff]
    %v606 = vld [vmem:[#allocation3 + $0xcd0] sm:$0xff]
    %v607 = vld [vmem:[#allocation3 + $0xcd8] sm:$0xff]
    %v608 = vld [vmem:[#allocation3 + $0xce0] sm:$0xff]
    %v609 = vld [vmem:[#allocation3 + $0xce8] sm:$0xff]
    %v610 = vld [vmem:[#allocation3 + $0xcf0] sm:$0xff]
    %v611 = vld [vmem:[#allocation3 + $0xcf8] sm:$0xff]
    %v612 = vld [vmem:[#allocation3 + $0xd00] sm:$0xff]
    %v613 = vld [vmem:[#allocation3 + $0xd08] sm:$0xff]
    %v614 = vld [vmem:[#allocation3 + $0xd10] sm:$0xff]
    %v615 = vld [vmem:[#allocation3 + $0xd18] sm:$0xff]
    %v616 = vld [vmem:[#allocation3 + $0xd20] sm:$0xff]
    %v617 = vld [vmem:[#allocation3 + $0xd28] sm:$0xff]
    %v618 = vld [vmem:[#allocation3 + $0xd30] sm:$0xff]
    %v619 = vld [vmem:[#allocation3 + $0xd38] sm:$0xff]
    %v620 = vld [vmem:[#allocation3 + $0xd40] sm:$0xff]
    %v621 = vld [vmem:[#allocation3 + $0xd48] sm:$0xff]
    %v622 = vld [vmem:[#allocation3 + $0xd50] sm:$0xff]
    %v623 = vld [vmem:[#allocation3 + $0xd58] sm:$0xff]
    %v624 = vld [vmem:[#allocation3 + $0xd60] sm:$0xff]
    %v625 = vld [vmem:[#allocation3 + $0xd68] sm:$0xff]
    %v626 = vld [vmem:[#allocation3 + $0xd70] sm:$0xff]
    %v627 = vld [vmem:[#allocation3 + $0xd78] sm:$0xff]
    %628 = vmatprep.subr.mxu0 %v197
    %629 = vmatpush1.msra.mxu0 %v196
    %630 = vmatprep.subr.mxu0 %v224
    %631 = vmatpush1.msra.mxu0 %v223
    %632 = vmatprep.subr.mxu0 %v251
    %633 = vmatpush1.msra.mxu0 %v250
    %634 = vmatprep.subr.mxu0 %v278
    %635 = vmatpush1.msra.mxu0 %v277
    %636 = vmatprep.subr.mxu0 %v305
    %637 = vmatpush1.msra.mxu0 %v304
    %638 = vmatprep.subr.mxu0 %v332
    %639 = vmatpush1.msra.mxu0 %v331
    %640 = vmatprep.subr.mxu0 %v359
    %641 = vmatpush1.msra.mxu0 %v358
    %642 = vmatprep.subr.mxu0 %v386
    %643 = vmatpush1.msra.mxu0 %v385
    %644 = vmatprep.subr.mxu0 %v413
    %645 = vmatpush1.msra.mxu0 %v412
    %646 = vmatprep.subr.mxu0 %v440
    %647 = vmatpush1.msra.mxu0 %v439
    %648 = vmatprep.subr.mxu0 %v467
    %649 = vmatpush1.msra.mxu0 %v466
    %650 = vmatprep.subr.mxu0 %v494
    %651 = vmatpush1.msra.mxu0 %v493
    %652 = vmatprep.subr.mxu0 %v521
    %653 = vmatpush1.msra.mxu0 %v520
    %654 = vmatprep.subr.mxu0 %v548
    %655 = vmatpush1.msra.mxu0 %v547
    %656 = vmatprep.subr.mxu0 %v575
    %657 = vmatpush1.msra.mxu0 %v574
    %658 = vmatprep.subr.mxu0 %v602
    %659 = vmatpush1.msra.mxu0 %v601
    %660 = vmatprep.subr.mxu0 0.0
    %661 = vmatpush1.msra.mxu0 0.0
    %662 = vmatprep.subr.mxu0 0.0
    %663 = vmatpush1.msra.mxu0 0.0
    %664 = vmatprep.subr.mxu0 0.0
    %665 = vmatpush1.msra.mxu0 0.0
    %666 = vmatprep.subr.mxu0 0.0
    %667 = vmatpush1.msra.mxu0 0.0
    %668 = vmatprep.subr.mxu0 0.0
    %669 = vmatpush1.msra.mxu0 0.0
    %670 = vmatprep.subr.mxu0 0.0
    %671 = vmatpush1.msra.mxu0 0.0
    %672 = vmatprep.subr.mxu0 0.0
    %673 = vmatpush1.msra.mxu0 0.0
    %674 = vmatprep.subr.mxu0 0.0
    %675 = vmatpush1.msra.mxu0 0.0
    %676 = vmatprep.subr.mxu0 0.0
    %677 = vmatpush1.msra.mxu0 0.0
    %678 = vmatprep.subr.mxu0 0.0
    %679 = vmatpush1.msra.mxu0 0.0
    %680 = vmatprep.subr.mxu0 0.0
    %681 = vmatpush1.msra.mxu0 0.0
    %682 = vmatprep.subr.mxu0 0.0
    %683 = vmatpush1.msra.mxu0 0.0
    %684 = vmatprep.subr.mxu0 0.0
    %685 = vmatpush1.msra.mxu0 0.0
    %686 = vmatprep.subr.mxu0 0.0
    %687 = vmatpush1.msra.mxu0 0.0
    %688 = vmatprep.subr.mxu0 0.0
    %689 = vmatpush1.msra.mxu0 0.0
    %690 = vmatprep.subr.mxu0 0.0
    %691 = vmatpush1.msra.mxu0 0.0
    %692 = vmatprep.mubr.f32.mxu0 0.0
    %693 = vmatmul.mubr.f32.gmra.mrb[0].mxu0 %v195
    %v694 = vpop.f32.mrb[0].mxu0
    %v695 = vadd.f32 0.0, %v694
    %v696 = vpop.f32.mrb[0].mxu0
    %v697 = vadd.f32 0.0, %v696
    %698 = vdwg.mxu0
    %699 = vmatprep.subr.mxu0 %v199
    %700 = vmatpush1.msra.mxu0 %v198
    %701 = vmatprep.subr.mxu0 %v226
    %702 = vmatpush1.msra.mxu0 %v225
    %703 = vmatprep.subr.mxu0 %v253
    %704 = vmatpush1.msra.mxu0 %v252
    %705 = vmatprep.subr.mxu0 %v280
    %706 = vmatpush1.msra.mxu0 %v279
    %707 = vmatprep.subr.mxu0 %v307
    %708 = vmatpush1.msra.mxu0 %v306
    %709 = vmatprep.subr.mxu0 %v334
    %710 = vmatpush1.msra.mxu0 %v333
    %711 = vmatprep.subr.mxu0 %v361
    %712 = vmatpush1.msra.mxu0 %v360
    %713 = vmatprep.subr.mxu0 %v388
    %714 = vmatpush1.msra.mxu0 %v387
    %715 = vmatprep.subr.mxu0 %v415
    %716 = vmatpush1.msra.mxu0 %v414
    %717 = vmatprep.subr.mxu0 %v442
    %718 = vmatpush1.msra.mxu0 %v441
    %719 = vmatprep.subr.mxu0 %v469
    %720 = vmatpush1.msra.mxu0 %v468
    %721 = vmatprep.subr.mxu0 %v496
    %722 = vmatpush1.msra.mxu0 %v495
    %723 = vmatprep.subr.mxu0 %v523
    %724 = vmatpush1.msra.mxu0 %v522
    %725 = vmatprep.subr.mxu0 %v550
    %726 = vmatpush1.msra.mxu0 %v549
    %727 = vmatprep.subr.mxu0 %v577
    %728 = vmatpush1.msra.mxu0 %v576
    %729 = vmatprep.subr.mxu0 %v604
    %730 = vmatpush1.msra.mxu0 %v603
    %731 = vmatprep.subr.mxu0 0.0
    %732 = vmatpush1.msra.mxu0 0.0
    %733 = vmatprep.subr.mxu0 0.0
    %734 = vmatpush1.msra.mxu0 0.0
    %735 = vmatprep.subr.mxu0 0.0
    %736 = vmatpush1.msra.mxu0 0.0
    %737 = vmatprep.subr.mxu0 0.0
    %738 = vmatpush1.msra.mxu0 0.0
    %739 = vmatprep.subr.mxu0 0.0
    %740 = vmatpush1.msra.mxu0 0.0
    %741 = vmatprep.subr.mxu0 0.0
    %742 = vmatpush1.msra.mxu0 0.0
    %743 = vmatprep.subr.mxu0 0.0
    %744 = vmatpush1.msra.mxu0 0.0
    %745 = vmatprep.subr.mxu0 0.0
    %746 = vmatpush1.msra.mxu0 0.0
    %747 = vmatprep.subr.mxu0 0.0
    %748 = vmatpush1.msra.mxu0 0.0
    %749 = vmatprep.subr.mxu0 0.0
    %750 = vmatpush1.msra.mxu0 0.0
    %751 = vmatprep.subr.mxu0 0.0
    %752 = vmatpush1.msra.mxu0 0.0
    %753 = vmatprep.subr.mxu0 0.0
    %754 = vmatpush1.msra.mxu0 0.0
    %755 = vmatprep.subr.mxu0 0.0
    %756 = vmatpush1.msra.mxu0 0.0
    %757 = vmatprep.subr.mxu0 0.0
    %758 = vmatpush1.msra.mxu0 0.0
    %759 = vmatprep.subr.mxu0 0.0
    %760 = vmatpush1.msra.mxu0 0.0
    %761 = vmatprep.subr.mxu0 0.0
    %762 = vmatpush1.msra.mxu0 0.0
    %763 = vmatprep.mubr.f32.mxu0 0.0
    %764 = vmatmul.mubr.f32.gmra.mrb[0].mxu0 %v195
    %v765 = vpop.f32.mrb[0].mxu0
    %v766 = vadd.f32 0.0, %v765
    %v767 = vpop.f32.mrb[0].mxu0
    %v768 = vadd.f32 0.0, %v767
    %769 = vdwg.mxu0
    %770 = vmatprep.subr.mxu0 %v201
    %771 = vmatpush1.msra.mxu0 %v200
    %772 = vmatprep.subr.mxu0 %v228
    %773 = vmatpush1.msra.mxu0 %v227
    %774 = vmatprep.subr.mxu0 %v255
    %775 = vmatpush1.msra.mxu0 %v254
    %776 = vmatprep.subr.mxu0 %v282
    %777 = vmatpush1.msra.mxu0 %v281
    %778 = vmatprep.subr.mxu0 %v309
    %779 = vmatpush1.msra.mxu0 %v308
    %780 = vmatprep.subr.mxu0 %v336
    %781 = vmatpush1.msra.mxu0 %v335
    %782 = vmatprep.subr.mxu0 %v363
    %783 = vmatpush1.msra.mxu0 %v362
    %784 = vmatprep.subr.mxu0 %v390
    %785 = vmatpush1.msra.mxu0 %v389
    %786 = vmatprep.subr.mxu0 %v417
    %787 = vmatpush1.msra.mxu0 %v416
    %788 = vmatprep.subr.mxu0 %v444
    %789 = vmatpush1.msra.mxu0 %v443
    %790 = vmatprep.subr.mxu0 %v471
    %791 = vmatpush1.msra.mxu0 %v470
    %792 = vmatprep.subr.mxu0 %v498
    %793 = vmatpush1.msra.mxu0 %v497
    %794 = vmatprep.subr.mxu0 %v525
    %795 = vmatpush1.msra.mxu0 %v524
    %796 = vmatprep.subr.mxu0 %v552
    %797 = vmatpush1.msra.mxu0 %v551
    %798 = vmatprep.subr.mxu0 %v579
    %799 = vmatpush1.msra.mxu0 %v578
    %800 = vmatprep.subr.mxu0 %v606
    %801 = vmatpush1.msra.mxu0 %v605
    %802 = vmatprep.subr.mxu0 0.0
    %803 = vmatpush1.msra.mxu0 0.0
    %804 = vmatprep.subr.mxu0 0.0
    %805 = vmatpush1.msra.mxu0 0.0
    %806 = vmatprep.subr.mxu0 0.0
    %807 = vmatpush1.msra.mxu0 0.0
    %808 = vmatprep.subr.mxu0 0.0
    %809 = vmatpush1.msra.mxu0 0.0
    %810 = vmatprep.subr.mxu0 0.0
    %811 = vmatpush1.msra.mxu0 0.0
    %812 = vmatprep.subr.mxu0 0.0
    %813 = vmatpush1.msra.mxu0 0.0
    %814 = vmatprep.subr.mxu0 0.0
    %815 = vmatpush1.msra.mxu0 0.0
    %816 = vmatprep.subr.mxu0 0.0
    %817 = vmatpush1.msra.mxu0 0.0
    %818 = vmatprep.subr.mxu0 0.0
    %819 = vmatpush1.msra.mxu0 0.0
    %820 = vmatprep.subr.mxu0 0.0
    %821 = vmatpush1.msra.mxu0 0.0
    %822 = vmatprep.subr.mxu0 0.0
    %823 = vmatpush1.msra.mxu0 0.0
    %824 = vmatprep.subr.mxu0 0.0
    %825 = vmatpush1.msra.mxu0 0.0
    %826 = vmatprep.subr.mxu0 0.0
    %827 = vmatpush1.msra.mxu0 0.0
    %828 = vmatprep.subr.mxu0 0.0
    %829 = vmatpush1.msra.mxu0 0.0
    %830 = vmatprep.subr.mxu0 0.0
    %831 = vmatpush1.msra.mxu0 0.0
    %832 = vmatprep.subr.mxu0 0.0
    %833 = vmatpush1.msra.mxu0 0.0
    %834 = vmatprep.mubr.f32.mxu0 0.0
    %835 = vmatmul.mubr.f32.gmra.mrb[0].mxu0 %v195
    %v836 = vpop.f32.mrb[0].mxu0
    %v837 = vadd.f32 0.0, %v836
    %v838 = vpop.f32.mrb[0].mxu0
    %v839 = vadd.f32 0.0, %v838
    %840 = vdwg.mxu0
    %841 = vmatprep.subr.mxu0 %v203
    %842 = vmatpush1.msra.mxu0 %v202
    %843 = vmatprep.subr.mxu0 %v230
    %844 = vmatpush1.msra.mxu0 %v229
    %845 = vmatprep.subr.mxu0 %v257
    %846 = vmatpush1.msra.mxu0 %v256
    %847 = vmatprep.subr.mxu0 %v284
    %848 = vmatpush1.msra.mxu0 %v283
    %849 = vmatprep.subr.mxu0 %v311
    %850 = vmatpush1.msra.mxu0 %v310
    %851 = vmatprep.subr.mxu0 %v338
    %852 = vmatpush1.msra.mxu0 %v337
    %853 = vmatprep.subr.mxu0 %v365
    %854 = vmatpush1.msra.mxu0 %v364
    %855 = vmatprep.subr.mxu0 %v392
    %856 = vmatpush1.msra.mxu0 %v391
    %857 = vmatprep.subr.mxu0 %v419
    %858 = vmatpush1.msra.mxu0 %v418
    %859 = vmatprep.subr.mxu0 %v446
    %860 = vmatpush1.msra.mxu0 %v445
    %861 = vmatprep.subr.mxu0 %v473
    %862 = vmatpush1.msra.mxu0 %v472
    %863 = vmatprep.subr.mxu0 %v500
    %864 = vmatpush1.msra.mxu0 %v499
    %865 = vmatprep.subr.mxu0 %v527
    %866 = vmatpush1.msra.mxu0 %v526
    %867 = vmatprep.subr.mxu0 %v554
    %868 = vmatpush1.msra.mxu0 %v553
    %869 = vmatprep.subr.mxu0 %v581
    %870 = vmatpush1.msra.mxu0 %v580
    %871 = vmatprep.subr.mxu0 %v608
    %872 = vmatpush1.msra.mxu0 %v607
    %873 = vmatprep.subr.mxu0 0.0
    %874 = vmatpush1.msra.mxu0 0.0
    %875 = vmatprep.subr.mxu0 0.0
    %876 = vmatpush1.msra.mxu0 0.0
    %877 = vmatprep.subr.mxu0 0.0
    %878 = vmatpush1.msra.mxu0 0.0
    %879 = vmatprep.subr.mxu0 0.0
    %880 = vmatpush1.msra.mxu0 0.0
    %881 = vmatprep.subr.mxu0 0.0
    %882 = vmatpush1.msra.mxu0 0.0
    %883 = vmatprep.subr.mxu0 0.0
    %884 = vmatpush1.msra.mxu0 0.0
    %885 = vmatprep.subr.mxu0 0.0
    %886 = vmatpush1.msra.mxu0 0.0
    %887 = vmatprep.subr.mxu0 0.0
    %888 = vmatpush1.msra.mxu0 0.0
    %889 = vmatprep.subr.mxu0 0.0
    %890 = vmatpush1.msra.mxu0 0.0
    %891 = vmatprep.subr.mxu0 0.0
    %892 = vmatpush1.msra.mxu0 0.0
    %893 = vmatprep.subr.mxu0 0.0
    %894 = vmatpush1.msra.mxu0 0.0
    %895 = vmatprep.subr.mxu0 0.0
    %896 = vmatpush1.msra.mxu0 0.0
    %897 = vmatprep.subr.mxu0 0.0
    %898 = vmatpush1.msra.mxu0 0.0
    %899 = vmatprep.subr.mxu0 0.0
    %900 = vmatpush1.msra.mxu0 0.0
    %901 = vmatprep.subr.mxu0 0.0
    %902 = vmatpush1.msra.mxu0 0.0
    %903 = vmatprep.subr.mxu0 0.0
    %904 = vmatpush1.msra.mxu0 0.0
    %905 = vmatprep.mubr.f32.mxu0 0.0
    %906 = vmatmul.mubr.f32.gmra.mrb[0].mxu0 %v195
    %v907 = vpop.f32.mrb[0].mxu0
    %v908 = vadd.f32 0.0, %v907
    %v909 = vpop.f32.mrb[0].mxu0
    %v910 = vadd.f32 0.0, %v909
    %911 = vdwg.mxu0
    %912 = vmatprep.subr.mxu0 %v205
    %913 = vmatpush1.msra.mxu0 %v204
    %914 = vmatprep.subr.mxu0 %v232
    %915 = vmatpush1.msra.mxu0 %v231
    %916 = vmatprep.subr.mxu0 %v259
    %917 = vmatpush1.msra.mxu0 %v258
    %918 = vmatprep.subr.mxu0 %v286
    %919 = vmatpush1.msra.mxu0 %v285
    %920 = vmatprep.subr.mxu0 %v313
    %921 = vmatpush1.msra.mxu0 %v312
    %922 = vmatprep.subr.mxu0 %v340
    %923 = vmatpush1.msra.mxu0 %v339
    %924 = vmatprep.subr.mxu0 %v367
    %925 = vmatpush1.msra.mxu0 %v366
    %926 = vmatprep.subr.mxu0 %v394
    %927 = vmatpush1.msra.mxu0 %v393
    %928 = vmatprep.subr.mxu0 %v421
    %929 = vmatpush1.msra.mxu0 %v420
    %930 = vmatprep.subr.mxu0 %v448
    %931 = vmatpush1.msra.mxu0 %v447
    %932 = vmatprep.subr.mxu0 %v475
    %933 = vmatpush1.msra.mxu0 %v474
    %934 = vmatprep.subr.mxu0 %v502
    %935 = vmatpush1.msra.mxu0 %v501
    %936 = vmatprep.subr.mxu0 %v529
    %937 = vmatpush1.msra.mxu0 %v528
    %938 = vmatprep.subr.mxu0 %v556
    %939 = vmatpush1.msra.mxu0 %v555
    %940 = vmatprep.subr.mxu0 %v583
    %941 = vmatpush1.msra.mxu0 %v582
    %942 = vmatprep.subr.mxu0 %v610
    %943 = vmatpush1.msra.mxu0 %v609
    %944 = vmatprep.subr.mxu0 0.0
    %945 = vmatpush1.msra.mxu0 0.0
    %946 = vmatprep.subr.mxu0 0.0
    %947 = vmatpush1.msra.mxu0 0.0
    %948 = vmatprep.subr.mxu0 0.0
    %949 = vmatpush1.msra.mxu0 0.0
    %950 = vmatprep.subr.mxu0 0.0
    %951 = vmatpush1.msra.mxu0 0.0
    %952 = vmatprep.subr.mxu0 0.0
    %953 = vmatpush1.msra.mxu0 0.0
    %954 = vmatprep.subr.mxu0 0.0
    %955 = vmatpush1.msra.mxu0 0.0
    %956 = vmatprep.subr.mxu0 0.0
    %957 = vmatpush1.msra.mxu0 0.0
    %958 = vmatprep.subr.mxu0 0.0
    %959 = vmatpush1.msra.mxu0 0.0
    %960 = vmatprep.subr.mxu0 0.0
    %961 = vmatpush1.msra.mxu0 0.0
    %962 = vmatprep.subr.mxu0 0.0
    %963 = vmatpush1.msra.mxu0 0.0
    %964 = vmatprep.subr.mxu0 0.0
    %965 = vmatpush1.msra.mxu0 0.0
    %966 = vmatprep.subr.mxu0 0.0
    %967 = vmatpush1.msra.mxu0 0.0
    %968 = vmatprep.subr.mxu0 0.0
    %969 = vmatpush1.msra.mxu0 0.0
    %970 = vmatprep.subr.mxu0 0.0
    %971 = vmatpush1.msra.mxu0 0.0
    %972 = vmatprep.subr.mxu0 0.0
    %973 = vmatpush1.msra.mxu0 0.0
    %974 = vmatprep.subr.mxu0 0.0
    %975 = vmatpush1.msra.mxu0 0.0
    %976 = vmatprep.mubr.f32.mxu0 0.0
    %977 = vmatmul.mubr.f32.gmra.mrb[0].mxu0 %v195
    %v978 = vpop.f32.mrb[0].mxu0
    %v979 = vadd.f32 0.0, %v978
    %v980 = vpop.f32.mrb[0].mxu0
    %v981 = vadd.f32 0.0, %v980
    %982 = vdwg.mxu0
    %983 = vmatprep.subr.mxu0 %v207
    %984 = vmatpush1.msra.mxu0 %v206
    %985 = vmatprep.subr.mxu0 %v234
    %986 = vmatpush1.msra.mxu0 %v233
    %987 = vmatprep.subr.mxu0 %v261
    %988 = vmatpush1.msra.mxu0 %v260
    %989 = vmatprep.subr.mxu0 %v288
    %990 = vmatpush1.msra.mxu0 %v287
    %991 = vmatprep.subr.mxu0 %v315
    %992 = vmatpush1.msra.mxu0 %v314
    %993 = vmatprep.subr.mxu0 %v342
    %994 = vmatpush1.msra.mxu0 %v341
    %995 = vmatprep.subr.mxu0 %v369
    %996 = vmatpush1.msra.mxu0 %v368
    %997 = vmatprep.subr.mxu0 %v396
    %998 = vmatpush1.msra.mxu0 %v395
    %999 = vmatprep.subr.mxu0 %v423
    %1000 = vmatpush1.msra.mxu0 %v422
    %1001 = vmatprep.subr.mxu0 %v450
    %1002 = vmatpush1.msra.mxu0 %v449
    %1003 = vmatprep.subr.mxu0 %v477
    %1004 = vmatpush1.msra.mxu0 %v476
    %1005 = vmatprep.subr.mxu0 %v504
    %1006 = vmatpush1.msra.mxu0 %v503
    %1007 = vmatprep.subr.mxu0 %v531
    %1008 = vmatpush1.msra.mxu0 %v530
    %1009 = vmatprep.subr.mxu0 %v558
    %1010 = vmatpush1.msra.mxu0 %v557
    %1011 = vmatprep.subr.mxu0 %v585
    %1012 = vmatpush1.msra.mxu0 %v584
    %1013 = vmatprep.subr.mxu0 %v612
    %1014 = vmatpush1.msra.mxu0 %v611
    %1015 = vmatprep.subr.mxu0 0.0
    %1016 = vmatpush1.msra.mxu0 0.0
    %1017 = vmatprep.subr.mxu0 0.0
    %1018 = vmatpush1.msra.mxu0 0.0
    %1019 = vmatprep.subr.mxu0 0.0
    %1020 = vmatpush1.msra.mxu0 0.0
    %1021 = vmatprep.subr.mxu0 0.0
    %1022 = vmatpush1.msra.mxu0 0.0
    %1023 = vmatprep.subr.mxu0 0.0
    %1024 = vmatpush1.msra.mxu0 0.0
    %1025 = vmatprep.subr.mxu0 0.0
    %1026 = vmatpush1.msra.mxu0 0.0
    %1027 = vmatprep.subr.mxu0 0.0
    %1028 = vmatpush1.msra.mxu0 0.0
    %1029 = vmatprep.subr.mxu0 0.0
    %1030 = vmatpush1.msra.mxu0 0.0
    %1031 = vmatprep.subr.mxu0 0.0
    %1032 = vmatpush1.msra.mxu0 0.0
    %1033 = vmatprep.subr.mxu0 0.0
    %1034 = vmatpush1.msra.mxu0 0.0
    %1035 = vmatprep.subr.mxu0 0.0
    %1036 = vmatpush1.msra.mxu0 0.0
    %1037 = vmatprep.subr.mxu0 0.0
    %1038 = vmatpush1.msra.mxu0 0.0
    %1039 = vmatprep.subr.mxu0 0.0
    %1040 = vmatpush1.msra.mxu0 0.0
    %1041 = vmatprep.subr.mxu0 0.0
    %1042 = vmatpush1.msra.mxu0 0.0
    %1043 = vmatprep.subr.mxu0 0.0
    %1044 = vmatpush1.msra.mxu0 0.0
    %1045 = vmatprep.subr.mxu0 0.0
    %1046 = vmatpush1.msra.mxu0 0.0
    %1047 = vmatprep.mubr.f32.mxu0 0.0
    %1048 = vmatmul.mubr.f32.gmra.mrb[0].mxu0 %v195
    %v1049 = vpop.f32.mrb[0].mxu0
    %v1050 = vadd.f32 0.0, %v1049
    %v1051 = vpop.f32.mrb[0].mxu0
    %v1052 = vadd.f32 0.0, %v1051
    %1053 = vdwg.mxu0
    %1054 = vmatprep.subr.mxu0 %v209
    %1055 = vmatpush1.msra.mxu0 %v208
    %1056 = vmatprep.subr.mxu0 %v236
    %1057 = vmatpush1.msra.mxu0 %v235
    %1058 = vmatprep.subr.mxu0 %v263
    %1059 = vmatpush1.msra.mxu0 %v262
    %1060 = vmatprep.subr.mxu0 %v290
    %1061 = vmatpush1.msra.mxu0 %v289
    %1062 = vmatprep.subr.mxu0 %v317
    %1063 = vmatpush1.msra.mxu0 %v316
    %1064 = vmatprep.subr.mxu0 %v344
    %1065 = vmatpush1.msra.mxu0 %v343
    %1066 = vmatprep.subr.mxu0 %v371
    %1067 = vmatpush1.msra.mxu0 %v370
    %1068 = vmatprep.subr.mxu0 %v398
    %1069 = vmatpush1.msra.mxu0 %v397
    %1070 = vmatprep.subr.mxu0 %v425
    %1071 = vmatpush1.msra.mxu0 %v424
    %1072 = vmatprep.subr.mxu0 %v452
    %1073 = vmatpush1.msra.mxu0 %v451
    %1074 = vmatprep.subr.mxu0 %v479
    %1075 = vmatpush1.msra.mxu0 %v478
    %1076 = vmatprep.subr.mxu0 %v506
    %1077 = vmatpush1.msra.mxu0 %v505
    %1078 = vmatprep.subr.mxu0 %v533
    %1079 = vmatpush1.msra.mxu0 %v532
    %1080 = vmatprep.subr.mxu0 %v560
    %1081 = vmatpush1.msra.mxu0 %v559
    %1082 = vmatprep.subr.mxu0 %v587
    %1083 = vmatpush1.msra.mxu0 %v586
    %1084 = vmatprep.subr.mxu0 %v614
    %1085 = vmatpush1.msra.mxu0 %v613
    %1086 = vmatprep.subr.mxu0 0.0
    %1087 = vmatpush1.msra.mxu0 0.0
    %1088 = vmatprep.subr.mxu0 0.0
    %1089 = vmatpush1.msra.mxu0 0.0
    %1090 = vmatprep.subr.mxu0 0.0
    %1091 = vmatpush1.msra.mxu0 0.0
    %1092 = vmatprep.subr.mxu0 0.0
    %1093 = vmatpush1.msra.mxu0 0.0
    %1094 = vmatprep.subr.mxu0 0.0
    %1095 = vmatpush1.msra.mxu0 0.0
    %1096 = vmatprep.subr.mxu0 0.0
    %1097 = vmatpush1.msra.mxu0 0.0
    %1098 = vmatprep.subr.mxu0 0.0
    %1099 = vmatpush1.msra.mxu0 0.0
    %1100 = vmatprep.subr.mxu0 0.0
    %1101 = vmatpush1.msra.mxu0 0.0
    %1102 = vmatprep.subr.mxu0 0.0
    %1103 = vmatpush1.msra.mxu0 0.0
    %1104 = vmatprep.subr.mxu0 0.0
    %1105 = vmatpush1.msra.mxu0 0.0
    %1106 = vmatprep.subr.mxu0 0.0
    %1107 = vmatpush1.msra.mxu0 0.0
    %1108 = vmatprep.subr.mxu0 0.0
    %1109 = vmatpush1.msra.mxu0 0.0
    %1110 = vmatprep.subr.mxu0 0.0
    %1111 = vmatpush1.msra.mxu0 0.0
    %1112 = vmatprep.subr.mxu0 0.0
    %1113 = vmatpush1.msra.mxu0 0.0
    %1114 = vmatprep.subr.mxu0 0.0
    %1115 = vmatpush1.msra.mxu0 0.0
    %1116 = vmatprep.subr.mxu0 0.0
    %1117 = vmatpush1.msra.mxu0 0.0
    %1118 = vmatprep.mubr.f32.mxu0 0.0
    %1119 = vmatmul.mubr.f32.gmra.mrb[0].mxu0 %v195
    %v1120 = vpop.f32.mrb[0].mxu0
    %v1121 = vadd.f32 0.0, %v1120
    %v1122 = vpop.f32.mrb[0].mxu0
    %v1123 = vadd.f32 0.0, %v1122
    %1124 = vdwg.mxu0
    %1125 = vmatprep.subr.mxu0 %v211
    %1126 = vmatpush1.msra.mxu0 %v210
    %1127 = vmatprep.subr.mxu0 %v238
    %1128 = vmatpush1.msra.mxu0 %v237
    %1129 = vmatprep.subr.mxu0 %v265
    %1130 = vmatpush1.msra.mxu0 %v264
    %1131 = vmatprep.subr.mxu0 %v292
    %1132 = vmatpush1.msra.mxu0 %v291
    %1133 = vmatprep.subr.mxu0 %v319
    %1134 = vmatpush1.msra.mxu0 %v318
    %1135 = vmatprep.subr.mxu0 %v346
    %1136 = vmatpush1.msra.mxu0 %v345
    %1137 = vmatprep.subr.mxu0 %v373
    %1138 = vmatpush1.msra.mxu0 %v372
    %1139 = vmatprep.subr.mxu0 %v400
    %1140 = vmatpush1.msra.mxu0 %v399
    %1141 = vmatprep.subr.mxu0 %v427
    %1142 = vmatpush1.msra.mxu0 %v426
    %1143 = vmatprep.subr.mxu0 %v454
    %1144 = vmatpush1.msra.mxu0 %v453
    %1145 = vmatprep.subr.mxu0 %v481
    %1146 = vmatpush1.msra.mxu0 %v480
    %1147 = vmatprep.subr.mxu0 %v508
    %1148 = vmatpush1.msra.mxu0 %v507
    %1149 = vmatprep.subr.mxu0 %v535
    %1150 = vmatpush1.msra.mxu0 %v534
    %1151 = vmatprep.subr.mxu0 %v562
    %1152 = vmatpush1.msra.mxu0 %v561
    %1153 = vmatprep.subr.mxu0 %v589
    %1154 = vmatpush1.msra.mxu0 %v588
    %1155 = vmatprep.subr.mxu0 %v616
    %1156 = vmatpush1.msra.mxu0 %v615
    %1157 = vmatprep.subr.mxu0 0.0
    %1158 = vmatpush1.msra.mxu0 0.0
    %1159 = vmatprep.subr.mxu0 0.0
    %1160 = vmatpush1.msra.mxu0 0.0
    %1161 = vmatprep.subr.mxu0 0.0
    %1162 = vmatpush1.msra.mxu0 0.0
    %1163 = vmatprep.subr.mxu0 0.0
    %1164 = vmatpush1.msra.mxu0 0.0
    %1165 = vmatprep.subr.mxu0 0.0
    %1166 = vmatpush1.msra.mxu0 0.0
    %1167 = vmatprep.subr.mxu0 0.0
    %1168 = vmatpush1.msra.mxu0 0.0
    %1169 = vmatprep.subr.mxu0 0.0
    %1170 = vmatpush1.msra.mxu0 0.0
    %1171 = vmatprep.subr.mxu0 0.0
    %1172 = vmatpush1.msra.mxu0 0.0
    %1173 = vmatprep.subr.mxu0 0.0
    %1174 = vmatpush1.msra.mxu0 0.0
    %1175 = vmatprep.subr.mxu0 0.0
    %1176 = vmatpush1.msra.mxu0 0.0
    %1177 = vmatprep.subr.mxu0 0.0
    %1178 = vmatpush1.msra.mxu0 0.0
    %1179 = vmatprep.subr.mxu0 0.0
    %1180 = vmatpush1.msra.mxu0 0.0
    %1181 = vmatprep.subr.mxu0 0.0
    %1182 = vmatpush1.msra.mxu0 0.0
    %1183 = vmatprep.subr.mxu0 0.0
    %1184 = vmatpush1.msra.mxu0 0.0
    %1185 = vmatprep.subr.mxu0 0.0
    %1186 = vmatpush1.msra.mxu0 0.0
    %1187 = vmatprep.subr.mxu0 0.0
    %1188 = vmatpush1.msra.mxu0 0.0
    %1189 = vmatprep.mubr.f32.mxu0 0.0
    %1190 = vmatmul.mubr.f32.gmra.mrb[0].mxu0 %v195
    %v1191 = vpop.f32.mrb[0].mxu0
    %v1192 = vadd.f32 0.0, %v1191
    %v1193 = vpop.f32.mrb[0].mxu0
    %v1194 = vadd.f32 0.0, %v1193
    %1195 = vdwg.mxu0
    %1196 = vmatprep.subr.mxu0 %v213
    %1197 = vmatpush1.msra.mxu0 %v212
    %1198 = vmatprep.subr.mxu0 %v240
    %1199 = vmatpush1.msra.mxu0 %v239
    %1200 = vmatprep.subr.mxu0 %v267
    %1201 = vmatpush1.msra.mxu0 %v266
    %1202 = vmatprep.subr.mxu0 %v294
    %1203 = vmatpush1.msra.mxu0 %v293
    %1204 = vmatprep.subr.mxu0 %v321
    %1205 = vmatpush1.msra.mxu0 %v320
    %1206 = vmatprep.subr.mxu0 %v348
    %1207 = vmatpush1.msra.mxu0 %v347
    %1208 = vmatprep.subr.mxu0 %v375
    %1209 = vmatpush1.msra.mxu0 %v374
    %1210 = vmatprep.subr.mxu0 %v402
    %1211 = vmatpush1.msra.mxu0 %v401
    %1212 = vmatprep.subr.mxu0 %v429
    %1213 = vmatpush1.msra.mxu0 %v428
    %1214 = vmatprep.subr.mxu0 %v456
    %1215 = vmatpush1.msra.mxu0 %v455
    %1216 = vmatprep.subr.mxu0 %v483
    %1217 = vmatpush1.msra.mxu0 %v482
    %1218 = vmatprep.subr.mxu0 %v510
    %1219 = vmatpush1.msra.mxu0 %v509
    %1220 = vmatprep.subr.mxu0 %v537
    %1221 = vmatpush1.msra.mxu0 %v536
    %1222 = vmatprep.subr.mxu0 %v564
    %1223 = vmatpush1.msra.mxu0 %v563
    %1224 = vmatprep.subr.mxu0 %v591
    %1225 = vmatpush1.msra.mxu0 %v590
    %1226 = vmatprep.subr.mxu0 %v618
    %1227 = vmatpush1.msra.mxu0 %v617
    %1228 = vmatprep.subr.mxu0 0.0
    %1229 = vmatpush1.msra.mxu0 0.0
    %1230 = vmatprep.subr.mxu0 0.0
    %1231 = vmatpush1.msra.mxu0 0.0
    %1232 = vmatprep.subr.mxu0 0.0
    %1233 = vmatpush1.msra.mxu0 0.0
    %1234 = vmatprep.subr.mxu0 0.0
    %1235 = vmatpush1.msra.mxu0 0.0
    %1236 = vmatprep.subr.mxu0 0.0
    %1237 = vmatpush1.msra.mxu0 0.0
    %1238 = vmatprep.subr.mxu0 0.0
    %1239 = vmatpush1.msra.mxu0 0.0
    %1240 = vmatprep.subr.mxu0 0.0
    %1241 = vmatpush1.msra.mxu0 0.0
    %1242 = vmatprep.subr.mxu0 0.0
    %1243 = vmatpush1.msra.mxu0 0.0
    %1244 = vmatprep.subr.mxu0 0.0
    %1245 = vmatpush1.msra.mxu0 0.0
    %1246 = vmatprep.subr.mxu0 0.0
    %1247 = vmatpush1.msra.mxu0 0.0
    %1248 = vmatprep.subr.mxu0 0.0
    %1249 = vmatpush1.msra.mxu0 0.0
    %1250 = vmatprep.subr.mxu0 0.0
    %1251 = vmatpush1.msra.mxu0 0.0
    %1252 = vmatprep.subr.mxu0 0.0
    %1253 = vmatpush1.msra.mxu0 0.0
    %1254 = vmatprep.subr.mxu0 0.0
    %1255 = vmatpush1.msra.mxu0 0.0
    %1256 = vmatprep.subr.mxu0 0.0
    %1257 = vmatpush1.msra.mxu0 0.0
    %1258 = vmatprep.subr.mxu0 0.0
    %1259 = vmatpush1.msra.mxu0 0.0
    %1260 = vmatprep.mubr.f32.mxu0 0.0
    %1261 = vmatmul.mubr.f32.gmra.mrb[0].mxu0 %v195
    %v1262 = vpop.f32.mrb[0].mxu0
    %v1263 = vadd.f32 0.0, %v1262
    %v1264 = vpop.f32.mrb[0].mxu0
    %v1265 = vadd.f32 0.0, %v1264
    %1266 = vdwg.mxu0
    %1267 = vmatprep.subr.mxu0 %v215
    %1268 = vmatpush1.msra.mxu0 %v214
    %1269 = vmatprep.subr.mxu0 %v242
    %1270 = vmatpush1.msra.mxu0 %v241
    %1271 = vmatprep.subr.mxu0 %v269
    %1272 = vmatpush1.msra.mxu0 %v268
    %1273 = vmatprep.subr.mxu0 %v296
    %1274 = vmatpush1.msra.mxu0 %v295
    %1275 = vmatprep.subr.mxu0 %v323
    %1276 = vmatpush1.msra.mxu0 %v322
    %1277 = vmatprep.subr.mxu0 %v350
    %1278 = vmatpush1.msra.mxu0 %v349
    %1279 = vmatprep.subr.mxu0 %v377
    %1280 = vmatpush1.msra.mxu0 %v376
    %1281 = vmatprep.subr.mxu0 %v404
    %1282 = vmatpush1.msra.mxu0 %v403
    %1283 = vmatprep.subr.mxu0 %v431
    %1284 = vmatpush1.msra.mxu0 %v430
    %1285 = vmatprep.subr.mxu0 %v458
    %1286 = vmatpush1.msra.mxu0 %v457
    %1287 = vmatprep.subr.mxu0 %v485
    %1288 = vmatpush1.msra.mxu0 %v484
    %1289 = vmatprep.subr.mxu0 %v512
    %1290 = vmatpush1.msra.mxu0 %v511
    %1291 = vmatprep.subr.mxu0 %v539
    %1292 = vmatpush1.msra.mxu0 %v538
    %1293 = vmatprep.subr.mxu0 %v566
    %1294 = vmatpush1.msra.mxu0 %v565
    %1295 = vmatprep.subr.mxu0 %v593
    %1296 = vmatpush1.msra.mxu0 %v592
    %1297 = vmatprep.subr.mxu0 %v620
    %1298 = vmatpush1.msra.mxu0 %v619
    %1299 = vmatprep.subr.mxu0 0.0
    %1300 = vmatpush1.msra.mxu0 0.0
    %1301 = vmatprep.subr.mxu0 0.0
    %1302 = vmatpush1.msra.mxu0 0.0
    %1303 = vmatprep.subr.mxu0 0.0
    %1304 = vmatpush1.msra.mxu0 0.0
    %1305 = vmatprep.subr.mxu0 0.0
    %1306 = vmatpush1.msra.mxu0 0.0
    %1307 = vmatprep.subr.mxu0 0.0
    %1308 = vmatpush1.msra.mxu0 0.0
    %1309 = vmatprep.subr.mxu0 0.0
    %1310 = vmatpush1.msra.mxu0 0.0
    %1311 = vmatprep.subr.mxu0 0.0
    %1312 = vmatpush1.msra.mxu0 0.0
    %1313 = vmatprep.subr.mxu0 0.0
    %1314 = vmatpush1.msra.mxu0 0.0
    %1315 = vmatprep.subr.mxu0 0.0
    %1316 = vmatpush1.msra.mxu0 0.0
    %1317 = vmatprep.subr.mxu0 0.0
    %1318 = vmatpush1.msra.mxu0 0.0
    %1319 = vmatprep.subr.mxu0 0.0
    %1320 = vmatpush1.msra.mxu0 0.0
    %1321 = vmatprep.subr.mxu0 0.0
    %1322 = vmatpush1.msra.mxu0 0.0
    %1323 = vmatprep.subr.mxu0 0.0
    %1324 = vmatpush1.msra.mxu0 0.0
    %1325 = vmatprep.subr.mxu0 0.0
    %1326 = vmatpush1.msra.mxu0 0.0
    %1327 = vmatprep.subr.mxu0 0.0
    %1328 = vmatpush1.msra.mxu0 0.0
    %1329 = vmatprep.subr.mxu0 0.0
    %1330 = vmatpush1.msra.mxu0 0.0
    %1331 = vmatprep.mubr.f32.mxu0 0.0
    %1332 = vmatmul.mubr.f32.gmra.mrb[0].mxu0 %v195
    %v1333 = vpop.f32.mrb[0].mxu0
    %v1334 = vadd.f32 0.0, %v1333
    %v1335 = vpop.f32.mrb[0].mxu0
    %v1336 = vadd.f32 0.0, %v1335
    %1337 = vdwg.mxu0
    %1338 = vmatprep.subr.mxu0 %v217
    %1339 = vmatpush1.msra.mxu0 %v216
    %1340 = vmatprep.subr.mxu0 %v244
    %1341 = vmatpush1.msra.mxu0 %v243
    %1342 = vmatprep.subr.mxu0 %v271
    %1343 = vmatpush1.msra.mxu0 %v270
    %1344 = vmatprep.subr.mxu0 %v298
    %1345 = vmatpush1.msra.mxu0 %v297
    %1346 = vmatprep.subr.mxu0 %v325
    %1347 = vmatpush1.msra.mxu0 %v324
    %1348 = vmatprep.subr.mxu0 %v352
    %1349 = vmatpush1.msra.mxu0 %v351
    %1350 = vmatprep.subr.mxu0 %v379
    %1351 = vmatpush1.msra.mxu0 %v378
    %1352 = vmatprep.subr.mxu0 %v406
    %1353 = vmatpush1.msra.mxu0 %v405
    %1354 = vmatprep.subr.mxu0 %v433
    %1355 = vmatpush1.msra.mxu0 %v432
    %1356 = vmatprep.subr.mxu0 %v460
    %1357 = vmatpush1.msra.mxu0 %v459
    %1358 = vmatprep.subr.mxu0 %v487
    %1359 = vmatpush1.msra.mxu0 %v486
    %1360 = vmatprep.subr.mxu0 %v514
    %1361 = vmatpush1.msra.mxu0 %v513
    %1362 = vmatprep.subr.mxu0 %v541
    %1363 = vmatpush1.msra.mxu0 %v540
    %1364 = vmatprep.subr.mxu0 %v568
    %1365 = vmatpush1.msra.mxu0 %v567
    %1366 = vmatprep.subr.mxu0 %v595
    %1367 = vmatpush1.msra.mxu0 %v594
    %1368 = vmatprep.subr.mxu0 %v622
    %1369 = vmatpush1.msra.mxu0 %v621
    %1370 = vmatprep.subr.mxu0 0.0
    %1371 = vmatpush1.msra.mxu0 0.0
    %1372 = vmatprep.subr.mxu0 0.0
    %1373 = vmatpush1.msra.mxu0 0.0
    %1374 = vmatprep.subr.mxu0 0.0
    %1375 = vmatpush1.msra.mxu0 0.0
    %1376 = vmatprep.subr.mxu0 0.0
    %1377 = vmatpush1.msra.mxu0 0.0
    %1378 = vmatprep.subr.mxu0 0.0
    %1379 = vmatpush1.msra.mxu0 0.0
    %1380 = vmatprep.subr.mxu0 0.0
    %1381 = vmatpush1.msra.mxu0 0.0
    %1382 = vmatprep.subr.mxu0 0.0
    %1383 = vmatpush1.msra.mxu0 0.0
    %1384 = vmatprep.subr.mxu0 0.0
    %1385 = vmatpush1.msra.mxu0 0.0
    %1386 = vmatprep.subr.mxu0 0.0
    %1387 = vmatpush1.msra.mxu0 0.0
    %1388 = vmatprep.subr.mxu0 0.0
    %1389 = vmatpush1.msra.mxu0 0.0
    %1390 = vmatprep.subr.mxu0 0.0
    %1391 = vmatpush1.msra.mxu0 0.0
    %1392 = vmatprep.subr.mxu0 0.0
    %1393 = vmatpush1.msra.mxu0 0.0
    %1394 = vmatprep.subr.mxu0 0.0
    %1395 = vmatpush1.msra.mxu0 0.0
    %1396 = vmatprep.subr.mxu0 0.0
    %1397 = vmatpush1.msra.mxu0 0.0
    %1398 = vmatprep.subr.mxu0 0.0
    %1399 = vmatpush1.msra.mxu0 0.0
    %1400 = vmatprep.subr.mxu0 0.0
    %1401 = vmatpush1.msra.mxu0 0.0
    %1402 = vmatprep.mubr.f32.mxu0 0.0
    %1403 = vmatmul.mubr.f32.gmra.mrb[0].mxu0 %v195
    %v1404 = vpop.f32.mrb[0].mxu0
    %v1405 = vadd.f32 0.0, %v1404
    %v1406 = vpop.f32.mrb[0].mxu0
    %v1407 = vadd.f32 0.0, %v1406
    %1408 = vdwg.mxu0
    %1409 = vmatprep.subr.mxu0 %v219
    %1410 = vmatpush1.msra.mxu0 %v218
    %1411 = vmatprep.subr.mxu0 %v246
    %1412 = vmatpush1.msra.mxu0 %v245
    %1413 = vmatprep.subr.mxu0 %v273
    %1414 = vmatpush1.msra.mxu0 %v272
    %1415 = vmatprep.subr.mxu0 %v300
    %1416 = vmatpush1.msra.mxu0 %v299
    %1417 = vmatprep.subr.mxu0 %v327
    %1418 = vmatpush1.msra.mxu0 %v326
    %1419 = vmatprep.subr.mxu0 %v354
    %1420 = vmatpush1.msra.mxu0 %v353
    %1421 = vmatprep.subr.mxu0 %v381
    %1422 = vmatpush1.msra.mxu0 %v380
    %1423 = vmatprep.subr.mxu0 %v408
    %1424 = vmatpush1.msra.mxu0 %v407
    %1425 = vmatprep.subr.mxu0 %v435
    %1426 = vmatpush1.msra.mxu0 %v434
    %1427 = vmatprep.subr.mxu0 %v462
    %1428 = vmatpush1.msra.mxu0 %v461
    %1429 = vmatprep.subr.mxu0 %v489
    %1430 = vmatpush1.msra.mxu0 %v488
    %1431 = vmatprep.subr.mxu0 %v516
    %1432 = vmatpush1.msra.mxu0 %v515
    %1433 = vmatprep.subr.mxu0 %v543
    %1434 = vmatpush1.msra.mxu0 %v542
    %1435 = vmatprep.subr.mxu0 %v570
    %1436 = vmatpush1.msra.mxu0 %v569
    %1437 = vmatprep.subr.mxu0 %v597
    %1438 = vmatpush1.msra.mxu0 %v596
    %1439 = vmatprep.subr.mxu0 %v624
    %1440 = vmatpush1.msra.mxu0 %v623
    %1441 = vmatprep.subr.mxu0 0.0
    %1442 = vmatpush1.msra.mxu0 0.0
    %1443 = vmatprep.subr.mxu0 0.0
    %1444 = vmatpush1.msra.mxu0 0.0
    %1445 = vmatprep.subr.mxu0 0.0
    %1446 = vmatpush1.msra.mxu0 0.0
    %1447 = vmatprep.subr.mxu0 0.0
    %1448 = vmatpush1.msra.mxu0 0.0
    %1449 = vmatprep.subr.mxu0 0.0
    %1450 = vmatpush1.msra.mxu0 0.0
    %1451 = vmatprep.subr.mxu0 0.0
    %1452 = vmatpush1.msra.mxu0 0.0
    %1453 = vmatprep.subr.mxu0 0.0
    %1454 = vmatpush1.msra.mxu0 0.0
    %1455 = vmatprep.subr.mxu0 0.0
    %1456 = vmatpush1.msra.mxu0 0.0
    %1457 = vmatprep.subr.mxu0 0.0
    %1458 = vmatpush1.msra.mxu0 0.0
    %1459 = vmatprep.subr.mxu0 0.0
    %1460 = vmatpush1.msra.mxu0 0.0
    %1461 = vmatprep.subr.mxu0 0.0
    %1462 = vmatpush1.msra.mxu0 0.0
    %1463 = vmatprep.subr.mxu0 0.0
    %1464 = vmatpush1.msra.mxu0 0.0
    %1465 = vmatprep.subr.mxu0 0.0
    %1466 = vmatpush1.msra.mxu0 0.0
    %1467 = vmatprep.subr.mxu0 0.0
    %1468 = vmatpush1.msra.mxu0 0.0
    %1469 = vmatprep.subr.mxu0 0.0
    %1470 = vmatpush1.msra.mxu0 0.0
    %1471 = vmatprep.subr.mxu0 0.0
    %1472 = vmatpush1.msra.mxu0 0.0
    %1473 = vmatprep.mubr.f32.mxu0 0.0
    %1474 = vmatmul.mubr.f32.gmra.mrb[0].mxu0 %v195
    %v1475 = vpop.f32.mrb[0].mxu0
    %v1476 = vadd.f32 0.0, %v1475
    %v1477 = vpop.f32.mrb[0].mxu0
    %v1478 = vadd.f32 0.0, %v1477
    %1479 = vdwg.mxu0
    %1480 = vmatprep.subr.mxu0 %v221
    %1481 = vmatpush1.msra.mxu0 %v220
    %1482 = vmatprep.subr.mxu0 %v248
    %1483 = vmatpush1.msra.mxu0 %v247
    %1484 = vmatprep.subr.mxu0 %v275
    %1485 = vmatpush1.msra.mxu0 %v274
    %1486 = vmatprep.subr.mxu0 %v302
    %1487 = vmatpush1.msra.mxu0 %v301
    %1488 = vmatprep.subr.mxu0 %v329
    %1489 = vmatpush1.msra.mxu0 %v328
    %1490 = vmatprep.subr.mxu0 %v356
    %1491 = vmatpush1.msra.mxu0 %v355
    %1492 = vmatprep.subr.mxu0 %v383
    %1493 = vmatpush1.msra.mxu0 %v382
    %1494 = vmatprep.subr.mxu0 %v410
    %1495 = vmatpush1.msra.mxu0 %v409
    %1496 = vmatprep.subr.mxu0 %v437
    %1497 = vmatpush1.msra.mxu0 %v436
    %1498 = vmatprep.subr.mxu0 %v464
    %1499 = vmatpush1.msra.mxu0 %v463
    %1500 = vmatprep.subr.mxu0 %v491
    %1501 = vmatpush1.msra.mxu0 %v490
    %1502 = vmatprep.subr.mxu0 %v518
    %1503 = vmatpush1.msra.mxu0 %v517
    %1504 = vmatprep.subr.mxu0 %v545
    %1505 = vmatpush1.msra.mxu0 %v544
    %1506 = vmatprep.subr.mxu0 %v572
    %1507 = vmatpush1.msra.mxu0 %v571
    %1508 = vmatprep.subr.mxu0 %v599
    %1509 = vmatpush1.msra.mxu0 %v598
    %1510 = vmatprep.subr.mxu0 %v626
    %1511 = vmatpush1.msra.mxu0 %v625
    %1512 = vmatprep.subr.mxu0 0.0
    %1513 = vmatpush1.msra.mxu0 0.0
    %1514 = vmatprep.subr.mxu0 0.0
    %1515 = vmatpush1.msra.mxu0 0.0
    %1516 = vmatprep.subr.mxu0 0.0
    %1517 = vmatpush1.msra.mxu0 0.0
    %1518 = vmatprep.subr.mxu0 0.0
    %1519 = vmatpush1.msra.mxu0 0.0
    %1520 = vmatprep.subr.mxu0 0.0
    %1521 = vmatpush1.msra.mxu0 0.0
    %1522 = vmatprep.subr.mxu0 0.0
    %1523 = vmatpush1.msra.mxu0 0.0
    %1524 = vmatprep.subr.mxu0 0.0
    %1525 = vmatpush1.msra.mxu0 0.0
    %1526 = vmatprep.subr.mxu0 0.0
    %1527 = vmatpush1.msra.mxu0 0.0
    %1528 = vmatprep.subr.mxu0 0.0
    %1529 = vmatpush1.msra.mxu0 0.0
    %1530 = vmatprep.subr.mxu0 0.0
    %1531 = vmatpush1.msra.mxu0 0.0
    %1532 = vmatprep.subr.mxu0 0.0
    %1533 = vmatpush1.msra.mxu0 0.0
    %1534 = vmatprep.subr.mxu0 0.0
    %1535 = vmatpush1.msra.mxu0 0.0
    %1536 = vmatprep.subr.mxu0 0.0
    %1537 = vmatpush1.msra.mxu0 0.0
    %1538 = vmatprep.subr.mxu0 0.0
    %1539 = vmatpush1.msra.mxu0 0.0
    %1540 = vmatprep.subr.mxu0 0.0
    %1541 = vmatpush1.msra.mxu0 0.0
    %1542 = vmatprep.subr.mxu0 0.0
    %1543 = vmatpush1.msra.mxu0 0.0
    %1544 = vmatprep.mubr.f32.mxu0 0.0
    %1545 = vmatmul.mubr.f32.gmra.mrb[0].mxu0 %v195
    %v1546 = vpop.f32.mrb[0].mxu0
    %v1547 = vadd.f32 0.0, %v1546
    %v1548 = vpop.f32.mrb[0].mxu0
    %v1549 = vadd.f32 0.0, %v1548
    %1550 = vdwg.mxu0
    %1551 = vmatprep.subr.mxu0 0.0
    %1552 = vmatpush1.msra.mxu0 %v222
    %1553 = vmatprep.subr.mxu0 0.0
    %1554 = vmatpush1.msra.mxu0 %v249
    %1555 = vmatprep.subr.mxu0 0.0
    %1556 = vmatpush1.msra.mxu0 %v276
    %1557 = vmatprep.subr.mxu0 0.0
    %1558 = vmatpush1.msra.mxu0 %v303
    %1559 = vmatprep.subr.mxu0 0.0
    %1560 = vmatpush1.msra.mxu0 %v330
    %1561 = vmatprep.subr.mxu0 0.0
    %1562 = vmatpush1.msra.mxu0 %v357
    %1563 = vmatprep.subr.mxu0 0.0
    %1564 = vmatpush1.msra.mxu0 %v384
    %1565 = vmatprep.subr.mxu0 0.0
    %1566 = vmatpush1.msra.mxu0 %v411
    %1567 = vmatprep.subr.mxu0 0.0
    %1568 = vmatpush1.msra.mxu0 %v438
    %1569 = vmatprep.subr.mxu0 0.0
    %1570 = vmatpush1.msra.mxu0 %v465
    %1571 = vmatprep.subr.mxu0 0.0
    %1572 = vmatpush1.msra.mxu0 %v492
    %1573 = vmatprep.subr.mxu0 0.0
    %1574 = vmatpush1.msra.mxu0 %v519
    %1575 = vmatprep.subr.mxu0 0.0
    %1576 = vmatpush1.msra.mxu0 %v546
    %1577 = vmatprep.subr.mxu0 0.0
    %1578 = vmatpush1.msra.mxu0 %v573
    %1579 = vmatprep.subr.mxu0 0.0
    %1580 = vmatpush1.msra.mxu0 %v600
    %1581 = vmatprep.subr.mxu0 0.0
    %1582 = vmatpush1.msra.mxu0 %v627
    %1583 = vmatprep.subr.mxu0 0.0
    %1584 = vmatpush1.msra.mxu0 0.0
    %1585 = vmatprep.subr.mxu0 0.0
    %1586 = vmatpush1.msra.mxu0 0.0
    %1587 = vmatprep.subr.mxu0 0.0
    %1588 = vmatpush1.msra.mxu0 0.0
    %1589 = vmatprep.subr.mxu0 0.0
    %1590 = vmatpush1.msra.mxu0 0.0
    %1591 = vmatprep.subr.mxu0 0.0
    %1592 = vmatpush1.msra.mxu0 0.0
    %1593 = vmatprep.subr.mxu0 0.0
    %1594 = vmatpush1.msra.mxu0 0.0
    %1595 = vmatprep.subr.mxu0 0.0
    %1596 = vmatpush1.msra.mxu0 0.0
    %1597 = vmatprep.subr.mxu0 0.0
    %1598 = vmatpush1.msra.mxu0 0.0
    %1599 = vmatprep.subr.mxu0 0.0
    %1600 = vmatpush1.msra.mxu0 0.0
    %1601 = vmatprep.subr.mxu0 0.0
    %1602 = vmatpush1.msra.mxu0 0.0
    %1603 = vmatprep.subr.mxu0 0.0
    %1604 = vmatpush1.msra.mxu0 0.0
    %1605 = vmatprep.subr.mxu0 0.0
    %1606 = vmatpush1.msra.mxu0 0.0
    %1607 = vmatprep.subr.mxu0 0.0
    %1608 = vmatpush1.msra.mxu0 0.0
    %1609 = vmatprep.subr.mxu0 0.0
    %1610 = vmatpush1.msra.mxu0 0.0
    %1611 = vmatprep.subr.mxu0 0.0
    %1612 = vmatpush1.msra.mxu0 0.0
    %1613 = vmatprep.subr.mxu0 0.0
    %1614 = vmatpush1.msra.mxu0 0.0
    %1615 = vmatprep.mubr.f32.mxu0 0.0
    %1616 = vmatmul.mubr.f32.gmra.mrb[0].mxu0 %v195
    %v1617 = vpop.f32.mrb[0].mxu0
    %v1618 = vadd.f32 0.0, %v1617
    %v1619 = vpop.f32.mrb[0].mxu0
    %1620 = vdwg.mxu0
    %1621 = vst [vmem:[#allocation2] sm:$0xff] %v695
    %1622 = vst [vmem:[#allocation2 + $0x8] sm:$0xff] %v697
    %1623 = vst [vmem:[#allocation2 + $0x10] sm:$0xff] %v766
    %1624 = vst [vmem:[#allocation2 + $0x18] sm:$0xff] %v768
    %1625 = vst [vmem:[#allocation2 + $0x20] sm:$0xff] %v837
    %1626 = vst [vmem:[#allocation2 + $0x28] sm:$0xff] %v839
    %1627 = vst [vmem:[#allocation2 + $0x30] sm:$0xff] %v908
    %1628 = vst [vmem:[#allocation2 + $0x38] sm:$0xff] %v910
    %1629 = vst [vmem:[#allocation2 + $0x40] sm:$0xff] %v979
    %1630 = vst [vmem:[#allocation2 + $0x48] sm:$0xff] %v981
    %1631 = vst [vmem:[#allocation2 + $0x50] sm:$0xff] %v1050
    %1632 = vst [vmem:[#allocation2 + $0x58] sm:$0xff] %v1052
    %1633 = vst [vmem:[#allocation2 + $0x60] sm:$0xff] %v1121
    %1634 = vst [vmem:[#allocation2 + $0x68] sm:$0xff] %v1123
    %1635 = vst [vmem:[#allocation2 + $0x70] sm:$0xff] %v1192
    %1636 = vst [vmem:[#allocation2 + $0x78] sm:$0xff] %v1194
    %1637 = vst [vmem:[#allocation2 + $0x80] sm:$0xff] %v1263
    %1638 = vst [vmem:[#allocation2 + $0x88] sm:$0xff] %v1265
    %1639 = vst [vmem:[#allocation2 + $0x90] sm:$0xff] %v1334
    %1640 = vst [vmem:[#allocation2 + $0x98] sm:$0xff] %v1336
    %1641 = vst [vmem:[#allocation2 + $0xa0] sm:$0xff] %v1405
    %1642 = vst [vmem:[#allocation2 + $0xa8] sm:$0xff] %v1407
    %1643 = vst [vmem:[#allocation2 + $0xb0] sm:$0xff] %v1476
    %1644 = vst [vmem:[#allocation2 + $0xb8] sm:$0xff] %v1478
    %1645 = vst [vmem:[#allocation2 + $0xc0] sm:$0xff] %v1547
    %1646 = vst [vmem:[#allocation2 + $0xc8] sm:$0xff] %v1549
    %1647 = vst [vmem:[#allocation2 + $0xd0] sm:$0xff] %v1618
    %v1648 = vld [vmem:[#allocation2] sm:$0xff]
    %v1649 = vld [vmem:[#allocation2 + $0x8] sm:$0xff]
    %v1650 = vld [vmem:[#allocation2 + $0x10] sm:$0xff]
    %v1651 = vld [vmem:[#allocation2 + $0x18] sm:$0xff]
    %v1652 = vld [vmem:[#allocation2 + $0x20] sm:$0xff]
    %v1653 = vld [vmem:[#allocation2 + $0x28] sm:$0xff]
    %v1654 = vmax.f32 %v1648, %v1651
    %v1655 = vmax.f32 %v1649, %v1652
    %v1656 = vmax.f32 %v1650, %v1653
    %v1657 = vld [vmem:[#allocation2 + $0x30] sm:$0xff]
    %v1658 = vld [vmem:[#allocation2 + $0x38] sm:$0xff]
    %v1659 = vld [vmem:[#allocation2 + $0x40] sm:$0xff]
    %v1660 = vmax.f32 %v1654, %v1657
    %v1661 = vmax.f32 %v1655, %v1658
    %v1662 = vmax.f32 %v1656, %v1659
    %v1663 = vld [vmem:[#allocation2 + $0x48] sm:$0xff]
    %v1664 = vld [vmem:[#allocation2 + $0x50] sm:$0xff]
    %v1665 = vld [vmem:[#allocation2 + $0x58] sm:$0xff]
    %v1666 = vmax.f32 %v1660, %v1663
    %v1667 = vmax.f32 %v1661, %v1664
    %v1668 = vmax.f32 %v1662, %v1665
    %v1669 = vld [vmem:[#allocation2 + $0x60] sm:$0xff]
    %v1670 = vld [vmem:[#allocation2 + $0x68] sm:$0xff]
    %v1671 = vld [vmem:[#allocation2 + $0x70] sm:$0xff]
    %v1672 = vmax.f32 %v1666, %v1669
    %v1673 = vmax.f32 %v1667, %v1670
    %v1674 = vmax.f32 %v1668, %v1671
    %v1675 = vld [vmem:[#allocation2 + $0x78] sm:$0xff]
    %v1676 = vld [vmem:[#allocation2 + $0x80] sm:$0xff]
    %v1677 = vld [vmem:[#allocation2 + $0x88] sm:$0xff]
    %v1678 = vmax.f32 %v1672, %v1675
    %v1679 = vmax.f32 %v1673, %v1676
    %v1680 = vmax.f32 %v1674, %v1677
    %v1681 = vld [vmem:[#allocation2 + $0x90] sm:$0xff]
    %v1682 = vld [vmem:[#allocation2 + $0x98] sm:$0xff]
    %v1683 = vld [vmem:[#allocation2 + $0xa0] sm:$0xff]
    %v1684 = vmax.f32 %v1678, %v1681
    %v1685 = vmax.f32 %v1679, %v1682
    %v1686 = vmax.f32 %v1680, %v1683
    %v1687 = vld [vmem:[#allocation2 + $0xa8] sm:$0xff]
    %v1688 = vld [vmem:[#allocation2 + $0xb0] sm:$0xff]
    %v1689 = vld [vmem:[#allocation2 + $0xb8] sm:$0xff]
    %v1690 = vmax.f32 %v1684, %v1687
    %v1691 = vmax.f32 %v1685, %v1688
    %v1692 = vmax.f32 %v1686, %v1689
    %v1693 = vld [vmem:[#allocation2 + $0xc0] sm:$0xff]
    %v1694 = vld [vmem:[#allocation2 + $0xc8] sm:$0xff]
    %v1695 = vld [vmem:[#allocation2 + $0xd0] sm:$0xff]
    %v1696 = vmax.f32 %v1690, %v1693
    %v1697 = vmax.f32 %v1691, %v1694
    %v1698 = vmax.f32 %v1692, %v1695
    %v1699 = vld [vmem:[#allocation5] sm:$0x7]
    %v1701 = vlaneseq
    %v1702 = vshrl.u32 %v1701, 7
    %v1703 = vsub.s32 0, %v1702
    %v1704 = vrot.slane %v1699, %v1703
    %v1705 = vlaneseq
    %v1706 = vshrl.u32 %v1705, 7
    %v1707 = vsub.s32 1, %v1706
    %v1708 = vrot.slane %v1699, %v1707
    %v1709 = vlaneseq
    %v1710 = vshrl.u32 %v1709, 7
    %v1711 = vsub.s32 2, %v1710
    %v1712 = vrot.slane %v1699, %v1711
    %v1716 = vadd.f32 %v1696, %v1704
    %v1717 = vadd.f32 %v1697, %v1708
    %v1718 = vadd.f32 %v1698, %v1712
    %vm1719 = vcmp.gt.f32.partialorder %v1716, 0.0
    %vm1720 = vcmp.gt.f32.partialorder %v1717, 0.0
    %vm1721 = vcmp.gt.f32.partialorder %v1718, 0.0
    %v1722 = vmul.f32 %v1716, 0.01
    %v1723 = vmul.f32 %v1717, 0.01
    %v1724 = vmul.f32 %v1718, 0.01
    %v1725 = vsel %vm1719, %v1716, %v1722
    %v1726 = vsel %vm1720, %v1717, %v1723
    %v1727 = vsel %vm1721, %v1718, %v1724
    %v1728 = vld [vmem:[#allocation7] sm:$0xff]
    %v1729 = vld [vmem:[#allocation7 + $0x20] sm:$0xff]
    %v1730 = vld [vmem:[#allocation7 + $0x40] sm:$0xff]
    %v1731 = vld [vmem:[#allocation7 + $0x60] sm:$0xff]
    %v1732 = vld [vmem:[#allocation7 + $0x80] sm:$0xff]
    %v1733 = vld [vmem:[#allocation7 + $0xa0] sm:$0xff]
    %v1734 = vld [vmem:[#allocation7 + $0xc0] sm:$0xff]
    %v1735 = vld [vmem:[#allocation7 + $0xe0] sm:$0xff]
    %v1736 = vld [vmem:[#allocation7 + $0x100] sm:$0xff]
    %v1737 = vld [vmem:[#allocation7 + $0x120] sm:$0xff]
    %v1738 = vld [vmem:[#allocation7 + $0x140] sm:$0xff]
    %v1739 = vld [vmem:[#allocation7 + $0x160] sm:$0xff]
    %v1740 = vld [vmem:[#allocation7 + $0x180] sm:$0xff]
    %v1741 = vld [vmem:[#allocation7 + $0x1a0] sm:$0xff]
    %v1742 = vld [vmem:[#allocation7 + $0x1c0] sm:$0xff]
    %v1743 = vld [vmem:[#allocation7 + $0x1e0] sm:$0xff]
    %v1744 = vld [vmem:[#allocation7 + $0x200] sm:$0xff]
    %v1745 = vld [vmem:[#allocation7 + $0x220] sm:$0xff]
    %v1746 = vld [vmem:[#allocation7 + $0x240] sm:$0xff]
    %v1747 = vld [vmem:[#allocation7 + $0x260] sm:$0xff]
    %v1748 = vld [vmem:[#allocation7 + $0x280] sm:$0xff]
    %v1749 = vld [vmem:[#allocation7 + $0x2a0] sm:$0xff]
    %v1750 = vld [vmem:[#allocation7 + $0x2c0] sm:$0xff]
    %v1751 = vld [vmem:[#allocation7 + $0x2e0] sm:$0xff]
    %v1752 = vld [vmem:[#allocation7 + $0x300] sm:$0xff]
    %v1753 = vld [vmem:[#allocation7 + $0x320] sm:$0xff]
    %v1754 = vld [vmem:[#allocation7 + $0x340] sm:$0xff]
    %v1755 = vld [vmem:[#allocation7 + $0x360] sm:$0xff]
    %v1756 = vld [vmem:[#allocation7 + $0x380] sm:$0xff]
    %v1757 = vld [vmem:[#allocation7 + $0x3a0] sm:$0xff]
    %v1758 = vld [vmem:[#allocation7 + $0x3c0] sm:$0xff]
    %v1759 = vld [vmem:[#allocation7 + $0x3e0] sm:$0xff]
    %v1760 = vld [vmem:[#allocation7 + $0x400] sm:$0xff]
    %v1761 = vld [vmem:[#allocation7 + $0x420] sm:$0xff]
    %v1762 = vld [vmem:[#allocation7 + $0x440] sm:$0xff]
    %v1763 = vld [vmem:[#allocation7 + $0x460] sm:$0xff]
    %v1764 = vld [vmem:[#allocation7 + $0x480] sm:$0xff]
    %v1765 = vld [vmem:[#allocation7 + $0x4a0] sm:$0xff]
    %v1766 = vld [vmem:[#allocation7 + $0x4c0] sm:$0xff]
    %v1767 = vld [vmem:[#allocation7 + $0x4e0] sm:$0xff]
    %v1768 = vld [vmem:[#allocation7 + $0x500] sm:$0xff]
    %v1769 = vld [vmem:[#allocation7 + $0x520] sm:$0xff]
    %v1770 = vld [vmem:[#allocation7 + $0x540] sm:$0xff]
    %v1771 = vld [vmem:[#allocation7 + $0x560] sm:$0xff]
    %v1772 = vld [vmem:[#allocation7 + $0x580] sm:$0xff]
    %v1773 = vld [vmem:[#allocation7 + $0x5a0] sm:$0xff]
    %v1774 = vld [vmem:[#allocation7 + $0x5c0] sm:$0xff]
    %v1775 = vld [vmem:[#allocation7 + $0x5e0] sm:$0xff]
    %1776 = vmatprep.subr.mxu0 0.0
    %1777 = vmatpush1.msra.mxu0 %v1728
    %1778 = vmatprep.subr.mxu0 0.0
    %1779 = vmatpush1.msra.mxu0 %v1729
    %1780 = vmatprep.subr.mxu0 0.0
    %1781 = vmatpush1.msra.mxu0 %v1730
    %1782 = vmatprep.subr.mxu0 0.0
    %1783 = vmatpush1.msra.mxu0 %v1731
    %1784 = vmatprep.subr.mxu0 0.0
    %1785 = vmatpush1.msra.mxu0 %v1732
    %1786 = vmatprep.subr.mxu0 0.0
    %1787 = vmatpush1.msra.mxu0 %v1733
    %1788 = vmatprep.subr.mxu0 0.0
    %1789 = vmatpush1.msra.mxu0 %v1734
    %1790 = vmatprep.subr.mxu0 0.0
    %1791 = vmatpush1.msra.mxu0 %v1735
    %1792 = vmatprep.subr.mxu0 0.0
    %1793 = vmatpush1.msra.mxu0 %v1736
    %1794 = vmatprep.subr.mxu0 0.0
    %1795 = vmatpush1.msra.mxu0 %v1737
    %1796 = vmatprep.subr.mxu0 0.0
    %1797 = vmatpush1.msra.mxu0 %v1738
    %1798 = vmatprep.subr.mxu0 0.0
    %1799 = vmatpush1.msra.mxu0 %v1739
    %1800 = vmatprep.subr.mxu0 0.0
    %1801 = vmatpush1.msra.mxu0 %v1740
    %1802 = vmatprep.subr.mxu0 0.0
    %1803 = vmatpush1.msra.mxu0 %v1741
    %1804 = vmatprep.subr.mxu0 0.0
    %1805 = vmatpush1.msra.mxu0 %v1742
    %1806 = vmatprep.subr.mxu0 0.0
    %1807 = vmatpush1.msra.mxu0 %v1743
    %1808 = vmatprep.subr.mxu0 0.0
    %1809 = vmatpush1.msra.mxu0 %v1744
    %1810 = vmatprep.subr.mxu0 0.0
    %1811 = vmatpush1.msra.mxu0 %v1745
    %1812 = vmatprep.subr.mxu0 0.0
    %1813 = vmatpush1.msra.mxu0 %v1746
    %1814 = vmatprep.subr.mxu0 0.0
    %1815 = vmatpush1.msra.mxu0 %v1747
    %1816 = vmatprep.subr.mxu0 0.0
    %1817 = vmatpush1.msra.mxu0 %v1748
    %1818 = vmatprep.subr.mxu0 0.0
    %1819 = vmatpush1.msra.mxu0 %v1749
    %1820 = vmatprep.subr.mxu0 0.0
    %1821 = vmatpush1.msra.mxu0 %v1750
    %1822 = vmatprep.subr.mxu0 0.0
    %1823 = vmatpush1.msra.mxu0 %v1751
    %1824 = vmatprep.subr.mxu0 0.0
    %1825 = vmatpush1.msra.mxu0 %v1752
    %1826 = vmatprep.subr.mxu0 0.0
    %1827 = vmatpush1.msra.mxu0 %v1753
    %1828 = vmatprep.subr.mxu0 0.0
    %1829 = vmatpush1.msra.mxu0 %v1754
    %1830 = vmatprep.subr.mxu0 0.0
    %1831 = vmatpush1.msra.mxu0 %v1755
    %1832 = vmatprep.subr.mxu0 0.0
    %1833 = vmatpush1.msra.mxu0 %v1756
    %1834 = vmatprep.subr.mxu0 0.0
    %1835 = vmatpush1.msra.mxu0 %v1757
    %1836 = vmatprep.subr.mxu0 0.0
    %1837 = vmatpush1.msra.mxu0 %v1758
    %1838 = vmatprep.subr.mxu0 0.0
    %1839 = vmatpush1.msra.mxu0 %v1759
    %1840 = vmatprep.mubr.f32.mxu0 %v1726
    %1841 = vmatmul.mubr.f32.gmra.mrb[0].mxu0 %v1725
    %v1842 = vpop.f32.mrb[0].mxu0
    %v1843 = vadd.f32 0.0, %v1842
    %v1844 = vpop.f32.mrb[0].mxu0
    %1845 = vdwg.mxu0
    %1846 = vmatprep.subr.mxu0 0.0
    %1847 = vmatpush1.msra.mxu0 %v1760
    %1848 = vmatprep.subr.mxu0 0.0
    %1849 = vmatpush1.msra.mxu0 %v1761
    %1850 = vmatprep.subr.mxu0 0.0
    %1851 = vmatpush1.msra.mxu0 %v1762
    %1852 = vmatprep.subr.mxu0 0.0
    %1853 = vmatpush1.msra.mxu0 %v1763
    %1854 = vmatprep.subr.mxu0 0.0
    %1855 = vmatpush1.msra.mxu0 %v1764
    %1856 = vmatprep.subr.mxu0 0.0
    %1857 = vmatpush1.msra.mxu0 %v1765
    %1858 = vmatprep.subr.mxu0 0.0
    %1859 = vmatpush1.msra.mxu0 %v1766
    %1860 = vmatprep.subr.mxu0 0.0
    %1861 = vmatpush1.msra.mxu0 %v1767
    %1862 = vmatprep.subr.mxu0 0.0
    %1863 = vmatpush1.msra.mxu0 %v1768
    %1864 = vmatprep.subr.mxu0 0.0
    %1865 = vmatpush1.msra.mxu0 %v1769
    %1866 = vmatprep.subr.mxu0 0.0
    %1867 = vmatpush1.msra.mxu0 %v1770
    %1868 = vmatprep.subr.mxu0 0.0
    %1869 = vmatpush1.msra.mxu0 %v1771
    %1870 = vmatprep.subr.mxu0 0.0
    %1871 = vmatpush1.msra.mxu0 %v1772
    %1872 = vmatprep.subr.mxu0 0.0
    %1873 = vmatpush1.msra.mxu0 %v1773
    %1874 = vmatprep.subr.mxu0 0.0
    %1875 = vmatpush1.msra.mxu0 %v1774
    %1876 = vmatprep.subr.mxu0 0.0
    %1877 = vmatpush1.msra.mxu0 %v1775
    %1878 = vmatprep.subr.mxu0 0.0
    %1879 = vmatpush1.msra.mxu0 0.0
    %1880 = vmatprep.subr.mxu0 0.0
    %1881 = vmatpush1.msra.mxu0 0.0
    %1882 = vmatprep.subr.mxu0 0.0
    %1883 = vmatpush1.msra.mxu0 0.0
    %1884 = vmatprep.subr.mxu0 0.0
    %1885 = vmatpush1.msra.mxu0 0.0
    %1886 = vmatprep.subr.mxu0 0.0
    %1887 = vmatpush1.msra.mxu0 0.0
    %1888 = vmatprep.subr.mxu0 0.0
    %1889 = vmatpush1.msra.mxu0 0.0
    %1890 = vmatprep.subr.mxu0 0.0
    %1891 = vmatpush1.msra.mxu0 0.0
    %1892 = vmatprep.subr.mxu0 0.0
    %1893 = vmatpush1.msra.mxu0 0.0
    %1894 = vmatprep.subr.mxu0 0.0
    %1895 = vmatpush1.msra.mxu0 0.0
    %1896 = vmatprep.subr.mxu0 0.0
    %1897 = vmatpush1.msra.mxu0 0.0
    %1898 = vmatprep.subr.mxu0 0.0
    %1899 = vmatpush1.msra.mxu0 0.0
    %1900 = vmatprep.subr.mxu0 0.0
    %1901 = vmatpush1.msra.mxu0 0.0
    %1902 = vmatprep.subr.mxu0 0.0
    %1903 = vmatpush1.msra.mxu0 0.0
    %1904 = vmatprep.subr.mxu0 0.0
    %1905 = vmatpush1.msra.mxu0 0.0
    %1906 = vmatprep.subr.mxu0 0.0
    %1907 = vmatpush1.msra.mxu0 0.0
    %1908 = vmatprep.subr.mxu0 0.0
    %1909 = vmatpush1.msra.mxu0 0.0
    %1910 = vmatprep.mubr.f32.mxu0 0.0
    %1911 = vmatmul.mubr.f32.gmra.mrb[0].mxu0 %v1727
    %v1912 = vpop.f32.mrb[0].mxu0
    %v1913 = vadd.f32 %v1843, %v1912
    %v1914 = vpop.f32.mrb[0].mxu0
    %1915 = vdwg.mxu0
    %v1916 = vld [vmem:[#allocation7 + $0x8] sm:$0xff]
    %v1917 = vld [vmem:[#allocation7 + $0x28] sm:$0xff]
    %v1918 = vld [vmem:[#allocation7 + $0x48] sm:$0xff]
    %v1919 = vld [vmem:[#allocation7 + $0x68] sm:$0xff]
    %v1920 = vld [vmem:[#allocation7 + $0x88] sm:$0xff]
    %v1921 = vld [vmem:[#allocation7 + $0xa8] sm:$0xff]
    %v1922 = vld [vmem:[#allocation7 + $0xc8] sm:$0xff]
    %v1923 = vld [vmem:[#allocation7 + $0xe8] sm:$0xff]
    %v1924 = vld [vmem:[#allocation7 + $0x108] sm:$0xff]
    %v1925 = vld [vmem:[#allocation7 + $0x128] sm:$0xff]
    %v1926 = vld [vmem:[#allocation7 + $0x148] sm:$0xff]
    %v1927 = vld [vmem:[#allocation7 + $0x168] sm:$0xff]
    %v1928 = vld [vmem:[#allocation7 + $0x188] sm:$0xff]
    %v1929 = vld [vmem:[#allocation7 + $0x1a8] sm:$0xff]
    %v1930 = vld [vmem:[#allocation7 + $0x1c8] sm:$0xff]
    %v1931 = vld [vmem:[#allocation7 + $0x1e8] sm:$0xff]
    %v1932 = vld [vmem:[#allocation7 + $0x208] sm:$0xff]
    %v1933 = vld [vmem:[#allocation7 + $0x228] sm:$0xff]
    %v1934 = vld [vmem:[#allocation7 + $0x248] sm:$0xff]
    %v1935 = vld [vmem:[#allocation7 + $0x268] sm:$0xff]
    %v1936 = vld [vmem:[#allocation7 + $0x288] sm:$0xff]
    %v1937 = vld [vmem:[#allocation7 + $0x2a8] sm:$0xff]
    %v1938 = vld [vmem:[#allocation7 + $0x2c8] sm:$0xff]
    %v1939 = vld [vmem:[#allocation7 + $0x2e8] sm:$0xff]
    %v1940 = vld [vmem:[#allocation7 + $0x308] sm:$0xff]
    %v1941 = vld [vmem:[#allocation7 + $0x328] sm:$0xff]
    %v1942 = vld [vmem:[#allocation7 + $0x348] sm:$0xff]
    %v1943 = vld [vmem:[#allocation7 + $0x368] sm:$0xff]
    %v1944 = vld [vmem:[#allocation7 + $0x388] sm:$0xff]
    %v1945 = vld [vmem:[#allocation7 + $0x3a8] sm:$0xff]
    %v1946 = vld [vmem:[#allocation7 + $0x3c8] sm:$0xff]
    %v1947 = vld [vmem:[#allocation7 + $0x3e8] sm:$0xff]
    %v1948 = vld [vmem:[#allocation7 + $0x408] sm:$0xff]
    %v1949 = vld [vmem:[#allocation7 + $0x428] sm:$0xff]
    %v1950 = vld [vmem:[#allocation7 + $0x448] sm:$0xff]
    %v1951 = vld [vmem:[#allocation7 + $0x468] sm:$0xff]
    %v1952 = vld [vmem:[#allocation7 + $0x488] sm:$0xff]
    %v1953 = vld [vmem:[#allocation7 + $0x4a8] sm:$0xff]
    %v1954 = vld [vmem:[#allocation7 + $0x4c8] sm:$0xff]
    %v1955 = vld [vmem:[#allocation7 + $0x4e8] sm:$0xff]
    %v1956 = vld [vmem:[#allocation7 + $0x508] sm:$0xff]
    %v1957 = vld [vmem:[#allocation7 + $0x528] sm:$0xff]
    %v1958 = vld [vmem:[#allocation7 + $0x548] sm:$0xff]
    %v1959 = vld [vmem:[#allocation7 + $0x568] sm:$0xff]
    %v1960 = vld [vmem:[#allocation7 + $0x588] sm:$0xff]
    %v1961 = vld [vmem:[#allocation7 + $0x5a8] sm:$0xff]
    %v1962 = vld [vmem:[#allocation7 + $0x5c8] sm:$0xff]
    %v1963 = vld [vmem:[#allocation7 + $0x5e8] sm:$0xff]
    %1964 = vmatprep.subr.mxu0 0.0
    %1965 = vmatpush1.msra.mxu0 %v1916
    %1966 = vmatprep.subr.mxu0 0.0
    %1967 = vmatpush1.msra.mxu0 %v1917
    %1968 = vmatprep.subr.mxu0 0.0
    %1969 = vmatpush1.msra.mxu0 %v1918
    %1970 = vmatprep.subr.mxu0 0.0
    %1971 = vmatpush1.msra.mxu0 %v1919
    %1972 = vmatprep.subr.mxu0 0.0
    %1973 = vmatpush1.msra.mxu0 %v1920
    %1974 = vmatprep.subr.mxu0 0.0
    %1975 = vmatpush1.msra.mxu0 %v1921
    %1976 = vmatprep.subr.mxu0 0.0
    %1977 = vmatpush1.msra.mxu0 %v1922
    %1978 = vmatprep.subr.mxu0 0.0
    %1979 = vmatpush1.msra.mxu0 %v1923
    %1980 = vmatprep.subr.mxu0 0.0
    %1981 = vmatpush1.msra.mxu0 %v1924
    %1982 = vmatprep.subr.mxu0 0.0
    %1983 = vmatpush1.msra.mxu0 %v1925
    %1984 = vmatprep.subr.mxu0 0.0
    %1985 = vmatpush1.msra.mxu0 %v1926
    %1986 = vmatprep.subr.mxu0 0.0
    %1987 = vmatpush1.msra.mxu0 %v1927
    %1988 = vmatprep.subr.mxu0 0.0
    %1989 = vmatpush1.msra.mxu0 %v1928
    %1990 = vmatprep.subr.mxu0 0.0
    %1991 = vmatpush1.msra.mxu0 %v1929
    %1992 = vmatprep.subr.mxu0 0.0
    %1993 = vmatpush1.msra.mxu0 %v1930
    %1994 = vmatprep.subr.mxu0 0.0
    %1995 = vmatpush1.msra.mxu0 %v1931
    %1996 = vmatprep.subr.mxu0 0.0
    %1997 = vmatpush1.msra.mxu0 %v1932
    %1998 = vmatprep.subr.mxu0 0.0
    %1999 = vmatpush1.msra.mxu0 %v1933
    %2000 = vmatprep.subr.mxu0 0.0
    %2001 = vmatpush1.msra.mxu0 %v1934
    %2002 = vmatprep.subr.mxu0 0.0
    %2003 = vmatpush1.msra.mxu0 %v1935
    %2004 = vmatprep.subr.mxu0 0.0
    %2005 = vmatpush1.msra.mxu0 %v1936
    %2006 = vmatprep.subr.mxu0 0.0
    %2007 = vmatpush1.msra.mxu0 %v1937
    %2008 = vmatprep.subr.mxu0 0.0
    %2009 = vmatpush1.msra.mxu0 %v1938
    %2010 = vmatprep.subr.mxu0 0.0
    %2011 = vmatpush1.msra.mxu0 %v1939
    %2012 = vmatprep.subr.mxu0 0.0
    %2013 = vmatpush1.msra.mxu0 %v1940
    %2014 = vmatprep.subr.mxu0 0.0
    %2015 = vmatpush1.msra.mxu0 %v1941
    %2016 = vmatprep.subr.mxu0 0.0
    %2017 = vmatpush1.msra.mxu0 %v1942
    %2018 = vmatprep.subr.mxu0 0.0
    %2019 = vmatpush1.msra.mxu0 %v1943
    %2020 = vmatprep.subr.mxu0 0.0
    %2021 = vmatpush1.msra.mxu0 %v1944
    %2022 = vmatprep.subr.mxu0 0.0
    %2023 = vmatpush1.msra.mxu0 %v1945
    %2024 = vmatprep.subr.mxu0 0.0
    %2025 = vmatpush1.msra.mxu0 %v1946
    %2026 = vmatprep.subr.mxu0 0.0
    %2027 = vmatpush1.msra.mxu0 %v1947
    %2028 = vmatprep.mubr.f32.mxu0 %v1726
    %2029 = vmatmul.mubr.f32.gmra.mrb[0].mxu0 %v1725
    %v2030 = vpop.f32.mrb[0].mxu0
    %v2031 = vadd.f32 0.0, %v2030
    %v2032 = vpop.f32.mrb[0].mxu0
    %2033 = vdwg.mxu0
    %2034 = vmatprep.subr.mxu0 0.0
    %2035 = vmatpush1.msra.mxu0 %v1948
    %2036 = vmatprep.subr.mxu0 0.0
    %2037 = vmatpush1.msra.mxu0 %v1949
    %2038 = vmatprep.subr.mxu0 0.0
    %2039 = vmatpush1.msra.mxu0 %v1950
    %2040 = vmatprep.subr.mxu0 0.0
    %2041 = vmatpush1.msra.mxu0 %v1951
    %2042 = vmatprep.subr.mxu0 0.0
    %2043 = vmatpush1.msra.mxu0 %v1952
    %2044 = vmatprep.subr.mxu0 0.0
    %2045 = vmatpush1.msra.mxu0 %v1953
    %2046 = vmatprep.subr.mxu0 0.0
    %2047 = vmatpush1.msra.mxu0 %v1954
    %2048 = vmatprep.subr.mxu0 0.0
    %2049 = vmatpush1.msra.mxu0 %v1955
    %2050 = vmatprep.subr.mxu0 0.0
    %2051 = vmatpush1.msra.mxu0 %v1956
    %2052 = vmatprep.subr.mxu0 0.0
    %2053 = vmatpush1.msra.mxu0 %v1957
    %2054 = vmatprep.subr.mxu0 0.0
    %2055 = vmatpush1.msra.mxu0 %v1958
    %2056 = vmatprep.subr.mxu0 0.0
    %2057 = vmatpush1.msra.mxu0 %v1959
    %2058 = vmatprep.subr.mxu0 0.0
    %2059 = vmatpush1.msra.mxu0 %v1960
    %2060 = vmatprep.subr.mxu0 0.0
    %2061 = vmatpush1.msra.mxu0 %v1961
    %2062 = vmatprep.subr.mxu0 0.0
    %2063 = vmatpush1.msra.mxu0 %v1962
    %2064 = vmatprep.subr.mxu0 0.0
    %2065 = vmatpush1.msra.mxu0 %v1963
    %2066 = vmatprep.subr.mxu0 0.0
    %2067 = vmatpush1.msra.mxu0 0.0
    %2068 = vmatprep.subr.mxu0 0.0
    %2069 = vmatpush1.msra.mxu0 0.0
    %2070 = vmatprep.subr.mxu0 0.0
    %2071 = vmatpush1.msra.mxu0 0.0
    %2072 = vmatprep.subr.mxu0 0.0
    %2073 = vmatpush1.msra.mxu0 0.0
    %2074 = vmatprep.subr.mxu0 0.0
    %2075 = vmatpush1.msra.mxu0 0.0
    %2076 = vmatprep.subr.mxu0 0.0
    %2077 = vmatpush1.msra.mxu0 0.0
    %2078 = vmatprep.subr.mxu0 0.0
    %2079 = vmatpush1.msra.mxu0 0.0
    %2080 = vmatprep.subr.mxu0 0.0
    %2081 = vmatpush1.msra.mxu0 0.0
    %2082 = vmatprep.subr.mxu0 0.0
    %2083 = vmatpush1.msra.mxu0 0.0
    %2084 = vmatprep.subr.mxu0 0.0
    %2085 = vmatpush1.msra.mxu0 0.0
    %2086 = vmatprep.subr.mxu0 0.0
    %2087 = vmatpush1.msra.mxu0 0.0
    %2088 = vmatprep.subr.mxu0 0.0
    %2089 = vmatpush1.msra.mxu0 0.0
    %2090 = vmatprep.subr.mxu0 0.0
    %2091 = vmatpush1.msra.mxu0 0.0
    %2092 = vmatprep.subr.mxu0 0.0
    %2093 = vmatpush1.msra.mxu0 0.0
    %2094 = vmatprep.subr.mxu0 0.0
    %2095 = vmatpush1.msra.mxu0 0.0
    %2096 = vmatprep.subr.mxu0 0.0
    %2097 = vmatpush1.msra.mxu0 0.0
    %2098 = vmatprep.mubr.f32.mxu0 0.0
    %2099 = vmatmul.mubr.f32.gmra.mrb[0].mxu0 %v1727
    %v2100 = vpop.f32.mrb[0].mxu0
    %v2101 = vadd.f32 %v2031, %v2100
    %v2102 = vpop.f32.mrb[0].mxu0
    %2103 = vdwg.mxu0
    %v2104 = vmax.f32 %v1913, %v2101
    %v2105 = vld [vmem:[#allocation7 + $0x10] sm:$0xff]
    %v2106 = vld [vmem:[#allocation7 + $0x30] sm:$0xff]
    %v2107 = vld [vmem:[#allocation7 + $0x50] sm:$0xff]
    %v2108 = vld [vmem:[#allocation7 + $0x70] sm:$0xff]
    %v2109 = vld [vmem:[#allocation7 + $0x90] sm:$0xff]
    %v2110 = vld [vmem:[#allocation7 + $0xb0] sm:$0xff]
    %v2111 = vld [vmem:[#allocation7 + $0xd0] sm:$0xff]
    %v2112 = vld [vmem:[#allocation7 + $0xf0] sm:$0xff]
    %v2113 = vld [vmem:[#allocation7 + $0x110] sm:$0xff]
    %v2114 = vld [vmem:[#allocation7 + $0x130] sm:$0xff]
    %v2115 = vld [vmem:[#allocation7 + $0x150] sm:$0xff]
    %v2116 = vld [vmem:[#allocation7 + $0x170] sm:$0xff]
    %v2117 = vld [vmem:[#allocation7 + $0x190] sm:$0xff]
    %v2118 = vld [vmem:[#allocation7 + $0x1b0] sm:$0xff]
    %v2119 = vld [vmem:[#allocation7 + $0x1d0] sm:$0xff]
    %v2120 = vld [vmem:[#allocation7 + $0x1f0] sm:$0xff]
    %v2121 = vld [vmem:[#allocation7 + $0x210] sm:$0xff]
    %v2122 = vld [vmem:[#allocation7 + $0x230] sm:$0xff]
    %v2123 = vld [vmem:[#allocation7 + $0x250] sm:$0xff]
    %v2124 = vld [vmem:[#allocation7 + $0x270] sm:$0xff]
    %v2125 = vld [vmem:[#allocation7 + $0x290] sm:$0xff]
    %v2126 = vld [vmem:[#allocation7 + $0x2b0] sm:$0xff]
    %v2127 = vld [vmem:[#allocation7 + $0x2d0] sm:$0xff]
    %v2128 = vld [vmem:[#allocation7 + $0x2f0] sm:$0xff]
    %v2129 = vld [vmem:[#allocation7 + $0x310] sm:$0xff]
    %v2130 = vld [vmem:[#allocation7 + $0x330] sm:$0xff]
    %v2131 = vld [vmem:[#allocation7 + $0x350] sm:$0xff]
    %v2132 = vld [vmem:[#allocation7 + $0x370] sm:$0xff]
    %v2133 = vld [vmem:[#allocation7 + $0x390] sm:$0xff]
    %v2134 = vld [vmem:[#allocation7 + $0x3b0] sm:$0xff]
    %v2135 = vld [vmem:[#allocation7 + $0x3d0] sm:$0xff]
    %v2136 = vld [vmem:[#allocation7 + $0x3f0] sm:$0xff]
    %v2137 = vld [vmem:[#allocation7 + $0x410] sm:$0xff]
    %v2138 = vld [vmem:[#allocation7 + $0x430] sm:$0xff]
    %v2139 = vld [vmem:[#allocation7 + $0x450] sm:$0xff]
    %v2140 = vld [vmem:[#allocation7 + $0x470] sm:$0xff]
    %v2141 = vld [vmem:[#allocation7 + $0x490] sm:$0xff]
    %v2142 = vld [vmem:[#allocation7 + $0x4b0] sm:$0xff]
    %v2143 = vld [vmem:[#allocation7 + $0x4d0] sm:$0xff]
    %v2144 = vld [vmem:[#allocation7 + $0x4f0] sm:$0xff]
    %v2145 = vld [vmem:[#allocation7 + $0x510] sm:$0xff]
    %v2146 = vld [vmem:[#allocation7 + $0x530] sm:$0xff]
    %v2147 = vld [vmem:[#allocation7 + $0x550] sm:$0xff]
    %v2148 = vld [vmem:[#allocation7 + $0x570] sm:$0xff]
    %v2149 = vld [vmem:[#allocation7 + $0x590] sm:$0xff]
    %v2150 = vld [vmem:[#allocation7 + $0x5b0] sm:$0xff]
    %v2151 = vld [vmem:[#allocation7 + $0x5d0] sm:$0xff]
    %v2152 = vld [vmem:[#allocation7 + $0x5f0] sm:$0xff]
    %2153 = vmatprep.subr.mxu0 0.0
    %2154 = vmatpush1.msra.mxu0 %v2105
    %2155 = vmatprep.subr.mxu0 0.0
    %2156 = vmatpush1.msra.mxu0 %v2106
    %2157 = vmatprep.subr.mxu0 0.0
    %2158 = vmatpush1.msra.mxu0 %v2107
    %2159 = vmatprep.subr.mxu0 0.0
    %2160 = vmatpush1.msra.mxu0 %v2108
    %2161 = vmatprep.subr.mxu0 0.0
    %2162 = vmatpush1.msra.mxu0 %v2109
    %2163 = vmatprep.subr.mxu0 0.0
    %2164 = vmatpush1.msra.mxu0 %v2110
    %2165 = vmatprep.subr.mxu0 0.0
    %2166 = vmatpush1.msra.mxu0 %v2111
    %2167 = vmatprep.subr.mxu0 0.0
    %2168 = vmatpush1.msra.mxu0 %v2112
    %2169 = vmatprep.subr.mxu0 0.0
    %2170 = vmatpush1.msra.mxu0 %v2113
    %2171 = vmatprep.subr.mxu0 0.0
    %2172 = vmatpush1.msra.mxu0 %v2114
    %2173 = vmatprep.subr.mxu0 0.0
    %2174 = vmatpush1.msra.mxu0 %v2115
    %2175 = vmatprep.subr.mxu0 0.0
    %2176 = vmatpush1.msra.mxu0 %v2116
    %2177 = vmatprep.subr.mxu0 0.0
    %2178 = vmatpush1.msra.mxu0 %v2117
    %2179 = vmatprep.subr.mxu0 0.0
    %2180 = vmatpush1.msra.mxu0 %v2118
    %2181 = vmatprep.subr.mxu0 0.0
    %2182 = vmatpush1.msra.mxu0 %v2119
    %2183 = vmatprep.subr.mxu0 0.0
    %2184 = vmatpush1.msra.mxu0 %v2120
    %2185 = vmatprep.subr.mxu0 0.0
    %2186 = vmatpush1.msra.mxu0 %v2121
    %2187 = vmatprep.subr.mxu0 0.0
    %2188 = vmatpush1.msra.mxu0 %v2122
    %2189 = vmatprep.subr.mxu0 0.0
    %2190 = vmatpush1.msra.mxu0 %v2123
    %2191 = vmatprep.subr.mxu0 0.0
    %2192 = vmatpush1.msra.mxu0 %v2124
    %2193 = vmatprep.subr.mxu0 0.0
    %2194 = vmatpush1.msra.mxu0 %v2125
    %2195 = vmatprep.subr.mxu0 0.0
    %2196 = vmatpush1.msra.mxu0 %v2126
    %2197 = vmatprep.subr.mxu0 0.0
    %2198 = vmatpush1.msra.mxu0 %v2127
    %2199 = vmatprep.subr.mxu0 0.0
    %2200 = vmatpush1.msra.mxu0 %v2128
    %2201 = vmatprep.subr.mxu0 0.0
    %2202 = vmatpush1.msra.mxu0 %v2129
    %2203 = vmatprep.subr.mxu0 0.0
    %2204 = vmatpush1.msra.mxu0 %v2130
    %2205 = vmatprep.subr.mxu0 0.0
    %2206 = vmatpush1.msra.mxu0 %v2131
    %2207 = vmatprep.subr.mxu0 0.0
    %2208 = vmatpush1.msra.mxu0 %v2132
    %2209 = vmatprep.subr.mxu0 0.0
    %2210 = vmatpush1.msra.mxu0 %v2133
    %2211 = vmatprep.subr.mxu0 0.0
    %2212 = vmatpush1.msra.mxu0 %v2134
    %2213 = vmatprep.subr.mxu0 0.0
    %2214 = vmatpush1.msra.mxu0 %v2135
    %2215 = vmatprep.subr.mxu0 0.0
    %2216 = vmatpush1.msra.mxu0 %v2136
    %2217 = vmatprep.mubr.f32.mxu0 %v1726
    %2218 = vmatmul.mubr.f32.gmra.mrb[0].mxu0 %v1725
    %v2219 = vpop.f32.mrb[0].mxu0
    %v2220 = vadd.f32 0.0, %v2219
    %v2221 = vpop.f32.mrb[0].mxu0
    %2222 = vdwg.mxu0
    %2223 = vmatprep.subr.mxu0 0.0
    %2224 = vmatpush1.msra.mxu0 %v2137
    %2225 = vmatprep.subr.mxu0 0.0
    %2226 = vmatpush1.msra.mxu0 %v2138
    %2227 = vmatprep.subr.mxu0 0.0
    %2228 = vmatpush1.msra.mxu0 %v2139
    %2229 = vmatprep.subr.mxu0 0.0
    %2230 = vmatpush1.msra.mxu0 %v2140
    %2231 = vmatprep.subr.mxu0 0.0
    %2232 = vmatpush1.msra.mxu0 %v2141
    %2233 = vmatprep.subr.mxu0 0.0
    %2234 = vmatpush1.msra.mxu0 %v2142
    %2235 = vmatprep.subr.mxu0 0.0
    %2236 = vmatpush1.msra.mxu0 %v2143
    %2237 = vmatprep.subr.mxu0 0.0
    %2238 = vmatpush1.msra.mxu0 %v2144
    %2239 = vmatprep.subr.mxu0 0.0
    %2240 = vmatpush1.msra.mxu0 %v2145
    %2241 = vmatprep.subr.mxu0 0.0
    %2242 = vmatpush1.msra.mxu0 %v2146
    %2243 = vmatprep.subr.mxu0 0.0
    %2244 = vmatpush1.msra.mxu0 %v2147
    %2245 = vmatprep.subr.mxu0 0.0
    %2246 = vmatpush1.msra.mxu0 %v2148
    %2247 = vmatprep.subr.mxu0 0.0
    %2248 = vmatpush1.msra.mxu0 %v2149
    %2249 = vmatprep.subr.mxu0 0.0
    %2250 = vmatpush1.msra.mxu0 %v2150
    %2251 = vmatprep.subr.mxu0 0.0
    %2252 = vmatpush1.msra.mxu0 %v2151
    %2253 = vmatprep.subr.mxu0 0.0
    %2254 = vmatpush1.msra.mxu0 %v2152
    %2255 = vmatprep.subr.mxu0 0.0
    %2256 = vmatpush1.msra.mxu0 0.0
    %2257 = vmatprep.subr.mxu0 0.0
    %2258 = vmatpush1.msra.mxu0 0.0
    %2259 = vmatprep.subr.mxu0 0.0
    %2260 = vmatpush1.msra.mxu0 0.0
    %2261 = vmatprep.subr.mxu0 0.0
    %2262 = vmatpush1.msra.mxu0 0.0
    %2263 = vmatprep.subr.mxu0 0.0
    %2264 = vmatpush1.msra.mxu0 0.0
    %2265 = vmatprep.subr.mxu0 0.0
    %2266 = vmatpush1.msra.mxu0 0.0
    %2267 = vmatprep.subr.mxu0 0.0
    %2268 = vmatpush1.msra.mxu0 0.0
    %2269 = vmatprep.subr.mxu0 0.0
    %2270 = vmatpush1.msra.mxu0 0.0
    %2271 = vmatprep.subr.mxu0 0.0
    %2272 = vmatpush1.msra.mxu0 0.0
    %2273 = vmatprep.subr.mxu0 0.0
    %2274 = vmatpush1.msra.mxu0 0.0
    %2275 = vmatprep.subr.mxu0 0.0
    %2276 = vmatpush1.msra.mxu0 0.0
    %2277 = vmatprep.subr.mxu0 0.0
    %2278 = vmatpush1.msra.mxu0 0.0
    %2279 = vmatprep.subr.mxu0 0.0
    %2280 = vmatpush1.msra.mxu0 0.0
    %2281 = vmatprep.subr.mxu0 0.0
    %2282 = vmatpush1.msra.mxu0 0.0
    %2283 = vmatprep.subr.mxu0 0.0
    %2284 = vmatpush1.msra.mxu0 0.0
    %2285 = vmatprep.subr.mxu0 0.0
    %2286 = vmatpush1.msra.mxu0 0.0
    %2287 = vmatprep.mubr.f32.mxu0 0.0
    %2288 = vmatmul.mubr.f32.gmra.mrb[0].mxu0 %v1727
    %v2289 = vpop.f32.mrb[0].mxu0
    %v2290 = vadd.f32 %v2220, %v2289
    %v2291 = vpop.f32.mrb[0].mxu0
    %2292 = vdwg.mxu0
    %v2293 = vmax.f32 %v2104, %v2290
    %v2294 = vld [vmem:[#allocation7 + $0x18] sm:$0xff]
    %v2295 = vld [vmem:[#allocation7 + $0x38] sm:$0xff]
    %v2296 = vld [vmem:[#allocation7 + $0x58] sm:$0xff]
    %v2297 = vld [vmem:[#allocation7 + $0x78] sm:$0xff]
    %v2298 = vld [vmem:[#allocation7 + $0x98] sm:$0xff]
    %v2299 = vld [vmem:[#allocation7 + $0xb8] sm:$0xff]
    %v2300 = vld [vmem:[#allocation7 + $0xd8] sm:$0xff]
    %v2301 = vld [vmem:[#allocation7 + $0xf8] sm:$0xff]
    %v2302 = vld [vmem:[#allocation7 + $0x118] sm:$0xff]
    %v2303 = vld [vmem:[#allocation7 + $0x138] sm:$0xff]
    %v2304 = vld [vmem:[#allocation7 + $0x158] sm:$0xff]
    %v2305 = vld [vmem:[#allocation7 + $0x178] sm:$0xff]
    %v2306 = vld [vmem:[#allocation7 + $0x198] sm:$0xff]
    %v2307 = vld [vmem:[#allocation7 + $0x1b8] sm:$0xff]
    %v2308 = vld [vmem:[#allocation7 + $0x1d8] sm:$0xff]
    %v2309 = vld [vmem:[#allocation7 + $0x1f8] sm:$0xff]
    %v2310 = vld [vmem:[#allocation7 + $0x218] sm:$0xff]
    %v2311 = vld [vmem:[#allocation7 + $0x238] sm:$0xff]
    %v2312 = vld [vmem:[#allocation7 + $0x258] sm:$0xff]
    %v2313 = vld [vmem:[#allocation7 + $0x278] sm:$0xff]
    %v2314 = vld [vmem:[#allocation7 + $0x298] sm:$0xff]
    %v2315 = vld [vmem:[#allocation7 + $0x2b8] sm:$0xff]
    %v2316 = vld [vmem:[#allocation7 + $0x2d8] sm:$0xff]
    %v2317 = vld [vmem:[#allocation7 + $0x2f8] sm:$0xff]
    %v2318 = vld [vmem:[#allocation7 + $0x318] sm:$0xff]
    %v2319 = vld [vmem:[#allocation7 + $0x338] sm:$0xff]
    %v2320 = vld [vmem:[#allocation7 + $0x358] sm:$0xff]
    %v2321 = vld [vmem:[#allocation7 + $0x378] sm:$0xff]
    %v2322 = vld [vmem:[#allocation7 + $0x398] sm:$0xff]
    %v2323 = vld [vmem:[#allocation7 + $0x3b8] sm:$0xff]
    %v2324 = vld [vmem:[#allocation7 + $0x3d8] sm:$0xff]
    %v2325 = vld [vmem:[#allocation7 + $0x3f8] sm:$0xff]
    %v2326 = vld [vmem:[#allocation7 + $0x418] sm:$0xff]
    %v2327 = vld [vmem:[#allocation7 + $0x438] sm:$0xff]
    %v2328 = vld [vmem:[#allocation7 + $0x458] sm:$0xff]
    %v2329 = vld [vmem:[#allocation7 + $0x478] sm:$0xff]
    %v2330 = vld [vmem:[#allocation7 + $0x498] sm:$0xff]
    %v2331 = vld [vmem:[#allocation7 + $0x4b8] sm:$0xff]
    %v2332 = vld [vmem:[#allocation7 + $0x4d8] sm:$0xff]
    %v2333 = vld [vmem:[#allocation7 + $0x4f8] sm:$0xff]
    %v2334 = vld [vmem:[#allocation7 + $0x518] sm:$0xff]
    %v2335 = vld [vmem:[#allocation7 + $0x538] sm:$0xff]
    %v2336 = vld [vmem:[#allocation7 + $0x558] sm:$0xff]
    %v2337 = vld [vmem:[#allocation7 + $0x578] sm:$0xff]
    %v2338 = vld [vmem:[#allocation7 + $0x598] sm:$0xff]
    %v2339 = vld [vmem:[#allocation7 + $0x5b8] sm:$0xff]
    %v2340 = vld [vmem:[#allocation7 + $0x5d8] sm:$0xff]
    %v2341 = vld [vmem:[#allocation7 + $0x5f8] sm:$0xff]
    %2342 = vmatprep.subr.mxu0 0.0
    %2343 = vmatpush1.msra.mxu0 %v2294
    %2344 = vmatprep.subr.mxu0 0.0
    %2345 = vmatpush1.msra.mxu0 %v2295
    %2346 = vmatprep.subr.mxu0 0.0
    %2347 = vmatpush1.msra.mxu0 %v2296
    %2348 = vmatprep.subr.mxu0 0.0
    %2349 = vmatpush1.msra.mxu0 %v2297
    %2350 = vmatprep.subr.mxu0 0.0
    %2351 = vmatpush1.msra.mxu0 %v2298
    %2352 = vmatprep.subr.mxu0 0.0
    %2353 = vmatpush1.msra.mxu0 %v2299
    %2354 = vmatprep.subr.mxu0 0.0
    %2355 = vmatpush1.msra.mxu0 %v2300
    %2356 = vmatprep.subr.mxu0 0.0
    %2357 = vmatpush1.msra.mxu0 %v2301
    %2358 = vmatprep.subr.mxu0 0.0
    %2359 = vmatpush1.msra.mxu0 %v2302
    %2360 = vmatprep.subr.mxu0 0.0
    %2361 = vmatpush1.msra.mxu0 %v2303
    %2362 = vmatprep.subr.mxu0 0.0
    %2363 = vmatpush1.msra.mxu0 %v2304
    %2364 = vmatprep.subr.mxu0 0.0
    %2365 = vmatpush1.msra.mxu0 %v2305
    %2366 = vmatprep.subr.mxu0 0.0
    %2367 = vmatpush1.msra.mxu0 %v2306
    %2368 = vmatprep.subr.mxu0 0.0
    %2369 = vmatpush1.msra.mxu0 %v2307
    %2370 = vmatprep.subr.mxu0 0.0
    %2371 = vmatpush1.msra.mxu0 %v2308
    %2372 = vmatprep.subr.mxu0 0.0
    %2373 = vmatpush1.msra.mxu0 %v2309
    %2374 = vmatprep.subr.mxu0 0.0
    %2375 = vmatpush1.msra.mxu0 %v2310
    %2376 = vmatprep.subr.mxu0 0.0
    %2377 = vmatpush1.msra.mxu0 %v2311
    %2378 = vmatprep.subr.mxu0 0.0
    %2379 = vmatpush1.msra.mxu0 %v2312
    %2380 = vmatprep.subr.mxu0 0.0
    %2381 = vmatpush1.msra.mxu0 %v2313
    %2382 = vmatprep.subr.mxu0 0.0
    %2383 = vmatpush1.msra.mxu0 %v2314
    %2384 = vmatprep.subr.mxu0 0.0
    %2385 = vmatpush1.msra.mxu0 %v2315
    %2386 = vmatprep.subr.mxu0 0.0
    %2387 = vmatpush1.msra.mxu0 %v2316
    %2388 = vmatprep.subr.mxu0 0.0
    %2389 = vmatpush1.msra.mxu0 %v2317
    %2390 = vmatprep.subr.mxu0 0.0
    %2391 = vmatpush1.msra.mxu0 %v2318
    %2392 = vmatprep.subr.mxu0 0.0
    %2393 = vmatpush1.msra.mxu0 %v2319
    %2394 = vmatprep.subr.mxu0 0.0
    %2395 = vmatpush1.msra.mxu0 %v2320
    %2396 = vmatprep.subr.mxu0 0.0
    %2397 = vmatpush1.msra.mxu0 %v2321
    %2398 = vmatprep.subr.mxu0 0.0
    %2399 = vmatpush1.msra.mxu0 %v2322
    %2400 = vmatprep.subr.mxu0 0.0
    %2401 = vmatpush1.msra.mxu0 %v2323
    %2402 = vmatprep.subr.mxu0 0.0
    %2403 = vmatpush1.msra.mxu0 %v2324
    %2404 = vmatprep.subr.mxu0 0.0
    %2405 = vmatpush1.msra.mxu0 %v2325
    %2406 = vmatprep.mubr.f32.mxu0 %v1726
    %2407 = vmatmul.mubr.f32.gmra.mrb[0].mxu0 %v1725
    %v2408 = vpop.f32.mrb[0].mxu0
    %v2409 = vadd.f32 0.0, %v2408
    %v2410 = vpop.f32.mrb[0].mxu0
    %2411 = vdwg.mxu0
    %2412 = vmatprep.subr.mxu0 0.0
    %2413 = vmatpush1.msra.mxu0 %v2326
    %2414 = vmatprep.subr.mxu0 0.0
    %2415 = vmatpush1.msra.mxu0 %v2327
    %2416 = vmatprep.subr.mxu0 0.0
    %2417 = vmatpush1.msra.mxu0 %v2328
    %2418 = vmatprep.subr.mxu0 0.0
    %2419 = vmatpush1.msra.mxu0 %v2329
    %2420 = vmatprep.subr.mxu0 0.0
    %2421 = vmatpush1.msra.mxu0 %v2330
    %2422 = vmatprep.subr.mxu0 0.0
    %2423 = vmatpush1.msra.mxu0 %v2331
    %2424 = vmatprep.subr.mxu0 0.0
    %2425 = vmatpush1.msra.mxu0 %v2332
    %2426 = vmatprep.subr.mxu0 0.0
    %2427 = vmatpush1.msra.mxu0 %v2333
    %2428 = vmatprep.subr.mxu0 0.0
    %2429 = vmatpush1.msra.mxu0 %v2334
    %2430 = vmatprep.subr.mxu0 0.0
    %2431 = vmatpush1.msra.mxu0 %v2335
    %2432 = vmatprep.subr.mxu0 0.0
    %2433 = vmatpush1.msra.mxu0 %v2336
    %2434 = vmatprep.subr.mxu0 0.0
    %2435 = vmatpush1.msra.mxu0 %v2337
    %2436 = vmatprep.subr.mxu0 0.0
    %2437 = vmatpush1.msra.mxu0 %v2338
    %2438 = vmatprep.subr.mxu0 0.0
    %2439 = vmatpush1.msra.mxu0 %v2339
    %2440 = vmatprep.subr.mxu0 0.0
    %2441 = vmatpush1.msra.mxu0 %v2340
    %2442 = vmatprep.subr.mxu0 0.0
    %2443 = vmatpush1.msra.mxu0 %v2341
    %2444 = vmatprep.subr.mxu0 0.0
    %2445 = vmatpush1.msra.mxu0 0.0
    %2446 = vmatprep.subr.mxu0 0.0
    %2447 = vmatpush1.msra.mxu0 0.0
    %2448 = vmatprep.subr.mxu0 0.0
    %2449 = vmatpush1.msra.mxu0 0.0
    %2450 = vmatprep.subr.mxu0 0.0
    %2451 = vmatpush1.msra.mxu0 0.0
    %2452 = vmatprep.subr.mxu0 0.0
    %2453 = vmatpush1.msra.mxu0 0.0
    %2454 = vmatprep.subr.mxu0 0.0
    %2455 = vmatpush1.msra.mxu0 0.0
    %2456 = vmatprep.subr.mxu0 0.0
    %2457 = vmatpush1.msra.mxu0 0.0
    %2458 = vmatprep.subr.mxu0 0.0
    %2459 = vmatpush1.msra.mxu0 0.0
    %2460 = vmatprep.subr.mxu0 0.0
    %2461 = vmatpush1.msra.mxu0 0.0
    %2462 = vmatprep.subr.mxu0 0.0
    %2463 = vmatpush1.msra.mxu0 0.0
    %2464 = vmatprep.subr.mxu0 0.0
    %2465 = vmatpush1.msra.mxu0 0.0
    %2466 = vmatprep.subr.mxu0 0.0
    %2467 = vmatpush1.msra.mxu0 0.0
    %2468 = vmatprep.subr.mxu0 0.0
    %2469 = vmatpush1.msra.mxu0 0.0
    %2470 = vmatprep.subr.mxu0 0.0
    %2471 = vmatpush1.msra.mxu0 0.0
    %2472 = vmatprep.subr.mxu0 0.0
    %2473 = vmatpush1.msra.mxu0 0.0
    %2474 = vmatprep.subr.mxu0 0.0
    %2475 = vmatpush1.msra.mxu0 0.0
    %2476 = vmatprep.mubr.f32.mxu0 0.0
    %2477 = vmatmul.mubr.f32.gmra.mrb[0].mxu0 %v1727
    %v2478 = vpop.f32.mrb[0].mxu0
    %v2479 = vadd.f32 %v2409, %v2478
    %v2480 = vpop.f32.mrb[0].mxu0
    %2481 = vdwg.mxu0
    %v2482 = vmax.f32 %v2293, %v2479
    %v2483 = vld [vmem:[#allocation8] sm:$0x1]
    %v2485 = vlaneseq
    %v2486 = vshrl.u32 %v2485, 7
    %v2487 = vsub.s32 0, %v2486
    %v2488 = vrot.slane %v2483, %v2487
    %v2490 = vadd.f32 %v2482, %v2488
    %vm2491 = vcmp.gt.f32.partialorder %v2490, 0.0
    %v2492 = vmul.f32 %v2490, 0.01
    %v2493 = vsel %vm2491, %v2490, %v2492
    %v2494 = vld [vmem:[#allocation10] sm:$0xff]
    %v2495 = vld [vmem:[#allocation10 + $0x8] sm:$0xff]
    %v2496 = vld [vmem:[#allocation10 + $0x10] sm:$0xff]
    %v2497 = vld [vmem:[#allocation10 + $0x18] sm:$0xff]
    %v2498 = vld [vmem:[#allocation10 + $0x20] sm:$0xff]
    %v2499 = vld [vmem:[#allocation10 + $0x28] sm:$0xff]
    %v2500 = vld [vmem:[#allocation10 + $0x30] sm:$0xff]
    %v2501 = vld [vmem:[#allocation10 + $0x38] sm:$0xff]
    %v2502 = vld [vmem:[#allocation10 + $0x40] sm:$0xff]
    %v2503 = vld [vmem:[#allocation10 + $0x48] sm:$0xff]
    %v2504 = vld [vmem:[#allocation10 + $0x50] sm:$0xff]
    %v2505 = vld [vmem:[#allocation10 + $0x58] sm:$0xff]
    %v2506 = vld [vmem:[#allocation10 + $0x60] sm:$0xff]
    %v2507 = vld [vmem:[#allocation10 + $0x68] sm:$0xff]
    %v2508 = vld [vmem:[#allocation10 + $0x70] sm:$0xff]
    %v2509 = vld [vmem:[#allocation10 + $0x78] sm:$0xff]
    %v2510 = vld [vmem:[#allocation11] sm:$0x1]
    %v2512 = vlaneseq
    %v2513 = vshrl.u32 %v2512, 7
    %v2514 = vsub.s32 0, %v2513
    %v2515 = vrot.slane %v2510, %v2514
    %2517 = vmatprep.subr.mxu0 0.0
    %2518 = vmatpush1.msra.mxu0 %v2494
    %2519 = vmatprep.subr.mxu0 0.0
    %2520 = vmatpush1.msra.mxu0 %v2495
    %2521 = vmatprep.subr.mxu0 0.0
    %2522 = vmatpush1.msra.mxu0 %v2496
    %2523 = vmatprep.subr.mxu0 0.0
    %2524 = vmatpush1.msra.mxu0 %v2497
    %2525 = vmatprep.subr.mxu0 0.0
    %2526 = vmatpush1.msra.mxu0 %v2498
    %2527 = vmatprep.subr.mxu0 0.0
    %2528 = vmatpush1.msra.mxu0 %v2499
    %2529 = vmatprep.subr.mxu0 0.0
    %2530 = vmatpush1.msra.mxu0 %v2500
    %2531 = vmatprep.subr.mxu0 0.0
    %2532 = vmatpush1.msra.mxu0 %v2501
    %2533 = vmatprep.subr.mxu0 0.0
    %2534 = vmatpush1.msra.mxu0 %v2502
    %2535 = vmatprep.subr.mxu0 0.0
    %2536 = vmatpush1.msra.mxu0 %v2503
    %2537 = vmatprep.subr.mxu0 0.0
    %2538 = vmatpush1.msra.mxu0 %v2504
    %2539 = vmatprep.subr.mxu0 0.0
    %2540 = vmatpush1.msra.mxu0 %v2505
    %2541 = vmatprep.subr.mxu0 0.0
    %2542 = vmatpush1.msra.mxu0 %v2506
    %2543 = vmatprep.subr.mxu0 0.0
    %2544 = vmatpush1.msra.mxu0 %v2507
    %2545 = vmatprep.subr.mxu0 0.0
    %2546 = vmatpush1.msra.mxu0 %v2508
    %2547 = vmatprep.subr.mxu0 0.0
    %2548 = vmatpush1.msra.mxu0 %v2509
    %2549 = vmatprep.subr.mxu0 0.0
    %2550 = vmatpush1.msra.mxu0 0.0
    %2551 = vmatprep.subr.mxu0 0.0
    %2552 = vmatpush1.msra.mxu0 0.0
    %2553 = vmatprep.subr.mxu0 0.0
    %2554 = vmatpush1.msra.mxu0 0.0
    %2555 = vmatprep.subr.mxu0 0.0
    %2556 = vmatpush1.msra.mxu0 0.0
    %2557 = vmatprep.subr.mxu0 0.0
    %2558 = vmatpush1.msra.mxu0 0.0
    %2559 = vmatprep.subr.mxu0 0.0
    %2560 = vmatpush1.msra.mxu0 0.0
    %2561 = vmatprep.subr.mxu0 0.0
    %2562 = vmatpush1.msra.mxu0 0.0
    %2563 = vmatprep.subr.mxu0 0.0
    %2564 = vmatpush1.msra.mxu0 0.0
    %2565 = vmatprep.subr.mxu0 0.0
    %2566 = vmatpush1.msra.mxu0 0.0
    %2567 = vmatprep.subr.mxu0 0.0
    %2568 = vmatpush1.msra.mxu0 0.0
    %2569 = vmatprep.subr.mxu0 0.0
    %2570 = vmatpush1.msra.mxu0 0.0
    %2571 = vmatprep.subr.mxu0 0.0
    %2572 = vmatpush1.msra.mxu0 0.0
    %2573 = vmatprep.subr.mxu0 0.0
    %2574 = vmatpush1.msra.mxu0 0.0
    %2575 = vmatprep.subr.mxu0 0.0
    %2576 = vmatpush1.msra.mxu0 0.0
    %2577 = vmatprep.subr.mxu0 0.0
    %2578 = vmatpush1.msra.mxu0 0.0
    %2579 = vmatprep.subr.mxu0 0.0
    %2580 = vmatpush1.msra.mxu0 0.0
    %2581 = vmatprep.mubr.f32.mxu0 0.0
    %2582 = vmatmul.mubr.f32.gmra.mrb[0].mxu0 %v2493
    %v2583 = vpop.f32.mrb[0].mxu0
    %v2584 = vadd.f32 %v2515, %v2583
    %v2585 = vpop.f32.mrb[0].mxu0
    %2586 = vdwg.mxu0
    %vm2587 = vcmp.gt.f32.partialorder %v2584, 0.0
    %v2588 = vmul.f32 %v2584, 0.01
    %v2589 = vsel %vm2587, %v2584, %v2588
    %v2590 = vld [vmem:[#allocation13] sm:$0xff]
    %v2591 = vld [vmem:[#allocation13 + $0x8] sm:$0xff]
    %v2592 = vld [vmem:[#allocation13 + $0x10] sm:$0xff]
    %v2593 = vld [vmem:[#allocation13 + $0x18] sm:$0xff]
    %v2594 = vld [vmem:[#allocation13 + $0x20] sm:$0xff]
    %v2595 = vld [vmem:[#allocation13 + $0x28] sm:$0xff]
    %v2596 = vld [vmem:[#allocation13 + $0x30] sm:$0xff]
    %v2597 = vld [vmem:[#allocation13 + $0x38] sm:$0xff]
    %v2598 = vld [vmem:[#allocation13 + $0x40] sm:$0xff]
    %v2599 = vld [vmem:[#allocation13 + $0x48] sm:$0xff]
    %v2600 = vld [vmem:[#allocation13 + $0x50] sm:$0xff]
    %v2601 = vld [vmem:[#allocation13 + $0x58] sm:$0xff]
    %v2602 = vld [vmem:[#allocation13 + $0x60] sm:$0xff]
    %v2603 = vld [vmem:[#allocation13 + $0x68] sm:$0xff]
    %v2604 = vld [vmem:[#allocation13 + $0x70] sm:$0xff]
    %v2605 = vld [vmem:[#allocation13 + $0x78] sm:$0xff]
    %v2606 = vld [vmem:[#allocation14] sm:$0x1]
    %v2608 = vlaneseq
    %v2609 = vshrl.u32 %v2608, 7
    %v2610 = vsub.s32 0, %v2609
    %v2611 = vrot.slane %v2606, %v2610
    %2613 = vmatprep.subr.mxu0 0.0
    %2614 = vmatpush1.msra.mxu0 %v2590
    %2615 = vmatprep.subr.mxu0 0.0
    %2616 = vmatpush1.msra.mxu0 %v2591
    %2617 = vmatprep.subr.mxu0 0.0
    %2618 = vmatpush1.msra.mxu0 %v2592
    %2619 = vmatprep.subr.mxu0 0.0
    %2620 = vmatpush1.msra.mxu0 %v2593
    %2621 = vmatprep.subr.mxu0 0.0
    %2622 = vmatpush1.msra.mxu0 %v2594
    %2623 = vmatprep.subr.mxu0 0.0
    %2624 = vmatpush1.msra.mxu0 %v2595
    %2625 = vmatprep.subr.mxu0 0.0
    %2626 = vmatpush1.msra.mxu0 %v2596
    %2627 = vmatprep.subr.mxu0 0.0
    %2628 = vmatpush1.msra.mxu0 %v2597
    %2629 = vmatprep.subr.mxu0 0.0
    %2630 = vmatpush1.msra.mxu0 %v2598
    %2631 = vmatprep.subr.mxu0 0.0
    %2632 = vmatpush1.msra.mxu0 %v2599
    %2633 = vmatprep.subr.mxu0 0.0
    %2634 = vmatpush1.msra.mxu0 %v2600
    %2635 = vmatprep.subr.mxu0 0.0
    %2636 = vmatpush1.msra.mxu0 %v2601
    %2637 = vmatprep.subr.mxu0 0.0
    %2638 = vmatpush1.msra.mxu0 %v2602
    %2639 = vmatprep.subr.mxu0 0.0
    %2640 = vmatpush1.msra.mxu0 %v2603
    %2641 = vmatprep.subr.mxu0 0.0
    %2642 = vmatpush1.msra.mxu0 %v2604
    %2643 = vmatprep.subr.mxu0 0.0
    %2644 = vmatpush1.msra.mxu0 %v2605
    %2645 = vmatprep.subr.mxu0 0.0
    %2646 = vmatpush1.msra.mxu0 0.0
    %2647 = vmatprep.subr.mxu0 0.0
    %2648 = vmatpush1.msra.mxu0 0.0
    %2649 = vmatprep.subr.mxu0 0.0
    %2650 = vmatpush1.msra.mxu0 0.0
    %2651 = vmatprep.subr.mxu0 0.0
    %2652 = vmatpush1.msra.mxu0 0.0
    %2653 = vmatprep.subr.mxu0 0.0
    %2654 = vmatpush1.msra.mxu0 0.0
    %2655 = vmatprep.subr.mxu0 0.0
    %2656 = vmatpush1.msra.mxu0 0.0
    %2657 = vmatprep.subr.mxu0 0.0
    %2658 = vmatpush1.msra.mxu0 0.0
    %2659 = vmatprep.subr.mxu0 0.0
    %2660 = vmatpush1.msra.mxu0 0.0
    %2661 = vmatprep.subr.mxu0 0.0
    %2662 = vmatpush1.msra.mxu0 0.0
    %2663 = vmatprep.subr.mxu0 0.0
    %2664 = vmatpush1.msra.mxu0 0.0
    %2665 = vmatprep.subr.mxu0 0.0
    %2666 = vmatpush1.msra.mxu0 0.0
    %2667 = vmatprep.subr.mxu0 0.0
    %2668 = vmatpush1.msra.mxu0 0.0
    %2669 = vmatprep.subr.mxu0 0.0
    %2670 = vmatpush1.msra.mxu0 0.0
    %2671 = vmatprep.subr.mxu0 0.0
    %2672 = vmatpush1.msra.mxu0 0.0
    %2673 = vmatprep.subr.mxu0 0.0
    %2674 = vmatpush1.msra.mxu0 0.0
    %2675 = vmatprep.subr.mxu0 0.0
    %2676 = vmatpush1.msra.mxu0 0.0
    %2677 = vmatprep.mubr.f32.mxu0 0.0
    %2678 = vmatmul.mubr.f32.gmra.mrb[0].mxu0 %v2589
    %v2679 = vpop.f32.mrb[0].mxu0
    %v2680 = vadd.f32 %v2611, %v2679
    %v2681 = vpop.f32.mrb[0].mxu0
    %2682 = vdwg.mxu0
    %vm2683 = vcmp.gt.f32.partialorder %v2680, 0.0
    %v2684 = vmul.f32 %v2680, 0.01
    %v2685 = vsel %vm2683, %v2680, %v2684
    %v2686 = vld [vmem:[#allocation16] sm:$0xff]
    %v2687 = vld [vmem:[#allocation16 + $0x8] sm:$0xff]
    %v2688 = vld [vmem:[#allocation16 + $0x10] sm:$0xff]
    %v2689 = vld [vmem:[#allocation16 + $0x18] sm:$0xff]
    %v2690 = vld [vmem:[#allocation16 + $0x20] sm:$0xff]
    %v2691 = vld [vmem:[#allocation16 + $0x28] sm:$0xff]
    %v2692 = vld [vmem:[#allocation16 + $0x30] sm:$0xff]
    %v2693 = vld [vmem:[#allocation16 + $0x38] sm:$0xff]
    %v2694 = vld [vmem:[#allocation16 + $0x40] sm:$0xff]
    %v2695 = vld [vmem:[#allocation16 + $0x48] sm:$0xff]
    %v2696 = vld [vmem:[#allocation16 + $0x50] sm:$0xff]
    %v2697 = vld [vmem:[#allocation16 + $0x58] sm:$0xff]
    %v2698 = vld [vmem:[#allocation16 + $0x60] sm:$0xff]
    %v2699 = vld [vmem:[#allocation16 + $0x68] sm:$0xff]
    %v2700 = vld [vmem:[#allocation16 + $0x70] sm:$0xff]
    %v2701 = vld [vmem:[#allocation16 + $0x78] sm:$0xff]
    %v2702 = vld [vmem:[#allocation17] sm:$0x1]
    %v2704 = vlaneseq
    %v2705 = vshrl.u32 %v2704, 7
    %v2706 = vsub.s32 0, %v2705
    %v2707 = vrot.slane %v2702, %v2706
    %2709 = vmatprep.subr.mxu0 0.0
    %2710 = vmatpush1.msra.mxu0 %v2686
    %2711 = vmatprep.subr.mxu0 0.0
    %2712 = vmatpush1.msra.mxu0 %v2687
    %2713 = vmatprep.subr.mxu0 0.0
    %2714 = vmatpush1.msra.mxu0 %v2688
    %2715 = vmatprep.subr.mxu0 0.0
    %2716 = vmatpush1.msra.mxu0 %v2689
    %2717 = vmatprep.subr.mxu0 0.0
    %2718 = vmatpush1.msra.mxu0 %v2690
    %2719 = vmatprep.subr.mxu0 0.0
    %2720 = vmatpush1.msra.mxu0 %v2691
    %2721 = vmatprep.subr.mxu0 0.0
    %2722 = vmatpush1.msra.mxu0 %v2692
    %2723 = vmatprep.subr.mxu0 0.0
    %2724 = vmatpush1.msra.mxu0 %v2693
    %2725 = vmatprep.subr.mxu0 0.0
    %2726 = vmatpush1.msra.mxu0 %v2694
    %2727 = vmatprep.subr.mxu0 0.0
    %2728 = vmatpush1.msra.mxu0 %v2695
    %2729 = vmatprep.subr.mxu0 0.0
    %2730 = vmatpush1.msra.mxu0 %v2696
    %2731 = vmatprep.subr.mxu0 0.0
    %2732 = vmatpush1.msra.mxu0 %v2697
    %2733 = vmatprep.subr.mxu0 0.0
    %2734 = vmatpush1.msra.mxu0 %v2698
    %2735 = vmatprep.subr.mxu0 0.0
    %2736 = vmatpush1.msra.mxu0 %v2699
    %2737 = vmatprep.subr.mxu0 0.0
    %2738 = vmatpush1.msra.mxu0 %v2700
    %2739 = vmatprep.subr.mxu0 0.0
    %2740 = vmatpush1.msra.mxu0 %v2701
    %2741 = vmatprep.subr.mxu0 0.0
    %2742 = vmatpush1.msra.mxu0 0.0
    %2743 = vmatprep.subr.mxu0 0.0
    %2744 = vmatpush1.msra.mxu0 0.0
    %2745 = vmatprep.subr.mxu0 0.0
    %2746 = vmatpush1.msra.mxu0 0.0
    %2747 = vmatprep.subr.mxu0 0.0
    %2748 = vmatpush1.msra.mxu0 0.0
    %2749 = vmatprep.subr.mxu0 0.0
    %2750 = vmatpush1.msra.mxu0 0.0
    %2751 = vmatprep.subr.mxu0 0.0
    %2752 = vmatpush1.msra.mxu0 0.0
    %2753 = vmatprep.subr.mxu0 0.0
    %2754 = vmatpush1.msra.mxu0 0.0
    %2755 = vmatprep.subr.mxu0 0.0
    %2756 = vmatpush1.msra.mxu0 0.0
    %2757 = vmatprep.subr.mxu0 0.0
    %2758 = vmatpush1.msra.mxu0 0.0
    %2759 = vmatprep.subr.mxu0 0.0
    %2760 = vmatpush1.msra.mxu0 0.0
    %2761 = vmatprep.subr.mxu0 0.0
    %2762 = vmatpush1.msra.mxu0 0.0
    %2763 = vmatprep.subr.mxu0 0.0
    %2764 = vmatpush1.msra.mxu0 0.0
    %2765 = vmatprep.subr.mxu0 0.0
    %2766 = vmatpush1.msra.mxu0 0.0
    %2767 = vmatprep.subr.mxu0 0.0
    %2768 = vmatpush1.msra.mxu0 0.0
    %2769 = vmatprep.subr.mxu0 0.0
    %2770 = vmatpush1.msra.mxu0 0.0
    %2771 = vmatprep.subr.mxu0 0.0
    %2772 = vmatpush1.msra.mxu0 0.0
    %2773 = vmatprep.mubr.f32.mxu0 0.0
    %2774 = vmatmul.mubr.f32.gmra.mrb[0].mxu0 %v2685
    %v2775 = vpop.f32.mrb[0].mxu0
    %v2776 = vadd.f32 %v2707, %v2775
    %v2777 = vpop.f32.mrb[0].mxu0
    %2778 = vdwg.mxu0
    %vm2779 = vcmp.gt.f32.partialorder %v2776, 0.0
    %v2780 = vmul.f32 %v2776, 0.01
    %v2781 = vsel %vm2779, %v2776, %v2780
    %v2782 = vld [vmem:[#allocation19] sm:$0xff]
    %v2783 = vld [vmem:[#allocation19 + $0x8] sm:$0xff]
    %v2784 = vld [vmem:[#allocation19 + $0x10] sm:$0xff]
    %v2785 = vld [vmem:[#allocation19 + $0x18] sm:$0xff]
    %v2786 = vld [vmem:[#allocation19 + $0x20] sm:$0xff]
    %v2787 = vld [vmem:[#allocation19 + $0x28] sm:$0xff]
    %v2788 = vld [vmem:[#allocation19 + $0x30] sm:$0xff]
    %v2789 = vld [vmem:[#allocation19 + $0x38] sm:$0xff]
    %v2790 = vld [vmem:[#allocation19 + $0x40] sm:$0xff]
    %v2791 = vld [vmem:[#allocation19 + $0x48] sm:$0xff]
    %v2792 = vld [vmem:[#allocation19 + $0x50] sm:$0xff]
    %v2793 = vld [vmem:[#allocation19 + $0x58] sm:$0xff]
    %v2794 = vld [vmem:[#allocation19 + $0x60] sm:$0xff]
    %v2795 = vld [vmem:[#allocation19 + $0x68] sm:$0xff]
    %v2796 = vld [vmem:[#allocation19 + $0x70] sm:$0xff]
    %v2797 = vld [vmem:[#allocation19 + $0x78] sm:$0xff]
    %v2798 = vld [vmem:[#allocation20] sm:$0x1]
    %v2800 = vlaneseq
    %v2801 = vshrl.u32 %v2800, 7
    %v2802 = vsub.s32 0, %v2801
    %v2803 = vrot.slane %v2798, %v2802
    %2805 = vmatprep.subr.mxu0 0.0
    %2806 = vmatpush1.msra.mxu0 %v2782
    %2807 = vmatprep.subr.mxu0 0.0
    %2808 = vmatpush1.msra.mxu0 %v2783
    %2809 = vmatprep.subr.mxu0 0.0
    %2810 = vmatpush1.msra.mxu0 %v2784
    %2811 = vmatprep.subr.mxu0 0.0
    %2812 = vmatpush1.msra.mxu0 %v2785
    %2813 = vmatprep.subr.mxu0 0.0
    %2814 = vmatpush1.msra.mxu0 %v2786
    %2815 = vmatprep.subr.mxu0 0.0
    %2816 = vmatpush1.msra.mxu0 %v2787
    %2817 = vmatprep.subr.mxu0 0.0
    %2818 = vmatpush1.msra.mxu0 %v2788
    %2819 = vmatprep.subr.mxu0 0.0
    %2820 = vmatpush1.msra.mxu0 %v2789
    %2821 = vmatprep.subr.mxu0 0.0
    %2822 = vmatpush1.msra.mxu0 %v2790
    %2823 = vmatprep.subr.mxu0 0.0
    %2824 = vmatpush1.msra.mxu0 %v2791
    %2825 = vmatprep.subr.mxu0 0.0
    %2826 = vmatpush1.msra.mxu0 %v2792
    %2827 = vmatprep.subr.mxu0 0.0
    %2828 = vmatpush1.msra.mxu0 %v2793
    %2829 = vmatprep.subr.mxu0 0.0
    %2830 = vmatpush1.msra.mxu0 %v2794
    %2831 = vmatprep.subr.mxu0 0.0
    %2832 = vmatpush1.msra.mxu0 %v2795
    %2833 = vmatprep.subr.mxu0 0.0
    %2834 = vmatpush1.msra.mxu0 %v2796
    %2835 = vmatprep.subr.mxu0 0.0
    %2836 = vmatpush1.msra.mxu0 %v2797
    %2837 = vmatprep.subr.mxu0 0.0
    %2838 = vmatpush1.msra.mxu0 0.0
    %2839 = vmatprep.subr.mxu0 0.0
    %2840 = vmatpush1.msra.mxu0 0.0
    %2841 = vmatprep.subr.mxu0 0.0
    %2842 = vmatpush1.msra.mxu0 0.0
    %2843 = vmatprep.subr.mxu0 0.0
    %2844 = vmatpush1.msra.mxu0 0.0
    %2845 = vmatprep.subr.mxu0 0.0
    %2846 = vmatpush1.msra.mxu0 0.0
    %2847 = vmatprep.subr.mxu0 0.0
    %2848 = vmatpush1.msra.mxu0 0.0
    %2849 = vmatprep.subr.mxu0 0.0
    %2850 = vmatpush1.msra.mxu0 0.0
    %2851 = vmatprep.subr.mxu0 0.0
    %2852 = vmatpush1.msra.mxu0 0.0
    %2853 = vmatprep.subr.mxu0 0.0
    %2854 = vmatpush1.msra.mxu0 0.0
    %2855 = vmatprep.subr.mxu0 0.0
    %2856 = vmatpush1.msra.mxu0 0.0
    %2857 = vmatprep.subr.mxu0 0.0
    %2858 = vmatpush1.msra.mxu0 0.0
    %2859 = vmatprep.subr.mxu0 0.0
    %2860 = vmatpush1.msra.mxu0 0.0
    %2861 = vmatprep.subr.mxu0 0.0
    %2862 = vmatpush1.msra.mxu0 0.0
    %2863 = vmatprep.subr.mxu0 0.0
    %2864 = vmatpush1.msra.mxu0 0.0
    %2865 = vmatprep.subr.mxu0 0.0
    %2866 = vmatpush1.msra.mxu0 0.0
    %2867 = vmatprep.subr.mxu0 0.0
    %2868 = vmatpush1.msra.mxu0 0.0
    %2869 = vmatprep.mubr.f32.mxu0 0.0
    %2870 = vmatmul.mubr.f32.gmra.mrb[0].mxu0 %v2781
    %v2871 = vpop.f32.mrb[0].mxu0
    %v2872 = vadd.f32 %v2803, %v2871
    %v2873 = vpop.f32.mrb[0].mxu0
    %2874 = vdwg.mxu0
    %v2875 = vlaneseq
    %v2876 = vand.u32 %v2875, 127
    %vm2877 = vcmp.lt.s32.totalorder %v2876, 10
    %v2878 = vsel %vm2877, %v2872, -1e+30
    %2879 = vmax.xlane.f32.xlu0 %v2878
    %v2880 = vpop.xlane.xlu0 %2879
    %v2881 = vsub.f32 %v2878, %v2880
    %v2882 = vmul.f32 %v2881, 1.442695
    %v2883 = vpow.pop %v2882
    %2884 = vadd.xlane.f32.xlu0 %v2883
    %v2885 = vpop.xlane.xlu0 %2884
    %v2886 = vlog2.pop %v2885
    %v2887 = vmul.f32 %v2886, 0.6931472
    %v2888 = vsub.f32 %v2881, %v2887
    %2889 = vst [vmem:[%s13] sm:$0xff] %v2888
    // Predicated region
    $region102: #{_lambda_.1} parent=1 // pred_check
      _
    $region103: #{_lambda_.1} parent=1 // pred_check_branch
      %2891 = sbr.rel (0) target = $region105
    $region104: #{_lambda_.1} parent=1 // pred_region
      _
    $region105: #{_lambda_.1} parent=1 // pred_fallthru
      _
    // Predicated region
    $region106: #{_lambda_.1} parent=1 // pred_check
      _
    $region107: #{_lambda_.1} parent=1 // pred_check_branch
      %2893 = sbr.rel (0) target = $region109
    $region108: #{_lambda_.1} parent=1 // pred_region
      _
    $region109: #{_lambda_.1} parent=1 // pred_fallthru
      _
    %2894 = vsyncpa [#allocation4], 1
    %2895 = vsyncpa [#allocation6], 1
    %2896 = vsyncpa [#allocation9], 1
    %2897 = vsyncpa [#allocation12], 1
    %2898 = vsyncpa [#allocation15], 1
    %2899 = vsyncpa [#allocation18], 1
    %2900 = vsyncpa [#allocation21], 1

</llo_original>
